<compile_context>
chip_gen: v7x
topology: tpu7x:2x2x1
jax: 0.10.0
libtpu: 0.0.40
codegen_flags: <defaults>
</compile_context>

<pallas_src>
import functools

import numpy as np

import jax
import jax.numpy as jnp
from jax.experimental import pallas as pl
from jax.experimental.pallas import tpu as pltpu


# ---------------------------------------------------------------------------
# tiny cached numpy helpers (index math only, no tensor data)
# ---------------------------------------------------------------------------
@functools.lru_cache(maxsize=None)
def _axis_taps(out_size, in_size):
    """Bilinear (align_corners=True) source taps per output index."""
    taps = []
    for o in range(out_size):
        if out_size == 1 or in_size == 1:
            taps.append((0, 1.0, 0, 0.0))
            continue
        s = o * (in_size - 1) / (out_size - 1)
        i0 = min(max(int(np.floor(s)), 0), in_size - 1)
        i1 = min(i0 + 1, in_size - 1)
        f = float(s - i0)
        taps.append((i0, 1.0 - f, i1, f))
    return tuple(taps)


@functools.lru_cache(maxsize=None)
def _col_upsample_pad_matrix(w_lo, w_hi, pad_l):
    """(W_lo, W_hi+2) separable column factor: bilinear x2 upsample along the
    width axis + F.pad left offset + conv zero halo."""
    wp = w_hi + 2
    a = np.zeros((w_lo, wp), np.float32)
    for c, (i0, w0, i1, w1) in enumerate(_axis_taps(2 * w_lo, w_lo)):
        a[i0, 1 + pad_l + c] += w0
        a[i1, 1 + pad_l + c] += w1
    return a


@functools.lru_cache(maxsize=None)
def _interior_mask(h, w, offset, length):
    """(1, length) 0/1 mask of the interior of the flattened (h+2, w+2) padded
    grid whose flat position 0 sits at lane `offset`."""
    wp = w + 2
    m = np.zeros((1, length), np.float32)
    for y in range(h):
        c0 = offset + (y + 1) * wp + 1
        m[0, c0:c0 + w] = 1.0
    return m


# ---------------------------------------------------------------------------
# the fused Pallas kernel
# ---------------------------------------------------------------------------
def _up_kernel(x1_ref, x2_ref, ucol_ref, mask1_ref, mask2_ref,
               w1a_ref, w1b_ref, w2_ref, g1_ref, bt1_ref, g2_ref, bt2_ref,
               o_ref, a0x2_ref, a0x1_ref, *,
               n_batch, c1, c2, h_lo, w_lo, h_hi, w_hi, pad_t, e1, eps):
    wp = w_hi + 2
    hp = h_hi + 2
    s_grid = hp * wp               # flattened padded (H+2, W+2) grid
    base = wp + 1                  # max |3x3 tap offset| on the flat grid
    off0 = 2 * base                # left margin of the stage-0 input slabs
    offs = [(kh - 1) * wp + (kw - 1) for kh in range(3) for kw in range(3)]
    cmid = g1_ref.shape[0]
    inv_cnt = 1.0 / float(n_batch * h_hi * w_hi)

    # ---- stage-0 input slabs (channel-major rows, lane-flattened spatial) ---
    a0x2_ref[...] = jnp.zeros(a0x2_ref.shape, a0x2_ref.dtype)
    a0x1_ref[...] = jnp.zeros(a0x1_ref.shape, a0x1_ref.dtype)

    # x2: zero-pad embed via direct static lane-slice copies (no dense matrix)
    x2 = x2_ref[...]                                     # (N*C2, H*W)
    for y in range(h_hi):
        dst = off0 + (y + 1) * wp + 1
        a0x2_ref[:, dst:dst + w_hi] = x2[:, y * w_hi:(y + 1) * w_hi]

    # x1: separable bilinear x2 upsample + F.pad.  Column pass = one batched
    # MXU matmul; row pass = per-output-row weighted sum of two source rows.
    cols = jnp.dot(x1_ref[...], ucol_ref[...],
                   preferred_element_type=jnp.float32)   # (N*C1*H_lo, Wp)
    cols3 = cols.reshape(n_batch * c1, h_lo, wp)
    for r, (i0, rw0, i1, rw1) in enumerate(_axis_taps(2 * h_lo, h_lo)):
        if i1 == i0:
            row = cols3[:, i0, :] * (rw0 + rw1)
        elif rw1 == 0.0:
            row = cols3[:, i0, :] * rw0
        else:
            row = cols3[:, i0, :] * rw0 + cols3[:, i1, :] * rw1
        dst = off0 + (pad_t + 1 + r) * wp
        a0x1_ref[:, dst:dst + wp] = row

    a0x2 = a0x2_ref[...]
    a0x1 = a0x1_ref[...]

    # ---- 3x3 conv: 9 taps fused into the contraction dim (1 dot / plane) ----
    def conv(src, row0, cg, w_taps, out_len):
        stacked = jnp.concatenate(
            [src[row0:row0 + cg, base + d:base + d + out_len] for d in offs],
            axis=0)                                      # (9*Cg, out_len)
        return jnp.dot(w_taps, stacked, preferred_element_type=jnp.float32)

    # ---- training-mode BatchNorm (two-pass, masked) + ReLU -------------------
    def bn_relu(accs, mask, gamma, beta, keep_mask):
        tot = None
        for a in accs:
            t = jnp.sum(a * mask, axis=-1, keepdims=True)
            tot = t if tot is None else tot + t
        mean = tot * inv_cnt
        vtot = None
        for a in accs:                                   # mean-subtracted pass
            d = (a - mean) * mask
            v = jnp.sum(d * d, axis=-1, keepdims=True)
            vtot = v if vtot is None else vtot + v
        var = vtot * inv_cnt
        scale = jax.lax.rsqrt(var + eps) * gamma
        shift = beta - mean * scale
        outs = []
        for a in accs:
            y = jnp.maximum(a * scale + shift, 0.0)
            outs.append(y * mask if keep_mask else y)
        return outs

    w1a, w1b, w2 = w1a_ref[...], w1b_ref[...], w2_ref[...]
    mask1, mask2 = mask1_ref[...], mask2_ref[...]

    # stage 1: conv3x3(cat([x2, up(x1)])) -> BN -> ReLU.  torch.cat is realized
    # by splitting the conv-1 weights over the two channel groups; the trailing
    # mask re-zeroes the halo so the result feeds conv-2 without re-padding.
    h1 = [conv(a0x2, n * c2, c2, w1a, e1) + conv(a0x1, n * c1, c1, w1b, e1)
          for n in range(n_batch)]
    h1 = bn_relu(h1, mask1, g1_ref[...], bt1_ref[...], keep_mask=True)

    # stage 2: conv3x3 -> BN -> ReLU (no trailing mask: extraction below only
    # ever reads interior columns).
    h2 = [conv(h1[n], 0, cmid, w2, s_grid) for n in range(n_batch)]
    h2 = bn_relu(h2, mask2, g2_ref[...], bt2_ref[...], keep_mask=False)

    # ---- lane-dense NCHW-flattened output: interior rows via slices+concat --
    for n in range(n_batch):
        rows = [h2[n][:, (y + 1) * wp + 1:(y + 1) * wp + 1 + w_hi]
                for y in range(h_hi)]
        o_ref[n] = jnp.concatenate(rows, axis=-1)        # (Cout, H*W), 128-mult


# ---------------------------------------------------------------------------
# wrapper
# ---------------------------------------------------------------------------
@functools.partial(jax.jit, static_argnames=("eps",))
def up_forward(x1, x2, params, eps=1e-5):
    """Up.forward: bilinear x2 upsample of x1 (align_corners=True), F.pad to
    x2's spatial size, channel concat [x2, x1], then DoubleConv with
    training-mode BatchNorm.  Inputs/outputs are NCHW (PyTorch convention)."""
    n, c1, h_lo, w_lo = x1.shape
    n2, c2, h_hi, w_hi = x2.shape
    assert n == n2
    cmid = params["w1"].shape[0]
    cout = params["w2"].shape[0]
    assert params["w1"].shape[1] == c1 + c2
    assert params["w2"].shape[1] == cmid
    assert h_hi >= 2 * h_lo and w_hi >= 2 * w_lo

    pad_t = (h_hi - 2 * h_lo) // 2
    pad_l = (w_hi - 2 * w_lo) // 2
    wp, hp = w_hi + 2, h_hi + 2
    s_grid = hp * wp
    base = wp + 1

    def rup(v, m=128):
        return ((v + m - 1) // m) * m

    e1 = rup(s_grid + 2 * base)       # conv-1 output / conv-2 input domain
    e0 = rup(e1 + 2 * base)           # stage-0 input slab domain
    assert e1 >= s_grid + 2 * base and e0 >= e1 + 2 * base

    # index-math constants: O(W) / O(H*W) memory, cached, folded by jit
    ucol = jnp.asarray(_col_upsample_pad_matrix(w_lo, w_hi, pad_l))
    mask1 = jnp.asarray(_interior_mask(h_hi, w_hi, base, e1))
    mask2 = jnp.asarray(_interior_mask(h_hi, w_hi, 0, s_grid))

    # 3x3 conv weights with the 9 taps fused into the contraction dimension
    # (tap-major, channel-minor).  Conv biases are intentionally NOT passed:
    # training-mode BatchNorm subtracts the batch mean, which cancels any
    # per-channel constant exactly.
    def tap_fuse(w):
        o, c = w.shape[0], w.shape[1]
        return jnp.transpose(w, (0, 2, 3, 1)).reshape(o, 9 * c)

    w1a = tap_fuse(params["w1"][:, :c2])   # taps acting on the x2 channels
    w1b = tap_fuse(params["w1"][:, c2:])   # taps acting on upsampled x1
    w2f = tap_fuse(params["w2"])
    g1 = params["g1"].reshape(cmid, 1)
    bt1 = params["beta1"].reshape(cmid, 1)
    g2 = params["g2"].reshape(cout, 1)
    bt2 = params["beta2"].reshape(cout, 1)

    flops = (2 * 9 * (c1 + c2) * cmid * n * e1          # conv 1 (fused taps)
             + 2 * 9 * cmid * cout * n * s_grid         # conv 2 (fused taps)
             + 2 * n * c1 * h_lo * w_lo * wp            # column upsample
             + 12 * n * (cmid * e1 + cout * s_grid))    # BN / ReLU / masks
    bytes_accessed = 4 * (x1.size + x2.size + n * cout * h_hi * w_hi
                          + w1a.size + w1b.size + w2f.size
                          + ucol.size + mask1.size + mask2.size)
    slab_bytes = 4 * (n * (c1 + c2) * e0 + n * cmid * e1 + n * cout * s_grid
                      + x1.size + x2.size + n * cout * h_hi * w_hi)
    vmem_limit = int(min(64 * 1024 * 1024,
                         max(16 * 1024 * 1024, 8 * slab_bytes)))

    vmem = pl.BlockSpec(memory_space=pltpu.MemorySpace.VMEM)
    kernel = functools.partial(
        _up_kernel, n_batch=n, c1=c1, c2=c2, h_lo=h_lo, w_lo=w_lo,
        h_hi=h_hi, w_hi=w_hi, pad_t=pad_t, e1=e1, eps=eps)

    out = pl.pallas_call(
        kernel,
        out_shape=jax.ShapeDtypeStruct((n, cout, h_hi * w_hi), jnp.float32),
        in_specs=[vmem] * 12,
        out_specs=vmem,
        scratch_shapes=[pltpu.VMEM((n * c2, e0), jnp.float32),
                        pltpu.VMEM((n * c1, e0), jnp.float32)],
        compiler_params=pltpu.CompilerParams(vmem_limit_bytes=vmem_limit),
        cost_estimate=pl.CostEstimate(flops=int(flops),
                                      transcendentals=int(cmid + cout),
                                      bytes_accessed=int(bytes_accessed)),
    )(x1.reshape(n * c1 * h_lo, w_lo), x2.reshape(n * c2, h_hi * w_hi),
      ucol, mask1, mask2, w1a, w1b, w2f, g1, bt1, g2, bt2)
    return out.reshape(n, cout, h_hi, w_hi)


# ---------------------------------------------------------------------------
# pure-JAX reference (independent implementation), used to validate the kernel
# ---------------------------------------------------------------------------
def _bilinear_up2_ref(x):
    """nn.Upsample(scale_factor=2, mode='bilinear', align_corners=True)."""
    n, c, h, w = x.shape
    ho, wo = 2 * h, 2 * w

    def src(o_size, i_size):
        if o_size == 1 or i_size == 1:
            s = jnp.zeros((o_size,), jnp.float32)
        else:
            s = jnp.arange(o_size, dtype=jnp.float32) * ((i_size - 1) / (o_size - 1))
        i0 = jnp.clip(jnp.floor(s).astype(jnp.int32), 0, i_size - 1)
        i1 = jnp.clip(i0 + 1, 0, i_size - 1)
        return s - i0.astype(jnp.float32), i0, i1

    fy, y0, y1 = src(ho, h)
    fx, x0, x1 = src(wo, w)
    rows = (x[:, :, y0, :] * (1.0 - fy)[None, None, :, None]
            + x[:, :, y1, :] * fy[None, None, :, None])
    return (rows[:, :, :, x0] * (1.0 - fx)[None, None, None, :]
            + rows[:, :, :, x1] * fx[None, None, None, :])


def _conv_bn_relu_ref(x, w, b, g, beta, eps=1e-5):
    y = jax.lax.conv_general_dilated(
        x, w, window_strides=(1, 1), padding="SAME",
        dimension_numbers=("NCHW", "OIHW", "NCHW"))
    y = y + b.reshape(1, -1, 1, 1)
    mean = jnp.mean(y, axis=(0, 2, 3), keepdims=True)
    var = jnp.mean((y - mean) ** 2, axis=(0, 2, 3), keepdims=True)
    y = (y - mean) * jax.lax.rsqrt(var + eps)
    y = y * g.reshape(1, -1, 1, 1) + beta.reshape(1, -1, 1, 1)
    return jnp.maximum(y, 0.0)


def up_forward_ref(x1, x2, p, eps=1e-5):
    x1u = _bilinear_up2_ref(x1)
    dy = x2.shape[2] - x1u.shape[2]
    dx = x2.shape[3] - x1u.shape[3]
    x1u = jnp.pad(x1u, ((0, 0), (0, 0),
                        (dy // 2, dy - dy // 2), (dx // 2, dx - dx // 2)))
    xc = jnp.concatenate([x2, x1u], axis=1)
    h = _conv_bn_relu_ref(xc, p["w1"], p["b1"], p["g1"], p["beta1"], eps)
    return _conv_bn_relu_ref(h, p["w2"], p["b2"], p["g2"], p["beta2"], eps)


if __name__ == "__main__":
    # Up(in_channels=8, out_channels=8, bilinear=True):
    #   x1: low-res features (N, 4, 8, 8), x2: skip features (N, 4, 16, 16)
    #   -> upsample + pad + cat (8 ch) -> DoubleConv(8, out=4, mid=4)
    #   -> output (N, 4, 16, 16)
    N = 2
    in_ch, out_ch = 8, 8
    c_lo = in_ch // 2
    c_skip = in_ch - c_lo
    H_lo = W_lo = 8
    H_hi = W_hi = 16
    cmid = in_ch // 2            # DoubleConv mid_channels = in_channels // 2
    cout = out_ch // 2           # DoubleConv out_channels = out_channels // 2

    key = jax.random.PRNGKey(0)
    ks = jax.random.split(key, 10)
    params = {
        "w1": 0.1 * jax.random.normal(ks[0], (cmid, in_ch, 3, 3), jnp.float32),
        "b1": 0.05 * jax.random.normal(ks[1], (cmid,), jnp.float32),
        "g1": 1.0 + 0.1 * jax.random.normal(ks[2], (cmid,), jnp.float32),
        "beta1": 0.05 * jax.random.normal(ks[3], (cmid,), jnp.float32),
        "w2": 0.1 * jax.random.normal(ks[4], (cout, cmid, 3, 3), jnp.float32),
        "b2": 0.05 * jax.random.normal(ks[5], (cout,), jnp.float32),
        "g2": 1.0 + 0.1 * jax.random.normal(ks[6], (cout,), jnp.float32),
        "beta2": 0.05 * jax.random.normal(ks[7], (cout,), jnp.float32),
    }
    x1 = jax.random.normal(ks[8], (N, c_lo, H_lo, W_lo), jnp.float32)
    x2 = jax.random.normal(ks[9], (N, c_skip, H_hi, W_hi), jnp.float32)

    out = jax.block_until_ready(up_forward(x1, x2, params))
    ref = jax.block_until_ready(up_forward_ref(x1, x2, params))

    assert out.shape == (N, cout, H_hi, W_hi), out.shape
    max_err = float(jnp.max(jnp.abs(out - ref)))
    assert jnp.allclose(out, ref, atol=5e-4, rtol=5e-4), max_err
    print("KERNEL_OK")
</pallas_src>

<mosaic_0001>
module attributes {stable_mosaic.version = 11 : i64} {
  func.func @_up_kernel(%arg0: memref<64x8xf32, #tpu.memory_space<vmem>>, %arg1: memref<8x256xf32, #tpu.memory_space<vmem>>, %arg2: memref<8x18xf32, #tpu.memory_space<vmem>>, %arg3: memref<1x384xf32, #tpu.memory_space<vmem>>, %arg4: memref<1x324xf32, #tpu.memory_space<vmem>>, %arg5: memref<4x36xf32, #tpu.memory_space<vmem>>, %arg6: memref<4x36xf32, #tpu.memory_space<vmem>>, %arg7: memref<4x36xf32, #tpu.memory_space<vmem>>, %arg8: memref<4x1xf32, #tpu.memory_space<vmem>>, %arg9: memref<4x1xf32, #tpu.memory_space<vmem>>, %arg10: memref<4x1xf32, #tpu.memory_space<vmem>>, %arg11: memref<4x1xf32, #tpu.memory_space<vmem>>, %arg12: memref<2x4x256xf32, #tpu.memory_space<vmem>>, %arg13: memref<8x512xf32, #tpu.memory_space<vmem>>, %arg14: memref<8x512xf32, #tpu.memory_space<vmem>>) attributes {dimension_semantics = [], scalar_prefetch = 0 : i64, scratch_operands = 2 : i64, tpu.core_type = #tpu.core_type<tc>} {
    %cst = arith.constant 0.000000e+00 : f32
    %0 = vector.broadcast %cst : f32 to vector<8x512xf32>
    %c0 = arith.constant 0 : index
    %c0_0 = arith.constant 0 : index
    %1 = vector.load %arg13[%c0, %c0_0] : memref<8x512xf32, #tpu.memory_space<vmem>>, vector<8x512xf32>
    tpu.vector_store %arg13[%c0, %c0_0], %0 {strides = array<i32>} : memref<8x512xf32, #tpu.memory_space<vmem>>, vector<8x512xf32>,
    %cst_1 = arith.constant 0.000000e+00 : f32
    %2 = vector.broadcast %cst_1 : f32 to vector<8x512xf32>
    %c0_2 = arith.constant 0 : index
    %c0_3 = arith.constant 0 : index
    %3 = vector.load %arg14[%c0_2, %c0_3] : memref<8x512xf32, #tpu.memory_space<vmem>>, vector<8x512xf32>
    tpu.vector_store %arg14[%c0_2, %c0_3], %2 {strides = array<i32>} : memref<8x512xf32, #tpu.memory_space<vmem>>, vector<8x512xf32>,
    %c0_4 = arith.constant 0 : index
    %c0_5 = arith.constant 0 : index
    %4 = vector.load %arg1[%c0_4, %c0_5] : memref<8x256xf32, #tpu.memory_space<vmem>>, vector<8x256xf32>
    %5 = vector.extract_strided_slice %4 {offsets = [0, 0], sizes = [8, 16], strides = [1, 1]} : vector<8x256xf32> to vector<8x16xf32>
    %c0_6 = arith.constant 0 : index
    %c57 = arith.constant 57 : index
    %6 = vector.load %arg13[%c0_6, %c57] : memref<8x512xf32, #tpu.memory_space<vmem>>, vector<8x16xf32>
    tpu.vector_store %arg13[%c0_6, %c57], %5 {strides = array<i32>} : memref<8x512xf32, #tpu.memory_space<vmem>>, vector<8x16xf32>,
    %7 = vector.extract_strided_slice %4 {offsets = [0, 16], sizes = [8, 16], strides = [1, 1]} : vector<8x256xf32> to vector<8x16xf32>
    %c0_7 = arith.constant 0 : index
    %c75 = arith.constant 75 : index
    %8 = vector.load %arg13[%c0_7, %c75] : memref<8x512xf32, #tpu.memory_space<vmem>>, vector<8x16xf32>
    tpu.vector_store %arg13[%c0_7, %c75], %7 {strides = array<i32>} : memref<8x512xf32, #tpu.memory_space<vmem>>, vector<8x16xf32>,
    %9 = vector.extract_strided_slice %4 {offsets = [0, 32], sizes = [8, 16], strides = [1, 1]} : vector<8x256xf32> to vector<8x16xf32>
    %c0_8 = arith.constant 0 : index
    %c93 = arith.constant 93 : index
    %10 = vector.load %arg13[%c0_8, %c93] : memref<8x512xf32, #tpu.memory_space<vmem>>, vector<8x16xf32>
    tpu.vector_store %arg13[%c0_8, %c93], %9 {strides = array<i32>} : memref<8x512xf32, #tpu.memory_space<vmem>>, vector<8x16xf32>,
    %11 = vector.extract_strided_slice %4 {offsets = [0, 48], sizes = [8, 16], strides = [1, 1]} : vector<8x256xf32> to vector<8x16xf32>
    %c0_9 = arith.constant 0 : index
    %c111 = arith.constant 111 : index
    %12 = vector.load %arg13[%c0_9, %c111] : memref<8x512xf32, #tpu.memory_space<vmem>>, vector<8x16xf32>
    tpu.vector_store %arg13[%c0_9, %c111], %11 {strides = array<i32>} : memref<8x512xf32, #tpu.memory_space<vmem>>, vector<8x16xf32>,
    %13 = vector.extract_strided_slice %4 {offsets = [0, 64], sizes = [8, 16], strides = [1, 1]} : vector<8x256xf32> to vector<8x16xf32>
    %c0_10 = arith.constant 0 : index
    %c129 = arith.constant 129 : index
    %14 = vector.load %arg13[%c0_10, %c129] : memref<8x512xf32, #tpu.memory_space<vmem>>, vector<8x16xf32>
    tpu.vector_store %arg13[%c0_10, %c129], %13 {strides = array<i32>} : memref<8x512xf32, #tpu.memory_space<vmem>>, vector<8x16xf32>,
    %15 = vector.extract_strided_slice %4 {offsets = [0, 80], sizes = [8, 16], strides = [1, 1]} : vector<8x256xf32> to vector<8x16xf32>
    %c0_11 = arith.constant 0 : index
    %c147 = arith.constant 147 : index
    %16 = vector.load %arg13[%c0_11, %c147] : memref<8x512xf32, #tpu.memory_space<vmem>>, vector<8x16xf32>
    tpu.vector_store %arg13[%c0_11, %c147], %15 {strides = array<i32>} : memref<8x512xf32, #tpu.memory_space<vmem>>, vector<8x16xf32>,
    %17 = vector.extract_strided_slice %4 {offsets = [0, 96], sizes = [8, 16], strides = [1, 1]} : vector<8x256xf32> to vector<8x16xf32>
    %c0_12 = arith.constant 0 : index
    %c165 = arith.constant 165 : index
    %18 = vector.load %arg13[%c0_12, %c165] : memref<8x512xf32, #tpu.memory_space<vmem>>, vector<8x16xf32>
    tpu.vector_store %arg13[%c0_12, %c165], %17 {strides = array<i32>} : memref<8x512xf32, #tpu.memory_space<vmem>>, vector<8x16xf32>,
    %19 = vector.extract_strided_slice %4 {offsets = [0, 112], sizes = [8, 16], strides = [1, 1]} : vector<8x256xf32> to vector<8x16xf32>
    %c0_13 = arith.constant 0 : index
    %c183 = arith.constant 183 : index
    %20 = vector.load %arg13[%c0_13, %c183] : memref<8x512xf32, #tpu.memory_space<vmem>>, vector<8x16xf32>
    tpu.vector_store %arg13[%c0_13, %c183], %19 {strides = array<i32>} : memref<8x512xf32, #tpu.memory_space<vmem>>, vector<8x16xf32>,
    %21 = vector.extract_strided_slice %4 {offsets = [0, 128], sizes = [8, 16], strides = [1, 1]} : vector<8x256xf32> to vector<8x16xf32>
    %c0_14 = arith.constant 0 : index
    %c201 = arith.constant 201 : index
    %22 = vector.load %arg13[%c0_14, %c201] : memref<8x512xf32, #tpu.memory_space<vmem>>, vector<8x16xf32>
    tpu.vector_store %arg13[%c0_14, %c201], %21 {strides = array<i32>} : memref<8x512xf32, #tpu.memory_space<vmem>>, vector<8x16xf32>,
    %23 = vector.extract_strided_slice %4 {offsets = [0, 144], sizes = [8, 16], strides = [1, 1]} : vector<8x256xf32> to vector<8x16xf32>
    %c0_15 = arith.constant 0 : index
    %c219 = arith.constant 219 : index
    %24 = vector.load %arg13[%c0_15, %c219] : memref<8x512xf32, #tpu.memory_space<vmem>>, vector<8x16xf32>
    tpu.vector_store %arg13[%c0_15, %c219], %23 {strides = array<i32>} : memref<8x512xf32, #tpu.memory_space<vmem>>, vector<8x16xf32>,
    %25 = vector.extract_strided_slice %4 {offsets = [0, 160], sizes = [8, 16], strides = [1, 1]} : vector<8x256xf32> to vector<8x16xf32>
    %c0_16 = arith.constant 0 : index
    %c237 = arith.constant 237 : index
    %26 = vector.load %arg13[%c0_16, %c237] : memref<8x512xf32, #tpu.memory_space<vmem>>, vector<8x16xf32>
    tpu.vector_store %arg13[%c0_16, %c237], %25 {strides = array<i32>} : memref<8x512xf32, #tpu.memory_space<vmem>>, vector<8x16xf32>,
    %27 = vector.extract_strided_slice %4 {offsets = [0, 176], sizes = [8, 16], strides = [1, 1]} : vector<8x256xf32> to vector<8x16xf32>
    %c0_17 = arith.constant 0 : index
    %c255 = arith.constant 255 : index
    %28 = vector.load %arg13[%c0_17, %c255] : memref<8x512xf32, #tpu.memory_space<vmem>>, vector<8x16xf32>
    tpu.vector_store %arg13[%c0_17, %c255], %27 {strides = array<i32>} : memref<8x512xf32, #tpu.memory_space<vmem>>, vector<8x16xf32>,
    %29 = vector.extract_strided_slice %4 {offsets = [0, 192], sizes = [8, 16], strides = [1, 1]} : vector<8x256xf32> to vector<8x16xf32>
    %c0_18 = arith.constant 0 : index
    %c273 = arith.constant 273 : index
    %30 = vector.load %arg13[%c0_18, %c273] : memref<8x512xf32, #tpu.memory_space<vmem>>, vector<8x16xf32>
    tpu.vector_store %arg13[%c0_18, %c273], %29 {strides = array<i32>} : memref<8x512xf32, #tpu.memory_space<vmem>>, vector<8x16xf32>,
    %31 = vector.extract_strided_slice %4 {offsets = [0, 208], sizes = [8, 16], strides = [1, 1]} : vector<8x256xf32> to vector<8x16xf32>
    %c0_19 = arith.constant 0 : index
    %c291 = arith.constant 291 : index
    %32 = vector.load %arg13[%c0_19, %c291] : memref<8x512xf32, #tpu.memory_space<vmem>>, vector<8x16xf32>
    tpu.vector_store %arg13[%c0_19, %c291], %31 {strides = array<i32>} : memref<8x512xf32, #tpu.memory_space<vmem>>, vector<8x16xf32>,
    %33 = vector.extract_strided_slice %4 {offsets = [0, 224], sizes = [8, 16], strides = [1, 1]} : vector<8x256xf32> to vector<8x16xf32>
    %c0_20 = arith.constant 0 : index
    %c309 = arith.constant 309 : index
    %34 = vector.load %arg13[%c0_20, %c309] : memref<8x512xf32, #tpu.memory_space<vmem>>, vector<8x16xf32>
    tpu.vector_store %arg13[%c0_20, %c309], %33 {strides = array<i32>} : memref<8x512xf32, #tpu.memory_space<vmem>>, vector<8x16xf32>,
    %35 = vector.extract_strided_slice %4 {offsets = [0, 240], sizes = [8, 16], strides = [1, 1]} : vector<8x256xf32> to vector<8x16xf32>
    %c0_21 = arith.constant 0 : index
    %c327 = arith.constant 327 : index
    %36 = vector.load %arg13[%c0_21, %c327] : memref<8x512xf32, #tpu.memory_space<vmem>>, vector<8x16xf32>
    tpu.vector_store %arg13[%c0_21, %c327], %35 {strides = array<i32>} : memref<8x512xf32, #tpu.memory_space<vmem>>, vector<8x16xf32>,
    %c0_22 = arith.constant 0 : index
    %c0_23 = arith.constant 0 : index
    %37 = vector.load %arg0[%c0_22, %c0_23] : memref<64x8xf32, #tpu.memory_space<vmem>>, vector<64x8xf32>
    %c0_24 = arith.constant 0 : index
    %c0_25 = arith.constant 0 : index
    %38 = vector.load %arg2[%c0_24, %c0_25] : memref<8x18xf32, #tpu.memory_space<vmem>>, vector<8x18xf32>
    %cst_26 = arith.constant dense<0.000000e+00> : vector<64x18xf32>
    %39 = tpu.matmul %37, %38, %cst_26 {dimension_numbers = #tpu.dot_dimension_numbers<[1], [0], [0], [1], [0, 0, 1, 1], [], []>} : vector<64x8xf32>, vector<8x18xf32>, vector<64x18xf32> -> vector<64x18xf32>
    %40 = vector.shape_cast %39 : vector<64x18xf32> to vector<8x8x18xf32>
    %41 = vector.extract_strided_slice %40 {offsets = [0, 0, 0], sizes = [8, 1, 18], strides = [1, 1, 1]} : vector<8x8x18xf32> to vector<8x1x18xf32>
    %42 = vector.shape_cast %41 : vector<8x1x18xf32> to vector<8x18xf32>
    %cst_27 = arith.constant 1.000000e+00 : f32
    %43 = vector.broadcast %cst_27 : f32 to vector<8x18xf32>
    %44 = arith.mulf %42, %43 : vector<8x18xf32>
    %c0_28 = arith.constant 0 : index
    %c56 = arith.constant 56 : index
    %45 = vector.load %arg14[%c0_28, %c56] : memref<8x512xf32, #tpu.memory_space<vmem>>, vector<8x18xf32>
    tpu.vector_store %arg14[%c0_28, %c56], %44 {strides = array<i32>} : memref<8x512xf32, #tpu.memory_space<vmem>>, vector<8x18xf32>,
    %46 = vector.extract_strided_slice %40 {offsets = [0, 0, 0], sizes = [8, 1, 18], strides = [1, 1, 1]} : vector<8x8x18xf32> to vector<8x1x18xf32>
    %47 = vector.shape_cast %46 : vector<8x1x18xf32> to vector<8x18xf32>
    %cst_29 = arith.constant 0.533333361 : f32
    %48 = vector.broadcast %cst_29 : f32 to vector<8x18xf32>
    %49 = arith.mulf %47, %48 : vector<8x18xf32>
    %50 = vector.extract_strided_slice %40 {offsets = [0, 1, 0], sizes = [8, 1, 18], strides = [1, 1, 1]} : vector<8x8x18xf32> to vector<8x1x18xf32>
    %51 = vector.shape_cast %50 : vector<8x1x18xf32> to vector<8x18xf32>
    %cst_30 = arith.constant 0.466666669 : f32
    %52 = vector.broadcast %cst_30 : f32 to vector<8x18xf32>
    %53 = arith.mulf %51, %52 : vector<8x18xf32>
    %54 = arith.addf %49, %53 : vector<8x18xf32>
    %c0_31 = arith.constant 0 : index
    %c74 = arith.constant 74 : index
    %55 = vector.load %arg14[%c0_31, %c74] : memref<8x512xf32, #tpu.memory_space<vmem>>, vector<8x18xf32>
    tpu.vector_store %arg14[%c0_31, %c74], %54 {strides = array<i32>} : memref<8x512xf32, #tpu.memory_space<vmem>>, vector<8x18xf32>,
    %56 = vector.extract_strided_slice %40 {offsets = [0, 0, 0], sizes = [8, 1, 18], strides = [1, 1, 1]} : vector<8x8x18xf32> to vector<8x1x18xf32>
    %57 = vector.shape_cast %56 : vector<8x1x18xf32> to vector<8x18xf32>
    %cst_32 = arith.constant 0.0666666701 : f32
    %58 = vector.broadcast %cst_32 : f32 to vector<8x18xf32>
    %59 = arith.mulf %57, %58 : vector<8x18xf32>
    %60 = vector.extract_strided_slice %40 {offsets = [0, 1, 0], sizes = [8, 1, 18], strides = [1, 1, 1]} : vector<8x8x18xf32> to vector<8x1x18xf32>
    %61 = vector.shape_cast %60 : vector<8x1x18xf32> to vector<8x18xf32>
    %cst_33 = arith.constant 0.933333337 : f32
    %62 = vector.broadcast %cst_33 : f32 to vector<8x18xf32>
    %63 = arith.mulf %61, %62 : vector<8x18xf32>
    %64 = arith.addf %59, %63 : vector<8x18xf32>
    %c0_34 = arith.constant 0 : index
    %c92 = arith.constant 92 : index
    %65 = vector.load %arg14[%c0_34, %c92] : memref<8x512xf32, #tpu.memory_space<vmem>>, vector<8x18xf32>
    tpu.vector_store %arg14[%c0_34, %c92], %64 {strides = array<i32>} : memref<8x512xf32, #tpu.memory_space<vmem>>, vector<8x18xf32>,
    %66 = vector.extract_strided_slice %40 {offsets = [0, 1, 0], sizes = [8, 1, 18], strides = [1, 1, 1]} : vector<8x8x18xf32> to vector<8x1x18xf32>
    %67 = vector.shape_cast %66 : vector<8x1x18xf32> to vector<8x18xf32>
    %cst_35 = arith.constant 6.000000e-01 : f32
    %68 = vector.broadcast %cst_35 : f32 to vector<8x18xf32>
    %69 = arith.mulf %67, %68 : vector<8x18xf32>
    %70 = vector.extract_strided_slice %40 {offsets = [0, 2, 0], sizes = [8, 1, 18], strides = [1, 1, 1]} : vector<8x8x18xf32> to vector<8x1x18xf32>
    %71 = vector.shape_cast %70 : vector<8x1x18xf32> to vector<8x18xf32>
    %cst_36 = arith.constant 4.000000e-01 : f32
    %72 = vector.broadcast %cst_36 : f32 to vector<8x18xf32>
    %73 = arith.mulf %71, %72 : vector<8x18xf32>
    %74 = arith.addf %69, %73 : vector<8x18xf32>
    %c0_37 = arith.constant 0 : index
    %c110 = arith.constant 110 : index
    %75 = vector.load %arg14[%c0_37, %c110] : memref<8x512xf32, #tpu.memory_space<vmem>>, vector<8x18xf32>
    tpu.vector_store %arg14[%c0_37, %c110], %74 {strides = array<i32>} : memref<8x512xf32, #tpu.memory_space<vmem>>, vector<8x18xf32>,
    %76 = vector.extract_strided_slice %40 {offsets = [0, 1, 0], sizes = [8, 1, 18], strides = [1, 1, 1]} : vector<8x8x18xf32> to vector<8x1x18xf32>
    %77 = vector.shape_cast %76 : vector<8x1x18xf32> to vector<8x18xf32>
    %cst_38 = arith.constant 0.13333334 : f32
    %78 = vector.broadcast %cst_38 : f32 to vector<8x18xf32>
    %79 = arith.mulf %77, %78 : vector<8x18xf32>
    %80 = vector.extract_strided_slice %40 {offsets = [0, 2, 0], sizes = [8, 1, 18], strides = [1, 1, 1]} : vector<8x8x18xf32> to vector<8x1x18xf32>
    %81 = vector.shape_cast %80 : vector<8x1x18xf32> to vector<8x18xf32>
    %cst_39 = arith.constant 0.866666674 : f32
    %82 = vector.broadcast %cst_39 : f32 to vector<8x18xf32>
    %83 = arith.mulf %81, %82 : vector<8x18xf32>
    %84 = arith.addf %79, %83 : vector<8x18xf32>
    %c0_40 = arith.constant 0 : index
    %c128 = arith.constant 128 : index
    %85 = vector.load %arg14[%c0_40, %c128] : memref<8x512xf32, #tpu.memory_space<vmem>>, vector<8x18xf32>
    tpu.vector_store %arg14[%c0_40, %c128], %84 {strides = array<i32>} : memref<8x512xf32, #tpu.memory_space<vmem>>, vector<8x18xf32>,
    %86 = vector.extract_strided_slice %40 {offsets = [0, 2, 0], sizes = [8, 1, 18], strides = [1, 1, 1]} : vector<8x8x18xf32> to vector<8x1x18xf32>
    %87 = vector.shape_cast %86 : vector<8x1x18xf32> to vector<8x18xf32>
    %cst_41 = arith.constant 0.666666686 : f32
    %88 = vector.broadcast %cst_41 : f32 to vector<8x18xf32>
    %89 = arith.mulf %87, %88 : vector<8x18xf32>
    %90 = vector.extract_strided_slice %40 {offsets = [0, 3, 0], sizes = [8, 1, 18], strides = [1, 1, 1]} : vector<8x8x18xf32> to vector<8x1x18xf32>
    %91 = vector.shape_cast %90 : vector<8x1x18xf32> to vector<8x18xf32>
    %cst_42 = arith.constant 0.333333343 : f32
    %92 = vector.broadcast %cst_42 : f32 to vector<8x18xf32>
    %93 = arith.mulf %91, %92 : vector<8x18xf32>
    %94 = arith.addf %89, %93 : vector<8x18xf32>
    %c0_43 = arith.constant 0 : index
    %c146 = arith.constant 146 : index
    %95 = vector.load %arg14[%c0_43, %c146] : memref<8x512xf32, #tpu.memory_space<vmem>>, vector<8x18xf32>
    tpu.vector_store %arg14[%c0_43, %c146], %94 {strides = array<i32>} : memref<8x512xf32, #tpu.memory_space<vmem>>, vector<8x18xf32>,
    %96 = vector.extract_strided_slice %40 {offsets = [0, 2, 0], sizes = [8, 1, 18], strides = [1, 1, 1]} : vector<8x8x18xf32> to vector<8x1x18xf32>
    %97 = vector.shape_cast %96 : vector<8x1x18xf32> to vector<8x18xf32>
    %cst_44 = arith.constant 2.000000e-01 : f32
    %98 = vector.broadcast %cst_44 : f32 to vector<8x18xf32>
    %99 = arith.mulf %97, %98 : vector<8x18xf32>
    %100 = vector.extract_strided_slice %40 {offsets = [0, 3, 0], sizes = [8, 1, 18], strides = [1, 1, 1]} : vector<8x8x18xf32> to vector<8x1x18xf32>
    %101 = vector.shape_cast %100 : vector<8x1x18xf32> to vector<8x18xf32>
    %cst_45 = arith.constant 8.000000e-01 : f32
    %102 = vector.broadcast %cst_45 : f32 to vector<8x18xf32>
    %103 = arith.mulf %101, %102 : vector<8x18xf32>
    %104 = arith.addf %99, %103 : vector<8x18xf32>
    %c0_46 = arith.constant 0 : index
    %c164 = arith.constant 164 : index
    %105 = vector.load %arg14[%c0_46, %c164] : memref<8x512xf32, #tpu.memory_space<vmem>>, vector<8x18xf32>
    tpu.vector_store %arg14[%c0_46, %c164], %104 {strides = array<i32>} : memref<8x512xf32, #tpu.memory_space<vmem>>, vector<8x18xf32>,
    %106 = vector.extract_strided_slice %40 {offsets = [0, 3, 0], sizes = [8, 1, 18], strides = [1, 1, 1]} : vector<8x8x18xf32> to vector<8x1x18xf32>
    %107 = vector.shape_cast %106 : vector<8x1x18xf32> to vector<8x18xf32>
    %cst_47 = arith.constant 0.733333349 : f32
    %108 = vector.broadcast %cst_47 : f32 to vector<8x18xf32>
    %109 = arith.mulf %107, %108 : vector<8x18xf32>
    %110 = vector.extract_strided_slice %40 {offsets = [0, 4, 0], sizes = [8, 1, 18], strides = [1, 1, 1]} : vector<8x8x18xf32> to vector<8x1x18xf32>
    %111 = vector.shape_cast %110 : vector<8x1x18xf32> to vector<8x18xf32>
    %cst_48 = arith.constant 0.266666681 : f32
    %112 = vector.broadcast %cst_48 : f32 to vector<8x18xf32>
    %113 = arith.mulf %111, %112 : vector<8x18xf32>
    %114 = arith.addf %109, %113 : vector<8x18xf32>
    %c0_49 = arith.constant 0 : index
    %c182 = arith.constant 182 : index
    %115 = vector.load %arg14[%c0_49, %c182] : memref<8x512xf32, #tpu.memory_space<vmem>>, vector<8x18xf32>
    tpu.vector_store %arg14[%c0_49, %c182], %114 {strides = array<i32>} : memref<8x512xf32, #tpu.memory_space<vmem>>, vector<8x18xf32>,
    %116 = vector.extract_strided_slice %40 {offsets = [0, 3, 0], sizes = [8, 1, 18], strides = [1, 1, 1]} : vector<8x8x18xf32> to vector<8x1x18xf32>
    %117 = vector.shape_cast %116 : vector<8x1x18xf32> to vector<8x18xf32>
    %cst_50 = arith.constant 0.266666681 : f32
    %118 = vector.broadcast %cst_50 : f32 to vector<8x18xf32>
    %119 = arith.mulf %117, %118 : vector<8x18xf32>
    %120 = vector.extract_strided_slice %40 {offsets = [0, 4, 0], sizes = [8, 1, 18], strides = [1, 1, 1]} : vector<8x8x18xf32> to vector<8x1x18xf32>
    %121 = vector.shape_cast %120 : vector<8x1x18xf32> to vector<8x18xf32>
    %cst_51 = arith.constant 0.733333349 : f32
    %122 = vector.broadcast %cst_51 : f32 to vector<8x18xf32>
    %123 = arith.mulf %121, %122 : vector<8x18xf32>
    %124 = arith.addf %119, %123 : vector<8x18xf32>
    %c0_52 = arith.constant 0 : index
    %c200 = arith.constant 200 : index
    %125 = vector.load %arg14[%c0_52, %c200] : memref<8x512xf32, #tpu.memory_space<vmem>>, vector<8x18xf32>
    tpu.vector_store %arg14[%c0_52, %c200], %124 {strides = array<i32>} : memref<8x512xf32, #tpu.memory_space<vmem>>, vector<8x18xf32>,
    %126 = vector.extract_strided_slice %40 {offsets = [0, 4, 0], sizes = [8, 1, 18], strides = [1, 1, 1]} : vector<8x8x18xf32> to vector<8x1x18xf32>
    %127 = vector.shape_cast %126 : vector<8x1x18xf32> to vector<8x18xf32>
    %cst_53 = arith.constant 8.000000e-01 : f32
    %128 = vector.broadcast %cst_53 : f32 to vector<8x18xf32>
    %129 = arith.mulf %127, %128 : vector<8x18xf32>
    %130 = vector.extract_strided_slice %40 {offsets = [0, 5, 0], sizes = [8, 1, 18], strides = [1, 1, 1]} : vector<8x8x18xf32> to vector<8x1x18xf32>
    %131 = vector.shape_cast %130 : vector<8x1x18xf32> to vector<8x18xf32>
    %cst_54 = arith.constant 2.000000e-01 : f32
    %132 = vector.broadcast %cst_54 : f32 to vector<8x18xf32>
    %133 = arith.mulf %131, %132 : vector<8x18xf32>
    %134 = arith.addf %129, %133 : vector<8x18xf32>
    %c0_55 = arith.constant 0 : index
    %c218 = arith.constant 218 : index
    %135 = vector.load %arg14[%c0_55, %c218] : memref<8x512xf32, #tpu.memory_space<vmem>>, vector<8x18xf32>
    tpu.vector_store %arg14[%c0_55, %c218], %134 {strides = array<i32>} : memref<8x512xf32, #tpu.memory_space<vmem>>, vector<8x18xf32>,
    %136 = vector.extract_strided_slice %40 {offsets = [0, 4, 0], sizes = [8, 1, 18], strides = [1, 1, 1]} : vector<8x8x18xf32> to vector<8x1x18xf32>
    %137 = vector.shape_cast %136 : vector<8x1x18xf32> to vector<8x18xf32>
    %cst_56 = arith.constant 0.333333343 : f32
    %138 = vector.broadcast %cst_56 : f32 to vector<8x18xf32>
    %139 = arith.mulf %137, %138 : vector<8x18xf32>
    %140 = vector.extract_strided_slice %40 {offsets = [0, 5, 0], sizes = [8, 1, 18], strides = [1, 1, 1]} : vector<8x8x18xf32> to vector<8x1x18xf32>
    %141 = vector.shape_cast %140 : vector<8x1x18xf32> to vector<8x18xf32>
    %cst_57 = arith.constant 0.666666686 : f32
    %142 = vector.broadcast %cst_57 : f32 to vector<8x18xf32>
    %143 = arith.mulf %141, %142 : vector<8x18xf32>
    %144 = arith.addf %139, %143 : vector<8x18xf32>
    %c0_58 = arith.constant 0 : index
    %c236 = arith.constant 236 : index
    %145 = vector.load %arg14[%c0_58, %c236] : memref<8x512xf32, #tpu.memory_space<vmem>>, vector<8x18xf32>
    tpu.vector_store %arg14[%c0_58, %c236], %144 {strides = array<i32>} : memref<8x512xf32, #tpu.memory_space<vmem>>, vector<8x18xf32>,
    %146 = vector.extract_strided_slice %40 {offsets = [0, 5, 0], sizes = [8, 1, 18], strides = [1, 1, 1]} : vector<8x8x18xf32> to vector<8x1x18xf32>
    %147 = vector.shape_cast %146 : vector<8x1x18xf32> to vector<8x18xf32>
    %cst_59 = arith.constant 0.866666674 : f32
    %148 = vector.broadcast %cst_59 : f32 to vector<8x18xf32>
    %149 = arith.mulf %147, %148 : vector<8x18xf32>
    %150 = vector.extract_strided_slice %40 {offsets = [0, 6, 0], sizes = [8, 1, 18], strides = [1, 1, 1]} : vector<8x8x18xf32> to vector<8x1x18xf32>
    %151 = vector.shape_cast %150 : vector<8x1x18xf32> to vector<8x18xf32>
    %cst_60 = arith.constant 0.13333334 : f32
    %152 = vector.broadcast %cst_60 : f32 to vector<8x18xf32>
    %153 = arith.mulf %151, %152 : vector<8x18xf32>
    %154 = arith.addf %149, %153 : vector<8x18xf32>
    %c0_61 = arith.constant 0 : index
    %c254 = arith.constant 254 : index
    %155 = vector.load %arg14[%c0_61, %c254] : memref<8x512xf32, #tpu.memory_space<vmem>>, vector<8x18xf32>
    tpu.vector_store %arg14[%c0_61, %c254], %154 {strides = array<i32>} : memref<8x512xf32, #tpu.memory_space<vmem>>, vector<8x18xf32>,
    %156 = vector.extract_strided_slice %40 {offsets = [0, 5, 0], sizes = [8, 1, 18], strides = [1, 1, 1]} : vector<8x8x18xf32> to vector<8x1x18xf32>
    %157 = vector.shape_cast %156 : vector<8x1x18xf32> to vector<8x18xf32>
    %cst_62 = arith.constant 4.000000e-01 : f32
    %158 = vector.broadcast %cst_62 : f32 to vector<8x18xf32>
    %159 = arith.mulf %157, %158 : vector<8x18xf32>
    %160 = vector.extract_strided_slice %40 {offsets = [0, 6, 0], sizes = [8, 1, 18], strides = [1, 1, 1]} : vector<8x8x18xf32> to vector<8x1x18xf32>
    %161 = vector.shape_cast %160 : vector<8x1x18xf32> to vector<8x18xf32>
    %cst_63 = arith.constant 6.000000e-01 : f32
    %162 = vector.broadcast %cst_63 : f32 to vector<8x18xf32>
    %163 = arith.mulf %161, %162 : vector<8x18xf32>
    %164 = arith.addf %159, %163 : vector<8x18xf32>
    %c0_64 = arith.constant 0 : index
    %c272 = arith.constant 272 : index
    %165 = vector.load %arg14[%c0_64, %c272] : memref<8x512xf32, #tpu.memory_space<vmem>>, vector<8x18xf32>
    tpu.vector_store %arg14[%c0_64, %c272], %164 {strides = array<i32>} : memref<8x512xf32, #tpu.memory_space<vmem>>, vector<8x18xf32>,
    %166 = vector.extract_strided_slice %40 {offsets = [0, 6, 0], sizes = [8, 1, 18], strides = [1, 1, 1]} : vector<8x8x18xf32> to vector<8x1x18xf32>
    %167 = vector.shape_cast %166 : vector<8x1x18xf32> to vector<8x18xf32>
    %cst_65 = arith.constant 0.933333337 : f32
    %168 = vector.broadcast %cst_65 : f32 to vector<8x18xf32>
    %169 = arith.mulf %167, %168 : vector<8x18xf32>
    %170 = vector.extract_strided_slice %40 {offsets = [0, 7, 0], sizes = [8, 1, 18], strides = [1, 1, 1]} : vector<8x8x18xf32> to vector<8x1x18xf32>
    %171 = vector.shape_cast %170 : vector<8x1x18xf32> to vector<8x18xf32>
    %cst_66 = arith.constant 0.0666666701 : f32
    %172 = vector.broadcast %cst_66 : f32 to vector<8x18xf32>
    %173 = arith.mulf %171, %172 : vector<8x18xf32>
    %174 = arith.addf %169, %173 : vector<8x18xf32>
    %c0_67 = arith.constant 0 : index
    %c290 = arith.constant 290 : index
    %175 = vector.load %arg14[%c0_67, %c290] : memref<8x512xf32, #tpu.memory_space<vmem>>, vector<8x18xf32>
    tpu.vector_store %arg14[%c0_67, %c290], %174 {strides = array<i32>} : memref<8x512xf32, #tpu.memory_space<vmem>>, vector<8x18xf32>,
    %176 = vector.extract_strided_slice %40 {offsets = [0, 6, 0], sizes = [8, 1, 18], strides = [1, 1, 1]} : vector<8x8x18xf32> to vector<8x1x18xf32>
    %177 = vector.shape_cast %176 : vector<8x1x18xf32> to vector<8x18xf32>
    %cst_68 = arith.constant 0.466666669 : f32
    %178 = vector.broadcast %cst_68 : f32 to vector<8x18xf32>
    %179 = arith.mulf %177, %178 : vector<8x18xf32>
    %180 = vector.extract_strided_slice %40 {offsets = [0, 7, 0], sizes = [8, 1, 18], strides = [1, 1, 1]} : vector<8x8x18xf32> to vector<8x1x18xf32>
    %181 = vector.shape_cast %180 : vector<8x1x18xf32> to vector<8x18xf32>
    %cst_69 = arith.constant 0.533333361 : f32
    %182 = vector.broadcast %cst_69 : f32 to vector<8x18xf32>
    %183 = arith.mulf %181, %182 : vector<8x18xf32>
    %184 = arith.addf %179, %183 : vector<8x18xf32>
    %c0_70 = arith.constant 0 : index
    %c308 = arith.constant 308 : index
    %185 = vector.load %arg14[%c0_70, %c308] : memref<8x512xf32, #tpu.memory_space<vmem>>, vector<8x18xf32>
    tpu.vector_store %arg14[%c0_70, %c308], %184 {strides = array<i32>} : memref<8x512xf32, #tpu.memory_space<vmem>>, vector<8x18xf32>,
    %186 = vector.extract_strided_slice %40 {offsets = [0, 7, 0], sizes = [8, 1, 18], strides = [1, 1, 1]} : vector<8x8x18xf32> to vector<8x1x18xf32>
    %187 = vector.shape_cast %186 : vector<8x1x18xf32> to vector<8x18xf32>
    %cst_71 = arith.constant 1.000000e+00 : f32
    %188 = vector.broadcast %cst_71 : f32 to vector<8x18xf32>
    %189 = arith.mulf %187, %188 : vector<8x18xf32>
    %c0_72 = arith.constant 0 : index
    %c326 = arith.constant 326 : index
    %190 = vector.load %arg14[%c0_72, %c326] : memref<8x512xf32, #tpu.memory_space<vmem>>, vector<8x18xf32>
    tpu.vector_store %arg14[%c0_72, %c326], %189 {strides = array<i32>} : memref<8x512xf32, #tpu.memory_space<vmem>>, vector<8x18xf32>,
    %c0_73 = arith.constant 0 : index
    %c0_74 = arith.constant 0 : index
    %191 = vector.load %arg13[%c0_73, %c0_74] : memref<8x512xf32, #tpu.memory_space<vmem>>, vector<8x512xf32>
    %c0_75 = arith.constant 0 : index
    %c0_76 = arith.constant 0 : index
    %192 = vector.load %arg14[%c0_75, %c0_76] : memref<8x512xf32, #tpu.memory_space<vmem>>, vector<8x512xf32>
    %c0_77 = arith.constant 0 : index
    %c0_78 = arith.constant 0 : index
    %193 = vector.load %arg5[%c0_77, %c0_78] : memref<4x36xf32, #tpu.memory_space<vmem>>, vector<4x36xf32>
    %c0_79 = arith.constant 0 : index
    %c0_80 = arith.constant 0 : index
    %194 = vector.load %arg6[%c0_79, %c0_80] : memref<4x36xf32, #tpu.memory_space<vmem>>, vector<4x36xf32>
    %c0_81 = arith.constant 0 : index
    %c0_82 = arith.constant 0 : index
    %195 = vector.load %arg7[%c0_81, %c0_82] : memref<4x36xf32, #tpu.memory_space<vmem>>, vector<4x36xf32>
    %c0_83 = arith.constant 0 : index
    %c0_84 = arith.constant 0 : index
    %196 = vector.load %arg3[%c0_83, %c0_84] : memref<1x384xf32, #tpu.memory_space<vmem>>, vector<1x384xf32>
    %c0_85 = arith.constant 0 : index
    %c0_86 = arith.constant 0 : index
    %197 = vector.load %arg4[%c0_85, %c0_86] : memref<1x324xf32, #tpu.memory_space<vmem>>, vector<1x324xf32>
    %198 = vector.extract_strided_slice %191 {offsets = [0, 0], sizes = [4, 384], strides = [1, 1]} : vector<8x512xf32> to vector<4x384xf32>
    %199 = vector.extract_strided_slice %191 {offsets = [0, 1], sizes = [4, 384], strides = [1, 1]} : vector<8x512xf32> to vector<4x384xf32>
    %200 = vector.extract_strided_slice %191 {offsets = [0, 2], sizes = [4, 384], strides = [1, 1]} : vector<8x512xf32> to vector<4x384xf32>
    %201 = vector.extract_strided_slice %191 {offsets = [0, 18], sizes = [4, 384], strides = [1, 1]} : vector<8x512xf32> to vector<4x384xf32>
    %202 = vector.extract_strided_slice %191 {offsets = [0, 19], sizes = [4, 384], strides = [1, 1]} : vector<8x512xf32> to vector<4x384xf32>
    %203 = vector.extract_strided_slice %191 {offsets = [0, 20], sizes = [4, 384], strides = [1, 1]} : vector<8x512xf32> to vector<4x384xf32>
    %204 = vector.extract_strided_slice %191 {offsets = [0, 36], sizes = [4, 384], strides = [1, 1]} : vector<8x512xf32> to vector<4x384xf32>
    %205 = vector.extract_strided_slice %191 {offsets = [0, 37], sizes = [4, 384], strides = [1, 1]} : vector<8x512xf32> to vector<4x384xf32>
    %206 = vector.extract_strided_slice %191 {offsets = [0, 38], sizes = [4, 384], strides = [1, 1]} : vector<8x512xf32> to vector<4x384xf32>
    %207 = tpu.concatenate %198, %199, %200, %201, %202, %203, %204, %205, %206 in 0 : vector<4x384xf32>, vector<4x384xf32>, vector<4x384xf32>, vector<4x384xf32>, vector<4x384xf32>, vector<4x384xf32>, vector<4x384xf32>, vector<4x384xf32>, vector<4x384xf32> -> vector<36x384xf32>
    %cst_87 = arith.constant dense<0.000000e+00> : vector<4x384xf32>
    %208 = tpu.matmul %193, %207, %cst_87 {dimension_numbers = #tpu.dot_dimension_numbers<[1], [0], [0], [1], [0, 0, 1, 1], [], []>} : vector<4x36xf32>, vector<36x384xf32>, vector<4x384xf32> -> vector<4x384xf32>
    %209 = vector.extract_strided_slice %192 {offsets = [0, 0], sizes = [4, 384], strides = [1, 1]} : vector<8x512xf32> to vector<4x384xf32>
    %210 = vector.extract_strided_slice %192 {offsets = [0, 1], sizes = [4, 384], strides = [1, 1]} : vector<8x512xf32> to vector<4x384xf32>
    %211 = vector.extract_strided_slice %192 {offsets = [0, 2], sizes = [4, 384], strides = [1, 1]} : vector<8x512xf32> to vector<4x384xf32>
    %212 = vector.extract_strided_slice %192 {offsets = [0, 18], sizes = [4, 384], strides = [1, 1]} : vector<8x512xf32> to vector<4x384xf32>
    %213 = vector.extract_strided_slice %192 {offsets = [0, 19], sizes = [4, 384], strides = [1, 1]} : vector<8x512xf32> to vector<4x384xf32>
    %214 = vector.extract_strided_slice %192 {offsets = [0, 20], sizes = [4, 384], strides = [1, 1]} : vector<8x512xf32> to vector<4x384xf32>
    %215 = vector.extract_strided_slice %192 {offsets = [0, 36], sizes = [4, 384], strides = [1, 1]} : vector<8x512xf32> to vector<4x384xf32>
    %216 = vector.extract_strided_slice %192 {offsets = [0, 37], sizes = [4, 384], strides = [1, 1]} : vector<8x512xf32> to vector<4x384xf32>
    %217 = vector.extract_strided_slice %192 {offsets = [0, 38], sizes = [4, 384], strides = [1, 1]} : vector<8x512xf32> to vector<4x384xf32>
    %218 = tpu.concatenate %209, %210, %211, %212, %213, %214, %215, %216, %217 in 0 : vector<4x384xf32>, vector<4x384xf32>, vector<4x384xf32>, vector<4x384xf32>, vector<4x384xf32>, vector<4x384xf32>, vector<4x384xf32>, vector<4x384xf32>, vector<4x384xf32> -> vector<36x384xf32>
    %cst_88 = arith.constant dense<0.000000e+00> : vector<4x384xf32>
    %219 = tpu.matmul %194, %218, %cst_88 {dimension_numbers = #tpu.dot_dimension_numbers<[1], [0], [0], [1], [0, 0, 1, 1], [], []>} : vector<4x36xf32>, vector<36x384xf32>, vector<4x384xf32> -> vector<4x384xf32>
    %220 = arith.addf %208, %219 : vector<4x384xf32>
    %221 = vector.extract_strided_slice %191 {offsets = [4, 0], sizes = [4, 384], strides = [1, 1]} : vector<8x512xf32> to vector<4x384xf32>
    %222 = vector.extract_strided_slice %191 {offsets = [4, 1], sizes = [4, 384], strides = [1, 1]} : vector<8x512xf32> to vector<4x384xf32>
    %223 = vector.extract_strided_slice %191 {offsets = [4, 2], sizes = [4, 384], strides = [1, 1]} : vector<8x512xf32> to vector<4x384xf32>
    %224 = vector.extract_strided_slice %191 {offsets = [4, 18], sizes = [4, 384], strides = [1, 1]} : vector<8x512xf32> to vector<4x384xf32>
    %225 = vector.extract_strided_slice %191 {offsets = [4, 19], sizes = [4, 384], strides = [1, 1]} : vector<8x512xf32> to vector<4x384xf32>
    %226 = vector.extract_strided_slice %191 {offsets = [4, 20], sizes = [4, 384], strides = [1, 1]} : vector<8x512xf32> to vector<4x384xf32>
    %227 = vector.extract_strided_slice %191 {offsets = [4, 36], sizes = [4, 384], strides = [1, 1]} : vector<8x512xf32> to vector<4x384xf32>
    %228 = vector.extract_strided_slice %191 {offsets = [4, 37], sizes = [4, 384], strides = [1, 1]} : vector<8x512xf32> to vector<4x384xf32>
    %229 = vector.extract_strided_slice %191 {offsets = [4, 38], sizes = [4, 384], strides = [1, 1]} : vector<8x512xf32> to vector<4x384xf32>
    %230 = tpu.concatenate %221, %222, %223, %224, %225, %226, %227, %228, %229 in 0 : vector<4x384xf32>, vector<4x384xf32>, vector<4x384xf32>, vector<4x384xf32>, vector<4x384xf32>, vector<4x384xf32>, vector<4x384xf32>, vector<4x384xf32>, vector<4x384xf32> -> vector<36x384xf32>
    %cst_89 = arith.constant dense<0.000000e+00> : vector<4x384xf32>
    %231 = tpu.matmul %193, %230, %cst_89 {dimension_numbers = #tpu.dot_dimension_numbers<[1], [0], [0], [1], [0, 0, 1, 1], [], []>} : vector<4x36xf32>, vector<36x384xf32>, vector<4x384xf32> -> vector<4x384xf32>
    %232 = vector.extract_strided_slice %192 {offsets = [4, 0], sizes = [4, 384], strides = [1, 1]} : vector<8x512xf32> to vector<4x384xf32>
    %233 = vector.extract_strided_slice %192 {offsets = [4, 1], sizes = [4, 384], strides = [1, 1]} : vector<8x512xf32> to vector<4x384xf32>
    %234 = vector.extract_strided_slice %192 {offsets = [4, 2], sizes = [4, 384], strides = [1, 1]} : vector<8x512xf32> to vector<4x384xf32>
    %235 = vector.extract_strided_slice %192 {offsets = [4, 18], sizes = [4, 384], strides = [1, 1]} : vector<8x512xf32> to vector<4x384xf32>
    %236 = vector.extract_strided_slice %192 {offsets = [4, 19], sizes = [4, 384], strides = [1, 1]} : vector<8x512xf32> to vector<4x384xf32>
    %237 = vector.extract_strided_slice %192 {offsets = [4, 20], sizes = [4, 384], strides = [1, 1]} : vector<8x512xf32> to vector<4x384xf32>
    %238 = vector.extract_strided_slice %192 {offsets = [4, 36], sizes = [4, 384], strides = [1, 1]} : vector<8x512xf32> to vector<4x384xf32>
    %239 = vector.extract_strided_slice %192 {offsets = [4, 37], sizes = [4, 384], strides = [1, 1]} : vector<8x512xf32> to vector<4x384xf32>
    %240 = vector.extract_strided_slice %192 {offsets = [4, 38], sizes = [4, 384], strides = [1, 1]} : vector<8x512xf32> to vector<4x384xf32>
    %241 = tpu.concatenate %232, %233, %234, %235, %236, %237, %238, %239, %240 in 0 : vector<4x384xf32>, vector<4x384xf32>, vector<4x384xf32>, vector<4x384xf32>, vector<4x384xf32>, vector<4x384xf32>, vector<4x384xf32>, vector<4x384xf32>, vector<4x384xf32> -> vector<36x384xf32>
    %cst_90 = arith.constant dense<0.000000e+00> : vector<4x384xf32>
    %242 = tpu.matmul %194, %241, %cst_90 {dimension_numbers = #tpu.dot_dimension_numbers<[1], [0], [0], [1], [0, 0, 1, 1], [], []>} : vector<4x36xf32>, vector<36x384xf32>, vector<4x384xf32> -> vector<4x384xf32>
    %243 = arith.addf %231, %242 : vector<4x384xf32>
    %c0_91 = arith.constant 0 : index
    %c0_92 = arith.constant 0 : index
    %244 = vector.load %arg8[%c0_91, %c0_92] : memref<4x1xf32, #tpu.memory_space<vmem>>, vector<4x1xf32>
    %c0_93 = arith.constant 0 : index
    %c0_94 = arith.constant 0 : index
    %245 = vector.load %arg9[%c0_93, %c0_94] : memref<4x1xf32, #tpu.memory_space<vmem>>, vector<4x1xf32>
    %246 = vector.broadcast %196 : vector<1x384xf32> to vector<4x384xf32>
    %247 = arith.mulf %220, %246 : vector<4x384xf32>
    %cst_95 = arith.constant dense<0.000000e+00> : vector<4xf32>
    %248 = vector.multi_reduction <add>, %247, %cst_95 [1] : vector<4x384xf32> to vector<4xf32>
    %249 = vector.shape_cast %248 : vector<4xf32> to vector<4x1xf32>
    %250 = vector.broadcast %196 : vector<1x384xf32> to vector<4x384xf32>
    %251 = arith.mulf %243, %250 : vector<4x384xf32>
    %cst_96 = arith.constant dense<0.000000e+00> : vector<4xf32>
    %252 = vector.multi_reduction <add>, %251, %cst_96 [1] : vector<4x384xf32> to vector<4xf32>
    %253 = vector.shape_cast %252 : vector<4xf32> to vector<4x1xf32>
    %254 = arith.addf %249, %253 : vector<4x1xf32>
    %cst_97 = arith.constant 0.001953125 : f32
    %255 = vector.broadcast %cst_97 : f32 to vector<4x1xf32>
    %256 = arith.mulf %254, %255 : vector<4x1xf32>
    %257 = vector.broadcast %256 : vector<4x1xf32> to vector<4x384xf32>
    %258 = arith.subf %220, %257 : vector<4x384xf32>
    %259 = vector.broadcast %196 : vector<1x384xf32> to vector<4x384xf32>
    %260 = arith.mulf %258, %259 : vector<4x384xf32>
    %261 = arith.mulf %260, %260 : vector<4x384xf32>
    %cst_98 = arith.constant dense<0.000000e+00> : vector<4xf32>
    %262 = vector.multi_reduction <add>, %261, %cst_98 [1] : vector<4x384xf32> to vector<4xf32>
    %263 = vector.shape_cast %262 : vector<4xf32> to vector<4x1xf32>
    %264 = vector.broadcast %256 : vector<4x1xf32> to vector<4x384xf32>
    %265 = arith.subf %243, %264 : vector<4x384xf32>
    %266 = vector.broadcast %196 : vector<1x384xf32> to vector<4x384xf32>
    %267 = arith.mulf %265, %266 : vector<4x384xf32>
    %268 = arith.mulf %267, %267 : vector<4x384xf32>
    %cst_99 = arith.constant dense<0.000000e+00> : vector<4xf32>
    %269 = vector.multi_reduction <add>, %268, %cst_99 [1] : vector<4x384xf32> to vector<4xf32>
    %270 = vector.shape_cast %269 : vector<4xf32> to vector<4x1xf32>
    %271 = arith.addf %263, %270 : vector<4x1xf32>
    %cst_100 = arith.constant 0.001953125 : f32
    %272 = vector.broadcast %cst_100 : f32 to vector<4x1xf32>
    %273 = arith.mulf %271, %272 : vector<4x1xf32>
    %cst_101 = arith.constant 9.99999974E-6 : f32
    %274 = vector.broadcast %cst_101 : f32 to vector<4x1xf32>
    %275 = arith.addf %273, %274 : vector<4x1xf32>
    %276 = math.rsqrt %275 : vector<4x1xf32>
    %277 = arith.mulf %276, %244 : vector<4x1xf32>
    %278 = arith.mulf %256, %277 : vector<4x1xf32>
    %279 = arith.subf %245, %278 : vector<4x1xf32>
    %280 = vector.broadcast %277 : vector<4x1xf32> to vector<4x384xf32>
    %281 = arith.mulf %220, %280 : vector<4x384xf32>
    %282 = vector.broadcast %279 : vector<4x1xf32> to vector<4x384xf32>
    %283 = arith.addf %281, %282 : vector<4x384xf32>
    %cst_102 = arith.constant 0.000000e+00 : f32
    %284 = vector.broadcast %cst_102 : f32 to vector<4x384xf32>
    %285 = arith.maximumf %283, %284 : vector<4x384xf32>
    %286 = vector.broadcast %196 : vector<1x384xf32> to vector<4x384xf32>
    %287 = arith.mulf %285, %286 : vector<4x384xf32>
    %288 = vector.broadcast %277 : vector<4x1xf32> to vector<4x384xf32>
    %289 = arith.mulf %243, %288 : vector<4x384xf32>
    %290 = vector.broadcast %279 : vector<4x1xf32> to vector<4x384xf32>
    %291 = arith.addf %289, %290 : vector<4x384xf32>
    %cst_103 = arith.constant 0.000000e+00 : f32
    %292 = vector.broadcast %cst_103 : f32 to vector<4x384xf32>
    %293 = arith.maximumf %291, %292 : vector<4x384xf32>
    %294 = vector.broadcast %196 : vector<1x384xf32> to vector<4x384xf32>
    %295 = arith.mulf %293, %294 : vector<4x384xf32>
    %296 = vector.extract_strided_slice %287 {offsets = [0, 0], sizes = [4, 324], strides = [1, 1]} : vector<4x384xf32> to vector<4x324xf32>
    %297 = vector.extract_strided_slice %287 {offsets = [0, 1], sizes = [4, 324], strides = [1, 1]} : vector<4x384xf32> to vector<4x324xf32>
    %298 = vector.extract_strided_slice %287 {offsets = [0, 2], sizes = [4, 324], strides = [1, 1]} : vector<4x384xf32> to vector<4x324xf32>
    %299 = vector.extract_strided_slice %287 {offsets = [0, 18], sizes = [4, 324], strides = [1, 1]} : vector<4x384xf32> to vector<4x324xf32>
    %300 = vector.extract_strided_slice %287 {offsets = [0, 19], sizes = [4, 324], strides = [1, 1]} : vector<4x384xf32> to vector<4x324xf32>
    %301 = vector.extract_strided_slice %287 {offsets = [0, 20], sizes = [4, 324], strides = [1, 1]} : vector<4x384xf32> to vector<4x324xf32>
    %302 = vector.extract_strided_slice %287 {offsets = [0, 36], sizes = [4, 324], strides = [1, 1]} : vector<4x384xf32> to vector<4x324xf32>
    %303 = vector.extract_strided_slice %287 {offsets = [0, 37], sizes = [4, 324], strides = [1, 1]} : vector<4x384xf32> to vector<4x324xf32>
    %304 = vector.extract_strided_slice %287 {offsets = [0, 38], sizes = [4, 324], strides = [1, 1]} : vector<4x384xf32> to vector<4x324xf32>
    %305 = tpu.concatenate %296, %297, %298, %299, %300, %301, %302, %303, %304 in 0 : vector<4x324xf32>, vector<4x324xf32>, vector<4x324xf32>, vector<4x324xf32>, vector<4x324xf32>, vector<4x324xf32>, vector<4x324xf32>, vector<4x324xf32>, vector<4x324xf32> -> vector<36x324xf32>
    %cst_104 = arith.constant dense<0.000000e+00> : vector<4x324xf32>
    %306 = tpu.matmul %195, %305, %cst_104 {dimension_numbers = #tpu.dot_dimension_numbers<[1], [0], [0], [1], [0, 0, 1, 1], [], []>} : vector<4x36xf32>, vector<36x324xf32>, vector<4x324xf32> -> vector<4x324xf32>
    %307 = vector.extract_strided_slice %295 {offsets = [0, 0], sizes = [4, 324], strides = [1, 1]} : vector<4x384xf32> to vector<4x324xf32>
    %308 = vector.extract_strided_slice %295 {offsets = [0, 1], sizes = [4, 324], strides = [1, 1]} : vector<4x384xf32> to vector<4x324xf32>
    %309 = vector.extract_strided_slice %295 {offsets = [0, 2], sizes = [4, 324], strides = [1, 1]} : vector<4x384xf32> to vector<4x324xf32>
    %310 = vector.extract_strided_slice %295 {offsets = [0, 18], sizes = [4, 324], strides = [1, 1]} : vector<4x384xf32> to vector<4x324xf32>
    %311 = vector.extract_strided_slice %295 {offsets = [0, 19], sizes = [4, 324], strides = [1, 1]} : vector<4x384xf32> to vector<4x324xf32>
    %312 = vector.extract_strided_slice %295 {offsets = [0, 20], sizes = [4, 324], strides = [1, 1]} : vector<4x384xf32> to vector<4x324xf32>
    %313 = vector.extract_strided_slice %295 {offsets = [0, 36], sizes = [4, 324], strides = [1, 1]} : vector<4x384xf32> to vector<4x324xf32>
    %314 = vector.extract_strided_slice %295 {offsets = [0, 37], sizes = [4, 324], strides = [1, 1]} : vector<4x384xf32> to vector<4x324xf32>
    %315 = vector.extract_strided_slice %295 {offsets = [0, 38], sizes = [4, 324], strides = [1, 1]} : vector<4x384xf32> to vector<4x324xf32>
    %316 = tpu.concatenate %307, %308, %309, %310, %311, %312, %313, %314, %315 in 0 : vector<4x324xf32>, vector<4x324xf32>, vector<4x324xf32>, vector<4x324xf32>, vector<4x324xf32>, vector<4x324xf32>, vector<4x324xf32>, vector<4x324xf32>, vector<4x324xf32> -> vector<36x324xf32>
    %cst_105 = arith.constant dense<0.000000e+00> : vector<4x324xf32>
    %317 = tpu.matmul %195, %316, %cst_105 {dimension_numbers = #tpu.dot_dimension_numbers<[1], [0], [0], [1], [0, 0, 1, 1], [], []>} : vector<4x36xf32>, vector<36x324xf32>, vector<4x324xf32> -> vector<4x324xf32>
    %c0_106 = arith.constant 0 : index
    %c0_107 = arith.constant 0 : index
    %318 = vector.load %arg10[%c0_106, %c0_107] : memref<4x1xf32, #tpu.memory_space<vmem>>, vector<4x1xf32>
    %c0_108 = arith.constant 0 : index
    %c0_109 = arith.constant 0 : index
    %319 = vector.load %arg11[%c0_108, %c0_109] : memref<4x1xf32, #tpu.memory_space<vmem>>, vector<4x1xf32>
    %320 = vector.broadcast %197 : vector<1x324xf32> to vector<4x324xf32>
    %321 = arith.mulf %306, %320 : vector<4x324xf32>
    %cst_110 = arith.constant dense<0.000000e+00> : vector<4xf32>
    %322 = vector.multi_reduction <add>, %321, %cst_110 [1] : vector<4x324xf32> to vector<4xf32>
    %323 = vector.shape_cast %322 : vector<4xf32> to vector<4x1xf32>
    %324 = vector.broadcast %197 : vector<1x324xf32> to vector<4x324xf32>
    %325 = arith.mulf %317, %324 : vector<4x324xf32>
    %cst_111 = arith.constant dense<0.000000e+00> : vector<4xf32>
    %326 = vector.multi_reduction <add>, %325, %cst_111 [1] : vector<4x324xf32> to vector<4xf32>
    %327 = vector.shape_cast %326 : vector<4xf32> to vector<4x1xf32>
    %328 = arith.addf %323, %327 : vector<4x1xf32>
    %cst_112 = arith.constant 0.001953125 : f32
    %329 = vector.broadcast %cst_112 : f32 to vector<4x1xf32>
    %330 = arith.mulf %328, %329 : vector<4x1xf32>
    %331 = vector.broadcast %330 : vector<4x1xf32> to vector<4x324xf32>
    %332 = arith.subf %306, %331 : vector<4x324xf32>
    %333 = vector.broadcast %197 : vector<1x324xf32> to vector<4x324xf32>
    %334 = arith.mulf %332, %333 : vector<4x324xf32>
    %335 = arith.mulf %334, %334 : vector<4x324xf32>
    %cst_113 = arith.constant dense<0.000000e+00> : vector<4xf32>
    %336 = vector.multi_reduction <add>, %335, %cst_113 [1] : vector<4x324xf32> to vector<4xf32>
    %337 = vector.shape_cast %336 : vector<4xf32> to vector<4x1xf32>
    %338 = vector.broadcast %330 : vector<4x1xf32> to vector<4x324xf32>
    %339 = arith.subf %317, %338 : vector<4x324xf32>
    %340 = vector.broadcast %197 : vector<1x324xf32> to vector<4x324xf32>
    %341 = arith.mulf %339, %340 : vector<4x324xf32>
    %342 = arith.mulf %341, %341 : vector<4x324xf32>
    %cst_114 = arith.constant dense<0.000000e+00> : vector<4xf32>
    %343 = vector.multi_reduction <add>, %342, %cst_114 [1] : vector<4x324xf32> to vector<4xf32>
    %344 = vector.shape_cast %343 : vector<4xf32> to vector<4x1xf32>
    %345 = arith.addf %337, %344 : vector<4x1xf32>
    %cst_115 = arith.constant 0.001953125 : f32
    %346 = vector.broadcast %cst_115 : f32 to vector<4x1xf32>
    %347 = arith.mulf %345, %346 : vector<4x1xf32>
    %cst_116 = arith.constant 9.99999974E-6 : f32
    %348 = vector.broadcast %cst_116 : f32 to vector<4x1xf32>
    %349 = arith.addf %347, %348 : vector<4x1xf32>
    %350 = math.rsqrt %349 : vector<4x1xf32>
    %351 = arith.mulf %350, %318 : vector<4x1xf32>
    %352 = arith.mulf %330, %351 : vector<4x1xf32>
    %353 = arith.subf %319, %352 : vector<4x1xf32>
    %354 = vector.broadcast %351 : vector<4x1xf32> to vector<4x324xf32>
    %355 = arith.mulf %306, %354 : vector<4x324xf32>
    %356 = vector.broadcast %353 : vector<4x1xf32> to vector<4x324xf32>
    %357 = arith.addf %355, %356 : vector<4x324xf32>
    %cst_117 = arith.constant 0.000000e+00 : f32
    %358 = vector.broadcast %cst_117 : f32 to vector<4x324xf32>
    %359 = arith.maximumf %357, %358 : vector<4x324xf32>
    %360 = vector.broadcast %351 : vector<4x1xf32> to vector<4x324xf32>
    %361 = arith.mulf %317, %360 : vector<4x324xf32>
    %362 = vector.broadcast %353 : vector<4x1xf32> to vector<4x324xf32>
    %363 = arith.addf %361, %362 : vector<4x324xf32>
    %cst_118 = arith.constant 0.000000e+00 : f32
    %364 = vector.broadcast %cst_118 : f32 to vector<4x324xf32>
    %365 = arith.maximumf %363, %364 : vector<4x324xf32>
    %366 = vector.extract_strided_slice %359 {offsets = [0, 19], sizes = [4, 16], strides = [1, 1]} : vector<4x324xf32> to vector<4x16xf32>
    %367 = vector.extract_strided_slice %359 {offsets = [0, 37], sizes = [4, 16], strides = [1, 1]} : vector<4x324xf32> to vector<4x16xf32>
    %368 = vector.extract_strided_slice %359 {offsets = [0, 55], sizes = [4, 16], strides = [1, 1]} : vector<4x324xf32> to vector<4x16xf32>
    %369 = vector.extract_strided_slice %359 {offsets = [0, 73], sizes = [4, 16], strides = [1, 1]} : vector<4x324xf32> to vector<4x16xf32>
    %370 = vector.extract_strided_slice %359 {offsets = [0, 91], sizes = [4, 16], strides = [1, 1]} : vector<4x324xf32> to vector<4x16xf32>
    %371 = vector.extract_strided_slice %359 {offsets = [0, 109], sizes = [4, 16], strides = [1, 1]} : vector<4x324xf32> to vector<4x16xf32>
    %372 = vector.extract_strided_slice %359 {offsets = [0, 127], sizes = [4, 16], strides = [1, 1]} : vector<4x324xf32> to vector<4x16xf32>
    %373 = vector.extract_strided_slice %359 {offsets = [0, 145], sizes = [4, 16], strides = [1, 1]} : vector<4x324xf32> to vector<4x16xf32>
    %374 = vector.extract_strided_slice %359 {offsets = [0, 163], sizes = [4, 16], strides = [1, 1]} : vector<4x324xf32> to vector<4x16xf32>
    %375 = vector.extract_strided_slice %359 {offsets = [0, 181], sizes = [4, 16], strides = [1, 1]} : vector<4x324xf32> to vector<4x16xf32>
    %376 = vector.extract_strided_slice %359 {offsets = [0, 199], sizes = [4, 16], strides = [1, 1]} : vector<4x324xf32> to vector<4x16xf32>
    %377 = vector.extract_strided_slice %359 {offsets = [0, 217], sizes = [4, 16], strides = [1, 1]} : vector<4x324xf32> to vector<4x16xf32>
    %378 = vector.extract_strided_slice %359 {offsets = [0, 235], sizes = [4, 16], strides = [1, 1]} : vector<4x324xf32> to vector<4x16xf32>
    %379 = vector.extract_strided_slice %359 {offsets = [0, 253], sizes = [4, 16], strides = [1, 1]} : vector<4x324xf32> to vector<4x16xf32>
    %380 = vector.extract_strided_slice %359 {offsets = [0, 271], sizes = [4, 16], strides = [1, 1]} : vector<4x324xf32> to vector<4x16xf32>
    %381 = vector.extract_strided_slice %359 {offsets = [0, 289], sizes = [4, 16], strides = [1, 1]} : vector<4x324xf32> to vector<4x16xf32>
    %382 = tpu.concatenate %366, %367, %368, %369, %370, %371, %372, %373, %374, %375, %376, %377, %378, %379, %380, %381 in 1 : vector<4x16xf32>, vector<4x16xf32>, vector<4x16xf32>, vector<4x16xf32>, vector<4x16xf32>, vector<4x16xf32>, vector<4x16xf32>, vector<4x16xf32>, vector<4x16xf32>, vector<4x16xf32>, vector<4x16xf32>, vector<4x16xf32>, vector<4x16xf32>, vector<4x16xf32>, vector<4x16xf32>, vector<4x16xf32> -> vector<4x256xf32>
    %c0_119 = arith.constant 0 : index
    %c0_120 = arith.constant 0 : index
    %c0_121 = arith.constant 0 : index
    %383 = vector.load %arg12[%c0_119, %c0_120, %c0_121] : memref<2x4x256xf32, #tpu.memory_space<vmem>>, vector<1x4x256xf32>
    %384 = vector.shape_cast %383 : vector<1x4x256xf32> to vector<4x256xf32>
    %385 = vector.shape_cast %382 : vector<4x256xf32> to vector<1x4x256xf32>
    tpu.vector_store %arg12[%c0_119, %c0_120, %c0_121], %385 {strides = array<i32>} : memref<2x4x256xf32, #tpu.memory_space<vmem>>, vector<1x4x256xf32>,
    %386 = vector.extract_strided_slice %365 {offsets = [0, 19], sizes = [4, 16], strides = [1, 1]} : vector<4x324xf32> to vector<4x16xf32>
    %387 = vector.extract_strided_slice %365 {offsets = [0, 37], sizes = [4, 16], strides = [1, 1]} : vector<4x324xf32> to vector<4x16xf32>
    %388 = vector.extract_strided_slice %365 {offsets = [0, 55], sizes = [4, 16], strides = [1, 1]} : vector<4x324xf32> to vector<4x16xf32>
    %389 = vector.extract_strided_slice %365 {offsets = [0, 73], sizes = [4, 16], strides = [1, 1]} : vector<4x324xf32> to vector<4x16xf32>
    %390 = vector.extract_strided_slice %365 {offsets = [0, 91], sizes = [4, 16], strides = [1, 1]} : vector<4x324xf32> to vector<4x16xf32>
    %391 = vector.extract_strided_slice %365 {offsets = [0, 109], sizes = [4, 16], strides = [1, 1]} : vector<4x324xf32> to vector<4x16xf32>
    %392 = vector.extract_strided_slice %365 {offsets = [0, 127], sizes = [4, 16], strides = [1, 1]} : vector<4x324xf32> to vector<4x16xf32>
    %393 = vector.extract_strided_slice %365 {offsets = [0, 145], sizes = [4, 16], strides = [1, 1]} : vector<4x324xf32> to vector<4x16xf32>
    %394 = vector.extract_strided_slice %365 {offsets = [0, 163], sizes = [4, 16], strides = [1, 1]} : vector<4x324xf32> to vector<4x16xf32>
    %395 = vector.extract_strided_slice %365 {offsets = [0, 181], sizes = [4, 16], strides = [1, 1]} : vector<4x324xf32> to vector<4x16xf32>
    %396 = vector.extract_strided_slice %365 {offsets = [0, 199], sizes = [4, 16], strides = [1, 1]} : vector<4x324xf32> to vector<4x16xf32>
    %397 = vector.extract_strided_slice %365 {offsets = [0, 217], sizes = [4, 16], strides = [1, 1]} : vector<4x324xf32> to vector<4x16xf32>
    %398 = vector.extract_strided_slice %365 {offsets = [0, 235], sizes = [4, 16], strides = [1, 1]} : vector<4x324xf32> to vector<4x16xf32>
    %399 = vector.extract_strided_slice %365 {offsets = [0, 253], sizes = [4, 16], strides = [1, 1]} : vector<4x324xf32> to vector<4x16xf32>
    %400 = vector.extract_strided_slice %365 {offsets = [0, 271], sizes = [4, 16], strides = [1, 1]} : vector<4x324xf32> to vector<4x16xf32>
    %401 = vector.extract_strided_slice %365 {offsets = [0, 289], sizes = [4, 16], strides = [1, 1]} : vector<4x324xf32> to vector<4x16xf32>
    %402 = tpu.concatenate %386, %387, %388, %389, %390, %391, %392, %393, %394, %395, %396, %397, %398, %399, %400, %401 in 1 : vector<4x16xf32>, vector<4x16xf32>, vector<4x16xf32>, vector<4x16xf32>, vector<4x16xf32>, vector<4x16xf32>, vector<4x16xf32>, vector<4x16xf32>, vector<4x16xf32>, vector<4x16xf32>, vector<4x16xf32>, vector<4x16xf32>, vector<4x16xf32>, vector<4x16xf32>, vector<4x16xf32>, vector<4x16xf32> -> vector<4x256xf32>
    %c1 = arith.constant 1 : index
    %c0_122 = arith.constant 0 : index
    %c0_123 = arith.constant 0 : index
    %403 = vector.load %arg12[%c1, %c0_122, %c0_123] : memref<2x4x256xf32, #tpu.memory_space<vmem>>, vector<1x4x256xf32>
    %404 = vector.shape_cast %403 : vector<1x4x256xf32> to vector<4x256xf32>
    %405 = vector.shape_cast %402 : vector<4x256xf32> to vector<1x4x256xf32>
    tpu.vector_store %arg12[%c1, %c0_122, %c0_123], %405 {strides = array<i32>} : memref<2x4x256xf32, #tpu.memory_space<vmem>>, vector<1x4x256xf32>,
    return
  }
}

</mosaic_0001>

<llo_original>
// kernel: up_forward.1
$region0: #{up_forward.1}
  #allocation0 [shape = 'u32[]', space=smem, size = 0x4, offset = 0x4, fixed_abs, tag = 'smem constant byte address 0x4 - core index']
  #allocation1 [shape = 'u32[144,128]{1,0:T(1,128)}', space=vmem, size = 0x12000, scoped, tag = 'internal scratch']
  #allocation2 [shape = 'f32[8,512]{1,0:T(8,128)}', space=vmem, size = 0x4000, scoped, tag = 'scratch operand']
  #allocation3 [shape = 'f32[8,512]{1,0:T(8,128)}', space=vmem, size = 0x4000, scoped, tag = 'scratch operand']
  %s0 = inlined_call_operand.vmem [shape: f32[64,8], index: 0, kind: input, shape index: {}]
  %s1 = inlined_call_operand.vmem [shape: f32[8,256], index: 1, kind: input, shape index: {}]
  %s2 = inlined_call_operand.vmem [shape: f32[8,18], index: 2, kind: input, shape index: {}]
  %s3 = inlined_call_operand.vmem [shape: f32[1,384], index: 3, kind: input, shape index: {}]
  %s4 = inlined_call_operand.vmem [shape: f32[1,324], index: 4, kind: input, shape index: {}]
  %s5 = inlined_call_operand.vmem [shape: f32[4,36], index: 5, kind: input, shape index: {}]
  %s6 = inlined_call_operand.vmem [shape: f32[4,36], index: 6, kind: input, shape index: {}]
  %s7 = inlined_call_operand.vmem [shape: f32[4,36], index: 7, kind: input, shape index: {}]
  %s8 = inlined_call_operand.vmem [shape: f32[4,1], index: 8, kind: input, shape index: {}]
  %s9 = inlined_call_operand.vmem [shape: f32[4,1], index: 9, kind: input, shape index: {}]
  %s10 = inlined_call_operand.vmem [shape: f32[4,1], index: 10, kind: input, shape index: {}]
  %s11 = inlined_call_operand.vmem [shape: f32[4,1], index: 11, kind: input, shape index: {}]
  %s12 = inlined_call_operand.vmem [shape: f32[2,4,256], index: 12, kind: output, shape index: {}]
  %s13 = sld [smem:[#allocation0]]
  $region58: #{up_forward.1} parent=0
    _
  %s15 = ssub.s32 1, %s13
  %s16 = scalar_select 0, %s15, %s13
  // Predicated region
  $region2: #{up_forward.1} parent=0 // pred_check
    _
  $region3: #{up_forward.1} parent=0 // pred_check_branch
    %18 = sbr.rel (0) target = $region5
  $region4: #{up_forward.1} parent=0 // pred_region
    _
  $region5: #{up_forward.1} parent=0 // pred_fallthru
    _
  // Predicated region
  $region6: #{up_forward.1} parent=0 // pred_check
    _
  $region7: #{up_forward.1} parent=0 // pred_check_branch
    %20 = sbr.rel (0) target = $region9
  $region8: #{up_forward.1} parent=0 // pred_region
    _
  $region9: #{up_forward.1} parent=0 // pred_fallthru
    _
  // Predicated region
  $region10: #{up_forward.1} parent=0 // pred_check
    _
  $region11: #{up_forward.1} parent=0 // pred_check_branch
    %22 = sbr.rel (0) target = $region13
  $region12: #{up_forward.1} parent=0 // pred_region
    _
  $region13: #{up_forward.1} parent=0 // pred_fallthru
    _
  // Predicated region
  $region14: #{up_forward.1} parent=0 // pred_check
    _
  $region15: #{up_forward.1} parent=0 // pred_check_branch
    %24 = sbr.rel (0) target = $region17
  $region16: #{up_forward.1} parent=0 // pred_region
    _
  $region17: #{up_forward.1} parent=0 // pred_fallthru
    _
  // Predicated region
  $region18: #{up_forward.1} parent=0 // pred_check
    _
  $region19: #{up_forward.1} parent=0 // pred_check_branch
    %26 = sbr.rel (0) target = $region21
  $region20: #{up_forward.1} parent=0 // pred_region
    _
  $region21: #{up_forward.1} parent=0 // pred_fallthru
    _
  // Predicated region
  $region22: #{up_forward.1} parent=0 // pred_check
    _
  $region23: #{up_forward.1} parent=0 // pred_check_branch
    %28 = sbr.rel (0) target = $region25
  $region24: #{up_forward.1} parent=0 // pred_region
    _
  $region25: #{up_forward.1} parent=0 // pred_fallthru
    _
  // Predicated region
  $region26: #{up_forward.1} parent=0 // pred_check
    _
  $region27: #{up_forward.1} parent=0 // pred_check_branch
    %30 = sbr.rel (0) target = $region29
  $region28: #{up_forward.1} parent=0 // pred_region
    _
  $region29: #{up_forward.1} parent=0 // pred_fallthru
    _
  // Predicated region
  $region30: #{up_forward.1} parent=0 // pred_check
    _
  $region31: #{up_forward.1} parent=0 // pred_check_branch
    %32 = sbr.rel (0) target = $region33
  $region32: #{up_forward.1} parent=0 // pred_region
    _
  $region33: #{up_forward.1} parent=0 // pred_fallthru
    _
  // Predicated region
  $region34: #{up_forward.1} parent=0 // pred_check
    _
  $region35: #{up_forward.1} parent=0 // pred_check_branch
    %34 = sbr.rel (0) target = $region37
  $region36: #{up_forward.1} parent=0 // pred_region
    _
  $region37: #{up_forward.1} parent=0 // pred_fallthru
    _
  // Predicated region
  $region38: #{up_forward.1} parent=0 // pred_check
    _
  $region39: #{up_forward.1} parent=0 // pred_check_branch
    %36 = sbr.rel (0) target = $region41
  $region40: #{up_forward.1} parent=0 // pred_region
    _
  $region41: #{up_forward.1} parent=0 // pred_fallthru
    _
  // Predicated region
  $region42: #{up_forward.1} parent=0 // pred_check
    _
  $region43: #{up_forward.1} parent=0 // pred_check_branch
    %38 = sbr.rel (0) target = $region45
  $region44: #{up_forward.1} parent=0 // pred_region
    _
  $region45: #{up_forward.1} parent=0 // pred_fallthru
    _
  // Predicated region
  $region46: #{up_forward.1} parent=0 // pred_check
    _
  $region47: #{up_forward.1} parent=0 // pred_check_branch
    %40 = sbr.rel (0) target = $region49
  $region48: #{up_forward.1} parent=0 // pred_region
    _
  $region49: #{up_forward.1} parent=0 // pred_fallthru
    _
  %41 = vst [vmem:[#allocation2] sm:$0xff] 0.0
  %42 = vst [vmem:[#allocation2 + $0x8] sm:$0xff] 0.0
  %43 = vst [vmem:[#allocation2 + $0x10] sm:$0xff] 0.0
  %44 = vst [vmem:[#allocation2 + $0x18] sm:$0xff] 0.0
  %45 = vst [vmem:[#allocation3] sm:$0xff] 0.0
  %46 = vst [vmem:[#allocation3 + $0x8] sm:$0xff] 0.0
  %47 = vst [vmem:[#allocation3 + $0x10] sm:$0xff] 0.0
  %48 = vst [vmem:[#allocation3 + $0x18] sm:$0xff] 0.0
  %v49 = vld [vmem:[%s1] sm:$0xff]
  %v50 = vld [vmem:[%s1 + $0x8] sm:$0xff]
  %52 = vrot.lane.b32.xlu0 %v49, 57
  %v53 = vpop.permute.xlu0 %52
  %vm55 = vcmask 597448
  %56 = vst.msk [vmem:[#allocation2] sm:$0xff] %vm55, %v53
  %57 = vrot.lane.b32.xlu0 %v49, 59
  %v58 = vpop.permute.xlu0 %57
  %vm60 = vcmask 745048
  %61 = vst.msk [vmem:[#allocation2] sm:$0xff] %vm60, %v58
  %62 = vrot.lane.b32.xlu0 %v49, 61
  %v63 = vpop.permute.xlu0 %62
  %vm65 = vcmask 892648
  %66 = vst.msk [vmem:[#allocation2] sm:$0xff] %vm65, %v63
  %67 = vrot.lane.b32.xlu0 %v49, 63
  %v68 = vpop.permute.xlu0 %67
  %vm70 = vcmask 1040248
  %71 = vst.msk [vmem:[#allocation2] sm:$0xff] %vm70, %v68
  %72 = vrot.lane.b32.xlu0 %v49, 65
  %v73 = vpop.permute.xlu0 %72
  %vm75 = vcmask 138248
  %76 = vst.msk [vmem:[#allocation2 + $0x8] sm:$0xff] %vm75, %v73
  %77 = vrot.lane.b32.xlu0 %v49, 67
  %v78 = vpop.permute.xlu0 %77
  %vm80 = vcmask 285848
  %81 = vst.msk [vmem:[#allocation2 + $0x8] sm:$0xff] %vm80, %v78
  %82 = vrot.lane.b32.xlu0 %v49, 69
  %v83 = vpop.permute.xlu0 %82
  %vm85 = vcmask 433448
  %86 = vst.msk [vmem:[#allocation2 + $0x8] sm:$0xff] %vm85, %v83
  %87 = vrot.lane.b32.xlu0 %v49, 71
  %v88 = vpop.permute.xlu0 %87
  %vm90 = vcmask 581048
  %91 = vst.msk [vmem:[#allocation2 + $0x8] sm:$0xff] %vm90, %v88
  %93 = vrot.lane.b32.xlu0 %v50, 73
  %v94 = vpop.permute.xlu0 %93
  %vm96 = vcmask 728648
  %97 = vst.msk [vmem:[#allocation2 + $0x8] sm:$0xff] %vm96, %v94
  %98 = vrot.lane.b32.xlu0 %v50, 75
  %v99 = vpop.permute.xlu0 %98
  %vm101 = vcmask 876248
  %102 = vst.msk [vmem:[#allocation2 + $0x8] sm:$0xff] %vm101, %v99
  %103 = vrot.lane.b32.xlu0 %v50, 77
  %v104 = vpop.permute.xlu0 %103
  %vm106 = vcmask 1023848
  %107 = vst.msk [vmem:[#allocation2 + $0x8] sm:$0xff] %vm106, %v104
  %108 = vrot.lane.b32.xlu0 %v50, 79
  %v109 = vpop.permute.xlu0 %108
  %vm111 = vcmask 1048568
  %112 = vst.msk [vmem:[#allocation2 + $0x8] sm:$0xff] %vm111, %v109
  %vm113 = vcmask 121856
  %114 = vst.msk [vmem:[#allocation2 + $0x10] sm:$0xff] %vm113, %v109
  %115 = vrot.lane.b32.xlu0 %v50, 81
  %v116 = vpop.permute.xlu0 %115
  %vm118 = vcmask 269448
  %119 = vst.msk [vmem:[#allocation2 + $0x10] sm:$0xff] %vm118, %v116
  %120 = vrot.lane.b32.xlu0 %v50, 83
  %v121 = vpop.permute.xlu0 %120
  %vm123 = vcmask 417048
  %124 = vst.msk [vmem:[#allocation2 + $0x10] sm:$0xff] %vm123, %v121
  %125 = vrot.lane.b32.xlu0 %v50, 85
  %v126 = vpop.permute.xlu0 %125
  %vm128 = vcmask 564648
  %129 = vst.msk [vmem:[#allocation2 + $0x10] sm:$0xff] %vm128, %v126
  %130 = vrot.lane.b32.xlu0 %v50, 87
  %v131 = vpop.permute.xlu0 %130
  %vm133 = vcmask 712248
  %134 = vst.msk [vmem:[#allocation2 + $0x10] sm:$0xff] %vm133, %v131
  %v135 = vld [vmem:[%s0] sm:$0xff]
  %v136 = vld [vmem:[%s0 + $0x8] sm:$0xff]
  %v137 = vld [vmem:[%s0 + $0x10] sm:$0xff]
  %v138 = vld [vmem:[%s0 + $0x18] sm:$0xff]
  %v139 = vld [vmem:[%s0 + $0x20] sm:$0xff]
  %v140 = vld [vmem:[%s0 + $0x28] sm:$0xff]
  %v141 = vld [vmem:[%s0 + $0x30] sm:$0xff]
  %v142 = vld [vmem:[%s0 + $0x38] sm:$0xff]
  %v143 = vld [vmem:[%s2] sm:$0xff]
  %vm144 = vcmask 64512
  %v146 = vsel %vm144, %v135, 0
  %v149 = vsel %vm144, %v136, 0
  %v152 = vsel %vm144, %v137, 0
  %v155 = vsel %vm144, %v138, 0
  %v158 = vsel %vm144, %v139, 0
  %v161 = vsel %vm144, %v140, 0
  %v164 = vsel %vm144, %v141, 0
  %v167 = vsel %vm144, %v142, 0
  %169 = vmatprep.subr.mxu0 0.0
  %170 = vmatpush1.msra.mxu0 %v143
  %171 = vmatprep.subr.mxu0 0.0
  %172 = vmatpush1.msra.mxu0 0.0
  %173 = vmatprep.subr.mxu0 0.0
  %174 = vmatpush1.msra.mxu0 0.0
  %175 = vmatprep.subr.mxu0 0.0
  %176 = vmatpush1.msra.mxu0 0.0
  %177 = vmatprep.subr.mxu0 0.0
  %178 = vmatpush1.msra.mxu0 0.0
  %179 = vmatprep.subr.mxu0 0.0
  %180 = vmatpush1.msra.mxu0 0.0
  %181 = vmatprep.subr.mxu0 0.0
  %182 = vmatpush1.msra.mxu0 0.0
  %183 = vmatprep.subr.mxu0 0.0
  %184 = vmatpush1.msra.mxu0 0.0
  %185 = vmatprep.subr.mxu0 0.0
  %186 = vmatpush1.msra.mxu0 0.0
  %187 = vmatprep.subr.mxu0 0.0
  %188 = vmatpush1.msra.mxu0 0.0
  %189 = vmatprep.subr.mxu0 0.0
  %190 = vmatpush1.msra.mxu0 0.0
  %191 = vmatprep.subr.mxu0 0.0
  %192 = vmatpush1.msra.mxu0 0.0
  %193 = vmatprep.subr.mxu0 0.0
  %194 = vmatpush1.msra.mxu0 0.0
  %195 = vmatprep.subr.mxu0 0.0
  %196 = vmatpush1.msra.mxu0 0.0
  %197 = vmatprep.subr.mxu0 0.0
  %198 = vmatpush1.msra.mxu0 0.0
  %199 = vmatprep.subr.mxu0 0.0
  %200 = vmatpush1.msra.mxu0 0.0
  %201 = vmatprep.subr.mxu0 0.0
  %202 = vmatpush1.msra.mxu0 0.0
  %203 = vmatprep.subr.mxu0 0.0
  %204 = vmatpush1.msra.mxu0 0.0
  %205 = vmatprep.subr.mxu0 0.0
  %206 = vmatpush1.msra.mxu0 0.0
  %207 = vmatprep.subr.mxu0 0.0
  %208 = vmatpush1.msra.mxu0 0.0
  %209 = vmatprep.subr.mxu0 0.0
  %210 = vmatpush1.msra.mxu0 0.0
  %211 = vmatprep.subr.mxu0 0.0
  %212 = vmatpush1.msra.mxu0 0.0
  %213 = vmatprep.subr.mxu0 0.0
  %214 = vmatpush1.msra.mxu0 0.0
  %215 = vmatprep.subr.mxu0 0.0
  %216 = vmatpush1.msra.mxu0 0.0
  %217 = vmatprep.subr.mxu0 0.0
  %218 = vmatpush1.msra.mxu0 0.0
  %219 = vmatprep.subr.mxu0 0.0
  %220 = vmatpush1.msra.mxu0 0.0
  %221 = vmatprep.subr.mxu0 0.0
  %222 = vmatpush1.msra.mxu0 0.0
  %223 = vmatprep.subr.mxu0 0.0
  %224 = vmatpush1.msra.mxu0 0.0
  %225 = vmatprep.subr.mxu0 0.0
  %226 = vmatpush1.msra.mxu0 0.0
  %227 = vmatprep.subr.mxu0 0.0
  %228 = vmatpush1.msra.mxu0 0.0
  %229 = vmatprep.subr.mxu0 0.0
  %230 = vmatpush1.msra.mxu0 0.0
  %231 = vmatprep.subr.mxu0 0.0
  %232 = vmatpush1.msra.mxu0 0.0
  %233 = vmatprep.mubr.f32.mxu0 0.0
  %234 = vmatmul.mubr.f32.gmra.mrb[0].mxu0 %v146
  %v235 = vpop.f32.mrb[0].mxu0
  %v236 = vadd.f32 0.0, %v235
  %v237 = vpop.f32.mrb[0].mxu0
  %238 = vmatprep.mubr.f32.mxu0 0.0
  %239 = vmatmul.mubr.f32.gmra.mrb[0].mxu0 %v149
  %v240 = vpop.f32.mrb[0].mxu0
  %v241 = vadd.f32 0.0, %v240
  %v242 = vpop.f32.mrb[0].mxu0
  %243 = vmatprep.mubr.f32.mxu0 0.0
  %244 = vmatmul.mubr.f32.gmra.mrb[0].mxu0 %v152
  %v245 = vpop.f32.mrb[0].mxu0
  %v246 = vadd.f32 0.0, %v245
  %v247 = vpop.f32.mrb[0].mxu0
  %248 = vmatprep.mubr.f32.mxu0 0.0
  %249 = vmatmul.mubr.f32.gmra.mrb[0].mxu0 %v155
  %v250 = vpop.f32.mrb[0].mxu0
  %v251 = vadd.f32 0.0, %v250
  %v252 = vpop.f32.mrb[0].mxu0
  %253 = vmatprep.mubr.f32.mxu0 0.0
  %254 = vmatmul.mubr.f32.gmra.mrb[0].mxu0 %v158
  %v255 = vpop.f32.mrb[0].mxu0
  %v256 = vadd.f32 0.0, %v255
  %v257 = vpop.f32.mrb[0].mxu0
  %258 = vmatprep.mubr.f32.mxu0 0.0
  %259 = vmatmul.mubr.f32.gmra.mrb[0].mxu0 %v161
  %v260 = vpop.f32.mrb[0].mxu0
  %v261 = vadd.f32 0.0, %v260
  %v262 = vpop.f32.mrb[0].mxu0
  %263 = vmatprep.mubr.f32.mxu0 0.0
  %264 = vmatmul.mubr.f32.gmra.mrb[0].mxu0 %v164
  %v265 = vpop.f32.mrb[0].mxu0
  %v266 = vadd.f32 0.0, %v265
  %v267 = vpop.f32.mrb[0].mxu0
  %268 = vmatprep.mubr.f32.mxu0 0.0
  %269 = vmatmul.mubr.f32.gmra.mrb[0].mxu0 %v167
  %v270 = vpop.f32.mrb[0].mxu0
  %v271 = vadd.f32 0.0, %v270
  %v272 = vpop.f32.mrb[0].mxu0
  %273 = vdwg.mxu0
  %v282 = vrot.slane %v241, 7
  %vm283 = vcmask 1041409
  %v284 = vsel %vm283, %v282, %v236
  %v285 = vrot.slane %v246, 6
  %vm286 = vcmask 1042434
  %v287 = vsel %vm286, %v285, %v284
  %v288 = vrot.slane %v251, 5
  %vm289 = vcmask 1043459
  %v290 = vsel %vm289, %v288, %v287
  %v291 = vrot.slane %v256, 4
  %vm292 = vcmask 1044484
  %v293 = vsel %vm292, %v291, %v290
  %v294 = vrot.slane %v261, 3
  %vm295 = vcmask 1045509
  %v296 = vsel %vm295, %v294, %v293
  %v297 = vrot.slane %v266, 2
  %vm298 = vcmask 1046534
  %v299 = vsel %vm298, %v297, %v296
  %v300 = vrot.slane %v271, 1
  %vm301 = vcmask 1047559
  %v302 = vsel %vm301, %v300, %v299
  %303 = vrot.lane.b32.xlu0 %v302, 56
  %v304 = vpop.permute.xlu0 %303
  %vm306 = vcmask 605632
  %307 = vst.msk [vmem:[#allocation3] sm:$0xff] %vm306, %v304
  %v308 = vmul.f32 %v236, 0.53333336
  %v309 = vmul.f32 %v241, 0.53333336
  %v310 = vmul.f32 %v246, 0.53333336
  %v311 = vmul.f32 %v251, 0.53333336
  %v312 = vmul.f32 %v256, 0.53333336
  %v313 = vmul.f32 %v261, 0.53333336
  %v314 = vmul.f32 %v266, 0.53333336
  %v315 = vmul.f32 %v271, 0.53333336
  %v316 = vmul.f32 %v236, 0.46666667
  %v317 = vmul.f32 %v241, 0.46666667
  %v318 = vmul.f32 %v246, 0.46666667
  %v319 = vmul.f32 %v251, 0.46666667
  %v320 = vmul.f32 %v256, 0.46666667
  %v321 = vmul.f32 %v261, 0.46666667
  %v322 = vmul.f32 %v266, 0.46666667
  %v323 = vmul.f32 %v271, 0.46666667
  %v332 = vrot.slane %v316, 1
  %v333 = vrot.slane %v317, 1
  %v334 = vrot.slane %v318, 1
  %v335 = vrot.slane %v319, 1
  %v336 = vrot.slane %v320, 1
  %v337 = vrot.slane %v321, 1
  %v338 = vrot.slane %v322, 1
  %v339 = vrot.slane %v323, 1
  %v348 = vadd.f32 %v308, %v332
  %v349 = vadd.f32 %v309, %v333
  %v350 = vadd.f32 %v310, %v334
  %v351 = vadd.f32 %v311, %v335
  %v352 = vadd.f32 %v312, %v336
  %v353 = vadd.f32 %v313, %v337
  %v354 = vadd.f32 %v314, %v338
  %v355 = vadd.f32 %v315, %v339
  %v364 = vrot.slane %v349, 7
  %v365 = vsel %vm283, %v364, %v348
  %v366 = vrot.slane %v350, 6
  %v367 = vsel %vm286, %v366, %v365
  %v368 = vrot.slane %v351, 5
  %v369 = vsel %vm289, %v368, %v367
  %v370 = vrot.slane %v352, 4
  %v371 = vsel %vm292, %v370, %v369
  %v372 = vrot.slane %v353, 3
  %v373 = vsel %vm295, %v372, %v371
  %v374 = vrot.slane %v354, 2
  %v375 = vsel %vm298, %v374, %v373
  %v376 = vrot.slane %v355, 1
  %v377 = vsel %vm301, %v376, %v375
  %378 = vrot.lane.b32.xlu0 %v377, 74
  %v379 = vpop.permute.xlu0 %378
  %vm381 = vcmask 753232
  %382 = vst.msk [vmem:[#allocation3] sm:$0xff] %vm381, %v379
  %v383 = vmul.f32 %v236, 0.06666667
  %v384 = vmul.f32 %v241, 0.06666667
  %v385 = vmul.f32 %v246, 0.06666667
  %v386 = vmul.f32 %v251, 0.06666667
  %v387 = vmul.f32 %v256, 0.06666667
  %v388 = vmul.f32 %v261, 0.06666667
  %v389 = vmul.f32 %v266, 0.06666667
  %v390 = vmul.f32 %v271, 0.06666667
  %v391 = vmul.f32 %v236, 0.93333334
  %v392 = vmul.f32 %v241, 0.93333334
  %v393 = vmul.f32 %v246, 0.93333334
  %v394 = vmul.f32 %v251, 0.93333334
  %v395 = vmul.f32 %v256, 0.93333334
  %v396 = vmul.f32 %v261, 0.93333334
  %v397 = vmul.f32 %v266, 0.93333334
  %v398 = vmul.f32 %v271, 0.93333334
  %v407 = vrot.slane %v391, 1
  %v408 = vrot.slane %v392, 1
  %v409 = vrot.slane %v393, 1
  %v410 = vrot.slane %v394, 1
  %v411 = vrot.slane %v395, 1
  %v412 = vrot.slane %v396, 1
  %v413 = vrot.slane %v397, 1
  %v414 = vrot.slane %v398, 1
  %v423 = vadd.f32 %v383, %v407
  %v424 = vadd.f32 %v384, %v408
  %v425 = vadd.f32 %v385, %v409
  %v426 = vadd.f32 %v386, %v410
  %v427 = vadd.f32 %v387, %v411
  %v428 = vadd.f32 %v388, %v412
  %v429 = vadd.f32 %v389, %v413
  %v430 = vadd.f32 %v390, %v414
  %v439 = vrot.slane %v424, 7
  %v440 = vsel %vm283, %v439, %v423
  %v441 = vrot.slane %v425, 6
  %v442 = vsel %vm286, %v441, %v440
  %v443 = vrot.slane %v426, 5
  %v444 = vsel %vm289, %v443, %v442
  %v445 = vrot.slane %v427, 4
  %v446 = vsel %vm292, %v445, %v444
  %v447 = vrot.slane %v428, 3
  %v448 = vsel %vm295, %v447, %v446
  %v449 = vrot.slane %v429, 2
  %v450 = vsel %vm298, %v449, %v448
  %v451 = vrot.slane %v430, 1
  %v452 = vsel %vm301, %v451, %v450
  %453 = vrot.lane.b32.xlu0 %v452, 92
  %v454 = vpop.permute.xlu0 %453
  %vm456 = vcmask 900832
  %457 = vst.msk [vmem:[#allocation3] sm:$0xff] %vm456, %v454
  %v458 = vmul.f32 %v236, 0.6
  %v459 = vmul.f32 %v241, 0.6
  %v460 = vmul.f32 %v246, 0.6
  %v461 = vmul.f32 %v251, 0.6
  %v462 = vmul.f32 %v256, 0.6
  %v463 = vmul.f32 %v261, 0.6
  %v464 = vmul.f32 %v266, 0.6
  %v465 = vmul.f32 %v271, 0.6
  %v466 = vmul.f32 %v236, 0.4
  %v467 = vmul.f32 %v241, 0.4
  %v468 = vmul.f32 %v246, 0.4
  %v469 = vmul.f32 %v251, 0.4
  %v470 = vmul.f32 %v256, 0.4
  %v471 = vmul.f32 %v261, 0.4
  %v472 = vmul.f32 %v266, 0.4
  %v473 = vmul.f32 %v271, 0.4
  %v482 = vrot.slane %v466, 1
  %v483 = vrot.slane %v467, 1
  %v484 = vrot.slane %v468, 1
  %v485 = vrot.slane %v469, 1
  %v486 = vrot.slane %v470, 1
  %v487 = vrot.slane %v471, 1
  %v488 = vrot.slane %v472, 1
  %v489 = vrot.slane %v473, 1
  %v498 = vadd.f32 %v458, %v482
  %v499 = vadd.f32 %v459, %v483
  %v500 = vadd.f32 %v460, %v484
  %v501 = vadd.f32 %v461, %v485
  %v502 = vadd.f32 %v462, %v486
  %v503 = vadd.f32 %v463, %v487
  %v504 = vadd.f32 %v464, %v488
  %v505 = vadd.f32 %v465, %v489
  %v514 = vrot.slane %v498, 1
  %v515 = vsel %vm283, %v499, %v514
  %v516 = vrot.slane %v500, 7
  %v517 = vsel %vm286, %v516, %v515
  %v518 = vrot.slane %v501, 6
  %v519 = vsel %vm289, %v518, %v517
  %v520 = vrot.slane %v502, 5
  %v521 = vsel %vm292, %v520, %v519
  %v522 = vrot.slane %v503, 4
  %v523 = vsel %vm295, %v522, %v521
  %v524 = vrot.slane %v504, 3
  %v525 = vsel %vm298, %v524, %v523
  %v526 = vrot.slane %v505, 2
  %v527 = vsel %vm301, %v526, %v525
  %528 = vrot.lane.b32.xlu0 %v527, 110
  %v529 = vpop.permute.xlu0 %528
  %vm531 = vcmask 1048432
  %532 = vst.msk [vmem:[#allocation3] sm:$0xff] %vm531, %v529
  %v533 = vmul.f32 %v236, 0.13333334
  %v534 = vmul.f32 %v241, 0.13333334
  %v535 = vmul.f32 %v246, 0.13333334
  %v536 = vmul.f32 %v251, 0.13333334
  %v537 = vmul.f32 %v256, 0.13333334
  %v538 = vmul.f32 %v261, 0.13333334
  %v539 = vmul.f32 %v266, 0.13333334
  %v540 = vmul.f32 %v271, 0.13333334
  %v541 = vmul.f32 %v236, 0.8666667
  %v542 = vmul.f32 %v241, 0.8666667
  %v543 = vmul.f32 %v246, 0.8666667
  %v544 = vmul.f32 %v251, 0.8666667
  %v545 = vmul.f32 %v256, 0.8666667
  %v546 = vmul.f32 %v261, 0.8666667
  %v547 = vmul.f32 %v266, 0.8666667
  %v548 = vmul.f32 %v271, 0.8666667
  %v557 = vrot.slane %v541, 1
  %v558 = vrot.slane %v542, 1
  %v559 = vrot.slane %v543, 1
  %v560 = vrot.slane %v544, 1
  %v561 = vrot.slane %v545, 1
  %v562 = vrot.slane %v546, 1
  %v563 = vrot.slane %v547, 1
  %v564 = vrot.slane %v548, 1
  %v573 = vadd.f32 %v533, %v557
  %v574 = vadd.f32 %v534, %v558
  %v575 = vadd.f32 %v535, %v559
  %v576 = vadd.f32 %v536, %v560
  %v577 = vadd.f32 %v537, %v561
  %v578 = vadd.f32 %v538, %v562
  %v579 = vadd.f32 %v539, %v563
  %v580 = vadd.f32 %v540, %v564
  %v589 = vrot.slane %v573, 1
  %v590 = vsel %vm283, %v574, %v589
  %v591 = vrot.slane %v575, 7
  %v592 = vsel %vm286, %v591, %v590
  %v593 = vrot.slane %v576, 6
  %v594 = vsel %vm289, %v593, %v592
  %v595 = vrot.slane %v577, 5
  %v596 = vsel %vm292, %v595, %v594
  %v597 = vrot.slane %v578, 4
  %v598 = vsel %vm295, %v597, %v596
  %v599 = vrot.slane %v579, 3
  %v600 = vsel %vm298, %v599, %v598
  %v601 = vrot.slane %v580, 2
  %v602 = vsel %vm301, %v601, %v600
  %vm604 = vcmask 146432
  %605 = vst.msk [vmem:[#allocation3 + $0x8] sm:$0xff] %vm604, %v602
  %v606 = vmul.f32 %v236, 0.6666667
  %v607 = vmul.f32 %v241, 0.6666667
  %v608 = vmul.f32 %v246, 0.6666667
  %v609 = vmul.f32 %v251, 0.6666667
  %v610 = vmul.f32 %v256, 0.6666667
  %v611 = vmul.f32 %v261, 0.6666667
  %v612 = vmul.f32 %v266, 0.6666667
  %v613 = vmul.f32 %v271, 0.6666667
  %v614 = vmul.f32 %v236, 0.33333334
  %v615 = vmul.f32 %v241, 0.33333334
  %v616 = vmul.f32 %v246, 0.33333334
  %v617 = vmul.f32 %v251, 0.33333334
  %v618 = vmul.f32 %v256, 0.33333334
  %v619 = vmul.f32 %v261, 0.33333334
  %v620 = vmul.f32 %v266, 0.33333334
  %v621 = vmul.f32 %v271, 0.33333334
  %v630 = vrot.slane %v614, 1
  %v631 = vrot.slane %v615, 1
  %v632 = vrot.slane %v616, 1
  %v633 = vrot.slane %v617, 1
  %v634 = vrot.slane %v618, 1
  %v635 = vrot.slane %v619, 1
  %v636 = vrot.slane %v620, 1
  %v637 = vrot.slane %v621, 1
  %v646 = vadd.f32 %v606, %v630
  %v647 = vadd.f32 %v607, %v631
  %v648 = vadd.f32 %v608, %v632
  %v649 = vadd.f32 %v609, %v633
  %v650 = vadd.f32 %v610, %v634
  %v651 = vadd.f32 %v611, %v635
  %v652 = vadd.f32 %v612, %v636
  %v653 = vadd.f32 %v613, %v637
  %v662 = vrot.slane %v646, 2
  %v663 = vrot.slane %v647, 1
  %v664 = vsel %vm283, %v663, %v662
  %v665 = vsel %vm286, %v648, %v664
  %v666 = vrot.slane %v649, 7
  %v667 = vsel %vm289, %v666, %v665
  %v668 = vrot.slane %v650, 6
  %v669 = vsel %vm292, %v668, %v667
  %v670 = vrot.slane %v651, 5
  %v671 = vsel %vm295, %v670, %v669
  %v672 = vrot.slane %v652, 4
  %v673 = vsel %vm298, %v672, %v671
  %v674 = vrot.slane %v653, 3
  %v675 = vsel %vm301, %v674, %v673
  %676 = vrot.lane.b32.xlu0 %v675, 18
  %v677 = vpop.permute.xlu0 %676
  %vm679 = vcmask 294032
  %680 = vst.msk [vmem:[#allocation3 + $0x8] sm:$0xff] %vm679, %v677
  %v681 = vmul.f32 %v236, 0.2
  %v682 = vmul.f32 %v241, 0.2
  %v683 = vmul.f32 %v246, 0.2
  %v684 = vmul.f32 %v251, 0.2
  %v685 = vmul.f32 %v256, 0.2
  %v686 = vmul.f32 %v261, 0.2
  %v687 = vmul.f32 %v266, 0.2
  %v688 = vmul.f32 %v271, 0.2
  %v689 = vmul.f32 %v236, 0.8
  %v690 = vmul.f32 %v241, 0.8
  %v691 = vmul.f32 %v246, 0.8
  %v692 = vmul.f32 %v251, 0.8
  %v693 = vmul.f32 %v256, 0.8
  %v694 = vmul.f32 %v261, 0.8
  %v695 = vmul.f32 %v266, 0.8
  %v696 = vmul.f32 %v271, 0.8
  %v705 = vrot.slane %v689, 1
  %v706 = vrot.slane %v690, 1
  %v707 = vrot.slane %v691, 1
  %v708 = vrot.slane %v692, 1
  %v709 = vrot.slane %v693, 1
  %v710 = vrot.slane %v694, 1
  %v711 = vrot.slane %v695, 1
  %v712 = vrot.slane %v696, 1
  %v721 = vadd.f32 %v681, %v705
  %v722 = vadd.f32 %v682, %v706
  %v723 = vadd.f32 %v683, %v707
  %v724 = vadd.f32 %v684, %v708
  %v725 = vadd.f32 %v685, %v709
  %v726 = vadd.f32 %v686, %v710
  %v727 = vadd.f32 %v687, %v711
  %v728 = vadd.f32 %v688, %v712
  %v737 = vrot.slane %v721, 2
  %v738 = vrot.slane %v722, 1
  %v739 = vsel %vm283, %v738, %v737
  %v740 = vsel %vm286, %v723, %v739
  %v741 = vrot.slane %v724, 7
  %v742 = vsel %vm289, %v741, %v740
  %v743 = vrot.slane %v725, 6
  %v744 = vsel %vm292, %v743, %v742
  %v745 = vrot.slane %v726, 5
  %v746 = vsel %vm295, %v745, %v744
  %v747 = vrot.slane %v727, 4
  %v748 = vsel %vm298, %v747, %v746
  %v749 = vrot.slane %v728, 3
  %v750 = vsel %vm301, %v749, %v748
  %751 = vrot.lane.b32.xlu0 %v750, 36
  %v752 = vpop.permute.xlu0 %751
  %vm754 = vcmask 441632
  %755 = vst.msk [vmem:[#allocation3 + $0x8] sm:$0xff] %vm754, %v752
  %v756 = vmul.f32 %v236, 0.73333335
  %v757 = vmul.f32 %v241, 0.73333335
  %v758 = vmul.f32 %v246, 0.73333335
  %v759 = vmul.f32 %v251, 0.73333335
  %v760 = vmul.f32 %v256, 0.73333335
  %v761 = vmul.f32 %v261, 0.73333335
  %v762 = vmul.f32 %v266, 0.73333335
  %v763 = vmul.f32 %v271, 0.73333335
  %v764 = vmul.f32 %v236, 0.26666668
  %v765 = vmul.f32 %v241, 0.26666668
  %v766 = vmul.f32 %v246, 0.26666668
  %v767 = vmul.f32 %v251, 0.26666668
  %v768 = vmul.f32 %v256, 0.26666668
  %v769 = vmul.f32 %v261, 0.26666668
  %v770 = vmul.f32 %v266, 0.26666668
  %v771 = vmul.f32 %v271, 0.26666668
  %v780 = vrot.slane %v764, 1
  %v781 = vrot.slane %v765, 1
  %v782 = vrot.slane %v766, 1
  %v783 = vrot.slane %v767, 1
  %v784 = vrot.slane %v768, 1
  %v785 = vrot.slane %v769, 1
  %v786 = vrot.slane %v770, 1
  %v787 = vrot.slane %v771, 1
  %v796 = vadd.f32 %v756, %v780
  %v797 = vadd.f32 %v757, %v781
  %v798 = vadd.f32 %v758, %v782
  %v799 = vadd.f32 %v759, %v783
  %v800 = vadd.f32 %v760, %v784
  %v801 = vadd.f32 %v761, %v785
  %v802 = vadd.f32 %v762, %v786
  %v803 = vadd.f32 %v763, %v787
  %v812 = vrot.slane %v796, 3
  %v813 = vrot.slane %v797, 2
  %v814 = vsel %vm283, %v813, %v812
  %v815 = vrot.slane %v798, 1
  %v816 = vsel %vm286, %v815, %v814
  %v817 = vsel %vm289, %v799, %v816
  %v818 = vrot.slane %v800, 7
  %v819 = vsel %vm292, %v818, %v817
  %v820 = vrot.slane %v801, 6
  %v821 = vsel %vm295, %v820, %v819
  %v822 = vrot.slane %v802, 5
  %v823 = vsel %vm298, %v822, %v821
  %v824 = vrot.slane %v803, 4
  %v825 = vsel %vm301, %v824, %v823
  %826 = vrot.lane.b32.xlu0 %v825, 54
  %v827 = vpop.permute.xlu0 %826
  %vm829 = vcmask 589232
  %830 = vst.msk [vmem:[#allocation3 + $0x8] sm:$0xff] %vm829, %v827
  %v839 = vrot.slane %v756, 1
  %v840 = vrot.slane %v757, 1
  %v841 = vrot.slane %v758, 1
  %v842 = vrot.slane %v759, 1
  %v843 = vrot.slane %v760, 1
  %v844 = vrot.slane %v761, 1
  %v845 = vrot.slane %v762, 1
  %v846 = vrot.slane %v763, 1
  %v855 = vadd.f32 %v764, %v839
  %v856 = vadd.f32 %v765, %v840
  %v857 = vadd.f32 %v766, %v841
  %v858 = vadd.f32 %v767, %v842
  %v859 = vadd.f32 %v768, %v843
  %v860 = vadd.f32 %v769, %v844
  %v861 = vadd.f32 %v770, %v845
  %v862 = vadd.f32 %v771, %v846
  %v871 = vrot.slane %v855, 3
  %v872 = vrot.slane %v856, 2
  %v873 = vsel %vm283, %v872, %v871
  %v874 = vrot.slane %v857, 1
  %v875 = vsel %vm286, %v874, %v873
  %v876 = vsel %vm289, %v858, %v875
  %v877 = vrot.slane %v859, 7
  %v878 = vsel %vm292, %v877, %v876
  %v879 = vrot.slane %v860, 6
  %v880 = vsel %vm295, %v879, %v878
  %v881 = vrot.slane %v861, 5
  %v882 = vsel %vm298, %v881, %v880
  %v883 = vrot.slane %v862, 4
  %v884 = vsel %vm301, %v883, %v882
  %885 = vrot.lane.b32.xlu0 %v884, 72
  %v886 = vpop.permute.xlu0 %885
  %vm888 = vcmask 736832
  %889 = vst.msk [vmem:[#allocation3 + $0x8] sm:$0xff] %vm888, %v886
  %v898 = vrot.slane %v681, 1
  %v899 = vrot.slane %v682, 1
  %v900 = vrot.slane %v683, 1
  %v901 = vrot.slane %v684, 1
  %v902 = vrot.slane %v685, 1
  %v903 = vrot.slane %v686, 1
  %v904 = vrot.slane %v687, 1
  %v905 = vrot.slane %v688, 1
  %v914 = vadd.f32 %v689, %v898
  %v915 = vadd.f32 %v690, %v899
  %v916 = vadd.f32 %v691, %v900
  %v917 = vadd.f32 %v692, %v901
  %v918 = vadd.f32 %v693, %v902
  %v919 = vadd.f32 %v694, %v903
  %v920 = vadd.f32 %v695, %v904
  %v921 = vadd.f32 %v696, %v905
  %v930 = vrot.slane %v914, 4
  %v931 = vrot.slane %v915, 3
  %v932 = vsel %vm283, %v931, %v930
  %v933 = vrot.slane %v916, 2
  %v934 = vsel %vm286, %v933, %v932
  %v935 = vrot.slane %v917, 1
  %v936 = vsel %vm289, %v935, %v934
  %v937 = vsel %vm292, %v918, %v936
  %v938 = vrot.slane %v919, 7
  %v939 = vsel %vm295, %v938, %v937
  %v940 = vrot.slane %v920, 6
  %v941 = vsel %vm298, %v940, %v939
  %v942 = vrot.slane %v921, 5
  %v943 = vsel %vm301, %v942, %v941
  %944 = vrot.lane.b32.xlu0 %v943, 90
  %v945 = vpop.permute.xlu0 %944
  %vm947 = vcmask 884432
  %948 = vst.msk [vmem:[#allocation3 + $0x8] sm:$0xff] %vm947, %v945
  %v957 = vrot.slane %v606, 1
  %v958 = vrot.slane %v607, 1
  %v959 = vrot.slane %v608, 1
  %v960 = vrot.slane %v609, 1
  %v961 = vrot.slane %v610, 1
  %v962 = vrot.slane %v611, 1
  %v963 = vrot.slane %v612, 1
  %v964 = vrot.slane %v613, 1
  %v973 = vadd.f32 %v614, %v957
  %v974 = vadd.f32 %v615, %v958
  %v975 = vadd.f32 %v616, %v959
  %v976 = vadd.f32 %v617, %v960
  %v977 = vadd.f32 %v618, %v961
  %v978 = vadd.f32 %v619, %v962
  %v979 = vadd.f32 %v620, %v963
  %v980 = vadd.f32 %v621, %v964
  %v989 = vrot.slane %v973, 4
  %v990 = vrot.slane %v974, 3
  %v991 = vsel %vm283, %v990, %v989
  %v992 = vrot.slane %v975, 2
  %v993 = vsel %vm286, %v992, %v991
  %v994 = vrot.slane %v976, 1
  %v995 = vsel %vm289, %v994, %v993
  %v996 = vsel %vm292, %v977, %v995
  %v997 = vrot.slane %v978, 7
  %v998 = vsel %vm295, %v997, %v996
  %v999 = vrot.slane %v979, 6
  %v1000 = vsel %vm298, %v999, %v998
  %v1001 = vrot.slane %v980, 5
  %v1002 = vsel %vm301, %v1001, %v1000
  %1003 = vrot.lane.b32.xlu0 %v1002, 108
  %v1004 = vpop.permute.xlu0 %1003
  %vm1006 = vcmask 1032032
  %1007 = vst.msk [vmem:[#allocation3 + $0x8] sm:$0xff] %vm1006, %v1004
  %v1016 = vrot.slane %v533, 1
  %v1017 = vrot.slane %v534, 1
  %v1018 = vrot.slane %v535, 1
  %v1019 = vrot.slane %v536, 1
  %v1020 = vrot.slane %v537, 1
  %v1021 = vrot.slane %v538, 1
  %v1022 = vrot.slane %v539, 1
  %v1023 = vrot.slane %v540, 1
  %v1032 = vadd.f32 %v541, %v1016
  %v1033 = vadd.f32 %v542, %v1017
  %v1034 = vadd.f32 %v543, %v1018
  %v1035 = vadd.f32 %v544, %v1019
  %v1036 = vadd.f32 %v545, %v1020
  %v1037 = vadd.f32 %v546, %v1021
  %v1038 = vadd.f32 %v547, %v1022
  %v1039 = vadd.f32 %v548, %v1023
  %v1048 = vrot.slane %v1032, 5
  %v1049 = vrot.slane %v1033, 4
  %v1050 = vsel %vm283, %v1049, %v1048
  %v1051 = vrot.slane %v1034, 3
  %v1052 = vsel %vm286, %v1051, %v1050
  %v1053 = vrot.slane %v1035, 2
  %v1054 = vsel %vm289, %v1053, %v1052
  %v1055 = vrot.slane %v1036, 1
  %v1056 = vsel %vm292, %v1055, %v1054
  %v1057 = vsel %vm295, %v1037, %v1056
  %v1058 = vrot.slane %v1038, 7
  %v1059 = vsel %vm298, %v1058, %v1057
  %v1060 = vrot.slane %v1039, 6
  %v1061 = vsel %vm301, %v1060, %v1059
  %1062 = vrot.lane.b32.xlu0 %v1061, 126
  %v1063 = vpop.permute.xlu0 %1062
  %vm1065 = vcmask 1048560
  %1066 = vst.msk [vmem:[#allocation3 + $0x8] sm:$0xff] %vm1065, %v1063
  %vm1067 = vcmask 130048
  %1068 = vst.msk [vmem:[#allocation3 + $0x10] sm:$0xff] %vm1067, %v1063
  %v1077 = vrot.slane %v458, 1
  %v1078 = vrot.slane %v459, 1
  %v1079 = vrot.slane %v460, 1
  %v1080 = vrot.slane %v461, 1
  %v1081 = vrot.slane %v462, 1
  %v1082 = vrot.slane %v463, 1
  %v1083 = vrot.slane %v464, 1
  %v1084 = vrot.slane %v465, 1
  %v1093 = vadd.f32 %v466, %v1077
  %v1094 = vadd.f32 %v467, %v1078
  %v1095 = vadd.f32 %v468, %v1079
  %v1096 = vadd.f32 %v469, %v1080
  %v1097 = vadd.f32 %v470, %v1081
  %v1098 = vadd.f32 %v471, %v1082
  %v1099 = vadd.f32 %v472, %v1083
  %v1100 = vadd.f32 %v473, %v1084
  %v1109 = vrot.slane %v1093, 5
  %v1110 = vrot.slane %v1094, 4
  %v1111 = vsel %vm283, %v1110, %v1109
  %v1112 = vrot.slane %v1095, 3
  %v1113 = vsel %vm286, %v1112, %v1111
  %v1114 = vrot.slane %v1096, 2
  %v1115 = vsel %vm289, %v1114, %v1113
  %v1116 = vrot.slane %v1097, 1
  %v1117 = vsel %vm292, %v1116, %v1115
  %v1118 = vsel %vm295, %v1098, %v1117
  %v1119 = vrot.slane %v1099, 7
  %v1120 = vsel %vm298, %v1119, %v1118
  %v1121 = vrot.slane %v1100, 6
  %v1122 = vsel %vm301, %v1121, %v1120
  %1123 = vrot.lane.b32.xlu0 %v1122, 16
  %v1124 = vpop.permute.xlu0 %1123
  %vm1126 = vcmask 277632
  %1127 = vst.msk [vmem:[#allocation3 + $0x10] sm:$0xff] %vm1126, %v1124
  %v1136 = vrot.slane %v383, 1
  %v1137 = vrot.slane %v384, 1
  %v1138 = vrot.slane %v385, 1
  %v1139 = vrot.slane %v386, 1
  %v1140 = vrot.slane %v387, 1
  %v1141 = vrot.slane %v388, 1
  %v1142 = vrot.slane %v389, 1
  %v1143 = vrot.slane %v390, 1
  %v1152 = vadd.f32 %v391, %v1136
  %v1153 = vadd.f32 %v392, %v1137
  %v1154 = vadd.f32 %v393, %v1138
  %v1155 = vadd.f32 %v394, %v1139
  %v1156 = vadd.f32 %v395, %v1140
  %v1157 = vadd.f32 %v396, %v1141
  %v1158 = vadd.f32 %v397, %v1142
  %v1159 = vadd.f32 %v398, %v1143
  %v1168 = vrot.slane %v1152, 6
  %v1169 = vrot.slane %v1153, 5
  %v1170 = vsel %vm283, %v1169, %v1168
  %v1171 = vrot.slane %v1154, 4
  %v1172 = vsel %vm286, %v1171, %v1170
  %v1173 = vrot.slane %v1155, 3
  %v1174 = vsel %vm289, %v1173, %v1172
  %v1175 = vrot.slane %v1156, 2
  %v1176 = vsel %vm292, %v1175, %v1174
  %v1177 = vrot.slane %v1157, 1
  %v1178 = vsel %vm295, %v1177, %v1176
  %v1179 = vsel %vm298, %v1158, %v1178
  %v1180 = vrot.slane %v1159, 7
  %v1181 = vsel %vm301, %v1180, %v1179
  %1182 = vrot.lane.b32.xlu0 %v1181, 34
  %v1183 = vpop.permute.xlu0 %1182
  %vm1185 = vcmask 425232
  %1186 = vst.msk [vmem:[#allocation3 + $0x10] sm:$0xff] %vm1185, %v1183
  %v1195 = vrot.slane %v308, 1
  %v1196 = vrot.slane %v309, 1
  %v1197 = vrot.slane %v310, 1
  %v1198 = vrot.slane %v311, 1
  %v1199 = vrot.slane %v312, 1
  %v1200 = vrot.slane %v313, 1
  %v1201 = vrot.slane %v314, 1
  %v1202 = vrot.slane %v315, 1
  %v1211 = vadd.f32 %v316, %v1195
  %v1212 = vadd.f32 %v317, %v1196
  %v1213 = vadd.f32 %v318, %v1197
  %v1214 = vadd.f32 %v319, %v1198
  %v1215 = vadd.f32 %v320, %v1199
  %v1216 = vadd.f32 %v321, %v1200
  %v1217 = vadd.f32 %v322, %v1201
  %v1218 = vadd.f32 %v323, %v1202
  %v1227 = vrot.slane %v1211, 6
  %v1228 = vrot.slane %v1212, 5
  %v1229 = vsel %vm283, %v1228, %v1227
  %v1230 = vrot.slane %v1213, 4
  %v1231 = vsel %vm286, %v1230, %v1229
  %v1232 = vrot.slane %v1214, 3
  %v1233 = vsel %vm289, %v1232, %v1231
  %v1234 = vrot.slane %v1215, 2
  %v1235 = vsel %vm292, %v1234, %v1233
  %v1236 = vrot.slane %v1216, 1
  %v1237 = vsel %vm295, %v1236, %v1235
  %v1238 = vsel %vm298, %v1217, %v1237
  %v1239 = vrot.slane %v1218, 7
  %v1240 = vsel %vm301, %v1239, %v1238
  %1241 = vrot.lane.b32.xlu0 %v1240, 52
  %v1242 = vpop.permute.xlu0 %1241
  %vm1244 = vcmask 572832
  %1245 = vst.msk [vmem:[#allocation3 + $0x10] sm:$0xff] %vm1244, %v1242
  %v1246 = vrot.slane %v236, 7
  %v1247 = vrot.slane %v241, 6
  %v1248 = vsel %vm283, %v1247, %v1246
  %v1249 = vrot.slane %v246, 5
  %v1250 = vsel %vm286, %v1249, %v1248
  %v1251 = vrot.slane %v251, 4
  %v1252 = vsel %vm289, %v1251, %v1250
  %v1253 = vrot.slane %v256, 3
  %v1254 = vsel %vm292, %v1253, %v1252
  %v1255 = vrot.slane %v261, 2
  %v1256 = vsel %vm295, %v1255, %v1254
  %v1257 = vrot.slane %v266, 1
  %v1258 = vsel %vm298, %v1257, %v1256
  %v1259 = vsel %vm301, %v271, %v1258
  %1260 = vrot.lane.b32.xlu0 %v1259, 70
  %v1261 = vpop.permute.xlu0 %1260
  %vm1263 = vcmask 720432
  %1264 = vst.msk [vmem:[#allocation3 + $0x10] sm:$0xff] %vm1263, %v1261
  %v1265 = vld [vmem:[#allocation2] sm:$0xff]
  %v1266 = vld [vmem:[#allocation2 + $0x8] sm:$0xff]
  %v1267 = vld [vmem:[#allocation2 + $0x10] sm:$0xff]
  %v1268 = vld [vmem:[#allocation2 + $0x18] sm:$0xff]
  %v1269 = vld [vmem:[#allocation3] sm:$0xff]
  %v1270 = vld [vmem:[#allocation3 + $0x8] sm:$0xff]
  %v1271 = vld [vmem:[#allocation3 + $0x10] sm:$0xff]
  %v1272 = vld [vmem:[#allocation3 + $0x18] sm:$0xff]
  %v1273 = vld [vmem:[%s5] sm:$0xf]
  %v1274 = vld [vmem:[%s6] sm:$0xf]
  %v1275 = vld [vmem:[%s7] sm:$0xf]
  %v1276 = vld [vmem:[%s3] sm:$0x7]
  %v1277 = vld [vmem:[%s4] sm:$0x7]
  %v1282 = vrot.slane %v1265, 4
  %v1283 = vrot.slane %v1266, 4
  %v1284 = vrot.slane %v1267, 4
  %v1285 = vrot.slane %v1268, 4
  %1286 = vrot.lane.b32.xlu0 %v1282, 127
  %v1287 = vpop.permute.xlu0 %1286
  %1288 = vrot.lane.b32.xlu0 %v1283, 127
  %v1289 = vpop.permute.xlu0 %1288
  %1290 = vrot.lane.b32.xlu0 %v1284, 127
  %v1291 = vpop.permute.xlu0 %1290
  %1292 = vrot.lane.b32.xlu0 %v1285, 127
  %v1293 = vpop.permute.xlu0 %1292
  %vm1294 = vcmask 1039360
  %v1295 = vsel %vm1294, %v1287, %v1289
  %v1296 = vsel %vm1294, %v1289, %v1291
  %v1297 = vsel %vm1294, %v1291, %v1293
  %1301 = vrot.lane.b32.xlu0 %v1265, 126
  %v1302 = vpop.permute.xlu0 %1301
  %1303 = vrot.lane.b32.xlu0 %v1266, 126
  %v1304 = vpop.permute.xlu0 %1303
  %1305 = vrot.lane.b32.xlu0 %v1267, 126
  %v1306 = vpop.permute.xlu0 %1305
  %1307 = vrot.lane.b32.xlu0 %v1268, 126
  %v1308 = vpop.permute.xlu0 %1307
  %vm1309 = vcmask 1031168
  %v1310 = vsel %vm1309, %v1302, %v1304
  %v1311 = vsel %vm1309, %v1304, %v1306
  %v1312 = vsel %vm1309, %v1306, %v1308
  %1316 = vrot.lane.b32.xlu0 %v1282, 110
  %v1317 = vpop.permute.xlu0 %1316
  %1318 = vrot.lane.b32.xlu0 %v1283, 110
  %v1319 = vpop.permute.xlu0 %1318
  %1320 = vrot.lane.b32.xlu0 %v1284, 110
  %v1321 = vpop.permute.xlu0 %1320
  %1322 = vrot.lane.b32.xlu0 %v1285, 110
  %v1323 = vpop.permute.xlu0 %1322
  %vm1324 = vcmask 900096
  %v1325 = vsel %vm1324, %v1317, %v1319
  %v1326 = vsel %vm1324, %v1319, %v1321
  %v1327 = vsel %vm1324, %v1321, %v1323
  %1331 = vrot.lane.b32.xlu0 %v1265, 109
  %v1332 = vpop.permute.xlu0 %1331
  %1333 = vrot.lane.b32.xlu0 %v1266, 109
  %v1334 = vpop.permute.xlu0 %1333
  %1335 = vrot.lane.b32.xlu0 %v1267, 109
  %v1336 = vpop.permute.xlu0 %1335
  %1337 = vrot.lane.b32.xlu0 %v1268, 109
  %v1338 = vpop.permute.xlu0 %1337
  %vm1339 = vcmask 891904
  %v1340 = vsel %vm1339, %v1332, %v1334
  %v1341 = vsel %vm1339, %v1334, %v1336
  %v1342 = vsel %vm1339, %v1336, %v1338
  %1346 = vrot.lane.b32.xlu0 %v1282, 108
  %v1347 = vpop.permute.xlu0 %1346
  %1348 = vrot.lane.b32.xlu0 %v1283, 108
  %v1349 = vpop.permute.xlu0 %1348
  %1350 = vrot.lane.b32.xlu0 %v1284, 108
  %v1351 = vpop.permute.xlu0 %1350
  %1352 = vrot.lane.b32.xlu0 %v1285, 108
  %v1353 = vpop.permute.xlu0 %1352
  %vm1354 = vcmask 883712
  %v1355 = vsel %vm1354, %v1347, %v1349
  %v1356 = vsel %vm1354, %v1349, %v1351
  %v1357 = vsel %vm1354, %v1351, %v1353
  %1361 = vrot.lane.b32.xlu0 %v1265, 92
  %v1362 = vpop.permute.xlu0 %1361
  %1363 = vrot.lane.b32.xlu0 %v1266, 92
  %v1364 = vpop.permute.xlu0 %1363
  %1365 = vrot.lane.b32.xlu0 %v1267, 92
  %v1366 = vpop.permute.xlu0 %1365
  %1367 = vrot.lane.b32.xlu0 %v1268, 92
  %v1368 = vpop.permute.xlu0 %1367
  %vm1369 = vcmask 752640
  %v1370 = vsel %vm1369, %v1362, %v1364
  %v1371 = vsel %vm1369, %v1364, %v1366
  %v1372 = vsel %vm1369, %v1366, %v1368
  %1376 = vrot.lane.b32.xlu0 %v1282, 91
  %v1377 = vpop.permute.xlu0 %1376
  %1378 = vrot.lane.b32.xlu0 %v1283, 91
  %v1379 = vpop.permute.xlu0 %1378
  %1380 = vrot.lane.b32.xlu0 %v1284, 91
  %v1381 = vpop.permute.xlu0 %1380
  %1382 = vrot.lane.b32.xlu0 %v1285, 91
  %v1383 = vpop.permute.xlu0 %1382
  %vm1384 = vcmask 744448
  %v1385 = vsel %vm1384, %v1377, %v1379
  %v1386 = vsel %vm1384, %v1379, %v1381
  %v1387 = vsel %vm1384, %v1381, %v1383
  %1391 = vrot.lane.b32.xlu0 %v1265, 90
  %v1392 = vpop.permute.xlu0 %1391
  %1393 = vrot.lane.b32.xlu0 %v1266, 90
  %v1394 = vpop.permute.xlu0 %1393
  %1395 = vrot.lane.b32.xlu0 %v1267, 90
  %v1396 = vpop.permute.xlu0 %1395
  %1397 = vrot.lane.b32.xlu0 %v1268, 90
  %v1398 = vpop.permute.xlu0 %1397
  %vm1399 = vcmask 736256
  %v1400 = vsel %vm1399, %v1392, %v1394
  %v1401 = vsel %vm1399, %v1394, %v1396
  %v1402 = vsel %vm1399, %v1396, %v1398
  %vm1403 = vcmask 1043456
  %v1404 = vsel %vm1403, %v1265, %v1295
  %v1405 = vsel %vm1403, %v1266, %v1296
  %v1406 = vsel %vm1403, %v1267, %v1297
  %v1407 = vsel %vm1403, %v1310, %v1325
  %v1408 = vsel %vm1403, %v1311, %v1326
  %v1409 = vsel %vm1403, %v1312, %v1327
  %v1410 = vsel %vm1403, %v1340, %v1355
  %v1411 = vsel %vm1403, %v1341, %v1356
  %v1412 = vsel %vm1403, %v1342, %v1357
  %v1413 = vsel %vm1403, %v1370, %v1385
  %v1414 = vsel %vm1403, %v1371, %v1386
  %v1415 = vsel %vm1403, %v1372, %v1387
  %v1420 = vrot.slane %v1269, 4
  %v1421 = vrot.slane %v1270, 4
  %v1422 = vrot.slane %v1271, 4
  %v1423 = vrot.slane %v1272, 4
  %1424 = vrot.lane.b32.xlu0 %v1420, 127
  %v1425 = vpop.permute.xlu0 %1424
  %1426 = vrot.lane.b32.xlu0 %v1421, 127
  %v1427 = vpop.permute.xlu0 %1426
  %1428 = vrot.lane.b32.xlu0 %v1422, 127
  %v1429 = vpop.permute.xlu0 %1428
  %1430 = vrot.lane.b32.xlu0 %v1423, 127
  %v1431 = vpop.permute.xlu0 %1430
  %v1432 = vsel %vm1294, %v1425, %v1427
  %v1433 = vsel %vm1294, %v1427, %v1429
  %v1434 = vsel %vm1294, %v1429, %v1431
  %1438 = vrot.lane.b32.xlu0 %v1269, 126
  %v1439 = vpop.permute.xlu0 %1438
  %1440 = vrot.lane.b32.xlu0 %v1270, 126
  %v1441 = vpop.permute.xlu0 %1440
  %1442 = vrot.lane.b32.xlu0 %v1271, 126
  %v1443 = vpop.permute.xlu0 %1442
  %1444 = vrot.lane.b32.xlu0 %v1272, 126
  %v1445 = vpop.permute.xlu0 %1444
  %v1446 = vsel %vm1309, %v1439, %v1441
  %v1447 = vsel %vm1309, %v1441, %v1443
  %v1448 = vsel %vm1309, %v1443, %v1445
  %1452 = vrot.lane.b32.xlu0 %v1420, 110
  %v1453 = vpop.permute.xlu0 %1452
  %1454 = vrot.lane.b32.xlu0 %v1421, 110
  %v1455 = vpop.permute.xlu0 %1454
  %1456 = vrot.lane.b32.xlu0 %v1422, 110
  %v1457 = vpop.permute.xlu0 %1456
  %1458 = vrot.lane.b32.xlu0 %v1423, 110
  %v1459 = vpop.permute.xlu0 %1458
  %v1460 = vsel %vm1324, %v1453, %v1455
  %v1461 = vsel %vm1324, %v1455, %v1457
  %v1462 = vsel %vm1324, %v1457, %v1459
  %1466 = vrot.lane.b32.xlu0 %v1269, 109
  %v1467 = vpop.permute.xlu0 %1466
  %1468 = vrot.lane.b32.xlu0 %v1270, 109
  %v1469 = vpop.permute.xlu0 %1468
  %1470 = vrot.lane.b32.xlu0 %v1271, 109
  %v1471 = vpop.permute.xlu0 %1470
  %1472 = vrot.lane.b32.xlu0 %v1272, 109
  %v1473 = vpop.permute.xlu0 %1472
  %v1474 = vsel %vm1339, %v1467, %v1469
  %v1475 = vsel %vm1339, %v1469, %v1471
  %v1476 = vsel %vm1339, %v1471, %v1473
  %1480 = vrot.lane.b32.xlu0 %v1420, 108
  %v1481 = vpop.permute.xlu0 %1480
  %1482 = vrot.lane.b32.xlu0 %v1421, 108
  %v1483 = vpop.permute.xlu0 %1482
  %1484 = vrot.lane.b32.xlu0 %v1422, 108
  %v1485 = vpop.permute.xlu0 %1484
  %1486 = vrot.lane.b32.xlu0 %v1423, 108
  %v1487 = vpop.permute.xlu0 %1486
  %v1488 = vsel %vm1354, %v1481, %v1483
  %v1489 = vsel %vm1354, %v1483, %v1485
  %v1490 = vsel %vm1354, %v1485, %v1487
  %1494 = vrot.lane.b32.xlu0 %v1269, 92
  %v1495 = vpop.permute.xlu0 %1494
  %1496 = vrot.lane.b32.xlu0 %v1270, 92
  %v1497 = vpop.permute.xlu0 %1496
  %1498 = vrot.lane.b32.xlu0 %v1271, 92
  %v1499 = vpop.permute.xlu0 %1498
  %1500 = vrot.lane.b32.xlu0 %v1272, 92
  %v1501 = vpop.permute.xlu0 %1500
  %v1502 = vsel %vm1369, %v1495, %v1497
  %v1503 = vsel %vm1369, %v1497, %v1499
  %v1504 = vsel %vm1369, %v1499, %v1501
  %1508 = vrot.lane.b32.xlu0 %v1420, 91
  %v1509 = vpop.permute.xlu0 %1508
  %1510 = vrot.lane.b32.xlu0 %v1421, 91
  %v1511 = vpop.permute.xlu0 %1510
  %1512 = vrot.lane.b32.xlu0 %v1422, 91
  %v1513 = vpop.permute.xlu0 %1512
  %1514 = vrot.lane.b32.xlu0 %v1423, 91
  %v1515 = vpop.permute.xlu0 %1514
  %v1516 = vsel %vm1384, %v1509, %v1511
  %v1517 = vsel %vm1384, %v1511, %v1513
  %v1518 = vsel %vm1384, %v1513, %v1515
  %1522 = vrot.lane.b32.xlu0 %v1269, 90
  %v1523 = vpop.permute.xlu0 %1522
  %1524 = vrot.lane.b32.xlu0 %v1270, 90
  %v1525 = vpop.permute.xlu0 %1524
  %1526 = vrot.lane.b32.xlu0 %v1271, 90
  %v1527 = vpop.permute.xlu0 %1526
  %1528 = vrot.lane.b32.xlu0 %v1272, 90
  %v1529 = vpop.permute.xlu0 %1528
  %v1530 = vsel %vm1399, %v1523, %v1525
  %v1531 = vsel %vm1399, %v1525, %v1527
  %v1532 = vsel %vm1399, %v1527, %v1529
  %v1533 = vsel %vm1403, %v1269, %v1432
  %v1534 = vsel %vm1403, %v1270, %v1433
  %v1535 = vsel %vm1403, %v1271, %v1434
  %v1536 = vsel %vm1403, %v1446, %v1460
  %v1537 = vsel %vm1403, %v1447, %v1461
  %v1538 = vsel %vm1403, %v1448, %v1462
  %v1539 = vsel %vm1403, %v1474, %v1488
  %v1540 = vsel %vm1403, %v1475, %v1489
  %v1541 = vsel %vm1403, %v1476, %v1490
  %v1542 = vsel %vm1403, %v1502, %v1516
  %v1543 = vsel %vm1403, %v1503, %v1517
  %v1544 = vsel %vm1403, %v1504, %v1518
  %vm1545 = vcmask 293888
  %v1547 = vsel %vm1545, %v1274, 0
  %v1549 = vsel %vm1403, %v1530, 0
  %v1551 = vsel %vm1403, %v1531, 0
  %v1553 = vsel %vm1403, %v1532, 0
  %1555 = vmatprep.subr.mxu0 %v1534
  %1556 = vmatpush1.msra.mxu0 %v1533
  %1557 = vmatprep.subr.mxu0 %v1537
  %1558 = vmatpush1.msra.mxu0 %v1536
  %1559 = vmatprep.subr.mxu0 %v1540
  %1560 = vmatpush1.msra.mxu0 %v1539
  %1561 = vmatprep.subr.mxu0 %v1543
  %1562 = vmatpush1.msra.mxu0 %v1542
  %1563 = vmatprep.subr.mxu0 %v1551
  %1564 = vmatpush1.msra.mxu0 %v1549
  %1565 = vmatprep.subr.mxu0 0.0
  %1566 = vmatpush1.msra.mxu0 0.0
  %1567 = vmatprep.subr.mxu0 0.0
  %1568 = vmatpush1.msra.mxu0 0.0
  %1569 = vmatprep.subr.mxu0 0.0
  %1570 = vmatpush1.msra.mxu0 0.0
  %1571 = vmatprep.subr.mxu0 0.0
  %1572 = vmatpush1.msra.mxu0 0.0
  %1573 = vmatprep.subr.mxu0 0.0
  %1574 = vmatpush1.msra.mxu0 0.0
  %1575 = vmatprep.subr.mxu0 0.0
  %1576 = vmatpush1.msra.mxu0 0.0
  %1577 = vmatprep.subr.mxu0 0.0
  %1578 = vmatpush1.msra.mxu0 0.0
  %1579 = vmatprep.subr.mxu0 0.0
  %1580 = vmatpush1.msra.mxu0 0.0
  %1581 = vmatprep.subr.mxu0 0.0
  %1582 = vmatpush1.msra.mxu0 0.0
  %1583 = vmatprep.subr.mxu0 0.0
  %1584 = vmatpush1.msra.mxu0 0.0
  %1585 = vmatprep.subr.mxu0 0.0
  %1586 = vmatpush1.msra.mxu0 0.0
  %1587 = vmatprep.subr.mxu0 0.0
  %1588 = vmatpush1.msra.mxu0 0.0
  %1589 = vmatprep.subr.mxu0 0.0
  %1590 = vmatpush1.msra.mxu0 0.0
  %1591 = vmatprep.subr.mxu0 0.0
  %1592 = vmatpush1.msra.mxu0 0.0
  %1593 = vmatprep.subr.mxu0 0.0
  %1594 = vmatpush1.msra.mxu0 0.0
  %1595 = vmatprep.subr.mxu0 0.0
  %1596 = vmatpush1.msra.mxu0 0.0
  %1597 = vmatprep.subr.mxu0 0.0
  %1598 = vmatpush1.msra.mxu0 0.0
  %1599 = vmatprep.subr.mxu0 0.0
  %1600 = vmatpush1.msra.mxu0 0.0
  %1601 = vmatprep.subr.mxu0 0.0
  %1602 = vmatpush1.msra.mxu0 0.0
  %1603 = vmatprep.subr.mxu0 0.0
  %1604 = vmatpush1.msra.mxu0 0.0
  %1605 = vmatprep.subr.mxu0 0.0
  %1606 = vmatpush1.msra.mxu0 0.0
  %1607 = vmatprep.subr.mxu0 0.0
  %1608 = vmatpush1.msra.mxu0 0.0
  %1609 = vmatprep.subr.mxu0 0.0
  %1610 = vmatpush1.msra.mxu0 0.0
  %1611 = vmatprep.subr.mxu0 0.0
  %1612 = vmatpush1.msra.mxu0 0.0
  %1613 = vmatprep.subr.mxu0 0.0
  %1614 = vmatpush1.msra.mxu0 0.0
  %1615 = vmatprep.subr.mxu0 0.0
  %1616 = vmatpush1.msra.mxu0 0.0
  %1617 = vmatprep.subr.mxu0 0.0
  %1618 = vmatpush1.msra.mxu0 0.0
  %1619 = vmatprep.mubr.f32.mxu0 0.0
  %1620 = vmatmul.mubr.f32.gmra.mrb[0].mxu0 %v1547
  %v1621 = vpop.f32.mrb[0].mxu0
  %v1622 = vadd.f32 0.0, %v1621
  %v1623 = vpop.f32.mrb[0].mxu0
  %v1624 = vadd.f32 0.0, %v1623
  %1625 = vdwg.mxu0
  %1626 = vmatprep.subr.mxu0 0.0
  %1627 = vmatpush1.msra.mxu0 %v1535
  %1628 = vmatprep.subr.mxu0 0.0
  %1629 = vmatpush1.msra.mxu0 %v1538
  %1630 = vmatprep.subr.mxu0 0.0
  %1631 = vmatpush1.msra.mxu0 %v1541
  %1632 = vmatprep.subr.mxu0 0.0
  %1633 = vmatpush1.msra.mxu0 %v1544
  %1634 = vmatprep.subr.mxu0 0.0
  %1635 = vmatpush1.msra.mxu0 %v1553
  %1636 = vmatprep.subr.mxu0 0.0
  %1637 = vmatpush1.msra.mxu0 0.0
  %1638 = vmatprep.subr.mxu0 0.0
  %1639 = vmatpush1.msra.mxu0 0.0
  %1640 = vmatprep.subr.mxu0 0.0
  %1641 = vmatpush1.msra.mxu0 0.0
  %1642 = vmatprep.subr.mxu0 0.0
  %1643 = vmatpush1.msra.mxu0 0.0
  %1644 = vmatprep.subr.mxu0 0.0
  %1645 = vmatpush1.msra.mxu0 0.0
  %1646 = vmatprep.subr.mxu0 0.0
  %1647 = vmatpush1.msra.mxu0 0.0
  %1648 = vmatprep.subr.mxu0 0.0
  %1649 = vmatpush1.msra.mxu0 0.0
  %1650 = vmatprep.subr.mxu0 0.0
  %1651 = vmatpush1.msra.mxu0 0.0
  %1652 = vmatprep.subr.mxu0 0.0
  %1653 = vmatpush1.msra.mxu0 0.0
  %1654 = vmatprep.subr.mxu0 0.0
  %1655 = vmatpush1.msra.mxu0 0.0
  %1656 = vmatprep.subr.mxu0 0.0
  %1657 = vmatpush1.msra.mxu0 0.0
  %1658 = vmatprep.subr.mxu0 0.0
  %1659 = vmatpush1.msra.mxu0 0.0
  %1660 = vmatprep.subr.mxu0 0.0
  %1661 = vmatpush1.msra.mxu0 0.0
  %1662 = vmatprep.subr.mxu0 0.0
  %1663 = vmatpush1.msra.mxu0 0.0
  %1664 = vmatprep.subr.mxu0 0.0
  %1665 = vmatpush1.msra.mxu0 0.0
  %1666 = vmatprep.subr.mxu0 0.0
  %1667 = vmatpush1.msra.mxu0 0.0
  %1668 = vmatprep.subr.mxu0 0.0
  %1669 = vmatpush1.msra.mxu0 0.0
  %1670 = vmatprep.subr.mxu0 0.0
  %1671 = vmatpush1.msra.mxu0 0.0
  %1672 = vmatprep.subr.mxu0 0.0
  %1673 = vmatpush1.msra.mxu0 0.0
  %1674 = vmatprep.subr.mxu0 0.0
  %1675 = vmatpush1.msra.mxu0 0.0
  %1676 = vmatprep.subr.mxu0 0.0
  %1677 = vmatpush1.msra.mxu0 0.0
  %1678 = vmatprep.subr.mxu0 0.0
  %1679 = vmatpush1.msra.mxu0 0.0
  %1680 = vmatprep.subr.mxu0 0.0
  %1681 = vmatpush1.msra.mxu0 0.0
  %1682 = vmatprep.subr.mxu0 0.0
  %1683 = vmatpush1.msra.mxu0 0.0
  %1684 = vmatprep.subr.mxu0 0.0
  %1685 = vmatpush1.msra.mxu0 0.0
  %1686 = vmatprep.subr.mxu0 0.0
  %1687 = vmatpush1.msra.mxu0 0.0
  %1688 = vmatprep.subr.mxu0 0.0
  %1689 = vmatpush1.msra.mxu0 0.0
  %1690 = vmatprep.mubr.f32.mxu0 0.0
  %1691 = vmatmul.mubr.f32.gmra.mrb[0].mxu0 %v1547
  %v1692 = vpop.f32.mrb[0].mxu0
  %v1693 = vadd.f32 0.0, %v1692
  %v1694 = vpop.f32.mrb[0].mxu0
  %1695 = vdwg.mxu0
  %v1697 = vsel %vm1545, %v1273, 0
  %v1699 = vsel %vm1403, %v1400, 0
  %v1701 = vsel %vm1403, %v1401, 0
  %v1703 = vsel %vm1403, %v1402, 0
  %1705 = vmatprep.subr.mxu0 %v1405
  %1706 = vmatpush1.msra.mxu0 %v1404
  %1707 = vmatprep.subr.mxu0 %v1408
  %1708 = vmatpush1.msra.mxu0 %v1407
  %1709 = vmatprep.subr.mxu0 %v1411
  %1710 = vmatpush1.msra.mxu0 %v1410
  %1711 = vmatprep.subr.mxu0 %v1414
  %1712 = vmatpush1.msra.mxu0 %v1413
  %1713 = vmatprep.subr.mxu0 %v1701
  %1714 = vmatpush1.msra.mxu0 %v1699
  %1715 = vmatprep.subr.mxu0 0.0
  %1716 = vmatpush1.msra.mxu0 0.0
  %1717 = vmatprep.subr.mxu0 0.0
  %1718 = vmatpush1.msra.mxu0 0.0
  %1719 = vmatprep.subr.mxu0 0.0
  %1720 = vmatpush1.msra.mxu0 0.0
  %1721 = vmatprep.subr.mxu0 0.0
  %1722 = vmatpush1.msra.mxu0 0.0
  %1723 = vmatprep.subr.mxu0 0.0
  %1724 = vmatpush1.msra.mxu0 0.0
  %1725 = vmatprep.subr.mxu0 0.0
  %1726 = vmatpush1.msra.mxu0 0.0
  %1727 = vmatprep.subr.mxu0 0.0
  %1728 = vmatpush1.msra.mxu0 0.0
  %1729 = vmatprep.subr.mxu0 0.0
  %1730 = vmatpush1.msra.mxu0 0.0
  %1731 = vmatprep.subr.mxu0 0.0
  %1732 = vmatpush1.msra.mxu0 0.0
  %1733 = vmatprep.subr.mxu0 0.0
  %1734 = vmatpush1.msra.mxu0 0.0
  %1735 = vmatprep.subr.mxu0 0.0
  %1736 = vmatpush1.msra.mxu0 0.0
  %1737 = vmatprep.subr.mxu0 0.0
  %1738 = vmatpush1.msra.mxu0 0.0
  %1739 = vmatprep.subr.mxu0 0.0
  %1740 = vmatpush1.msra.mxu0 0.0
  %1741 = vmatprep.subr.mxu0 0.0
  %1742 = vmatpush1.msra.mxu0 0.0
  %1743 = vmatprep.subr.mxu0 0.0
  %1744 = vmatpush1.msra.mxu0 0.0
  %1745 = vmatprep.subr.mxu0 0.0
  %1746 = vmatpush1.msra.mxu0 0.0
  %1747 = vmatprep.subr.mxu0 0.0
  %1748 = vmatpush1.msra.mxu0 0.0
  %1749 = vmatprep.subr.mxu0 0.0
  %1750 = vmatpush1.msra.mxu0 0.0
  %1751 = vmatprep.subr.mxu0 0.0
  %1752 = vmatpush1.msra.mxu0 0.0
  %1753 = vmatprep.subr.mxu0 0.0
  %1754 = vmatpush1.msra.mxu0 0.0
  %1755 = vmatprep.subr.mxu0 0.0
  %1756 = vmatpush1.msra.mxu0 0.0
  %1757 = vmatprep.subr.mxu0 0.0
  %1758 = vmatpush1.msra.mxu0 0.0
  %1759 = vmatprep.subr.mxu0 0.0
  %1760 = vmatpush1.msra.mxu0 0.0
  %1761 = vmatprep.subr.mxu0 0.0
  %1762 = vmatpush1.msra.mxu0 0.0
  %1763 = vmatprep.subr.mxu0 0.0
  %1764 = vmatpush1.msra.mxu0 0.0
  %1765 = vmatprep.subr.mxu0 0.0
  %1766 = vmatpush1.msra.mxu0 0.0
  %1767 = vmatprep.subr.mxu0 0.0
  %1768 = vmatpush1.msra.mxu0 0.0
  %1769 = vmatprep.mubr.f32.mxu0 0.0
  %1770 = vmatmul.mubr.f32.gmra.mrb[0].mxu0 %v1697
  %v1771 = vpop.f32.mrb[0].mxu0
  %v1772 = vadd.f32 %v1622, %v1771
  %v1773 = vpop.f32.mrb[0].mxu0
  %v1774 = vadd.f32 %v1624, %v1773
  %1775 = vdwg.mxu0
  %1776 = vmatprep.subr.mxu0 0.0
  %1777 = vmatpush1.msra.mxu0 %v1406
  %1778 = vmatprep.subr.mxu0 0.0
  %1779 = vmatpush1.msra.mxu0 %v1409
  %1780 = vmatprep.subr.mxu0 0.0
  %1781 = vmatpush1.msra.mxu0 %v1412
  %1782 = vmatprep.subr.mxu0 0.0
  %1783 = vmatpush1.msra.mxu0 %v1415
  %1784 = vmatprep.subr.mxu0 0.0
  %1785 = vmatpush1.msra.mxu0 %v1703
  %1786 = vmatprep.subr.mxu0 0.0
  %1787 = vmatpush1.msra.mxu0 0.0
  %1788 = vmatprep.subr.mxu0 0.0
  %1789 = vmatpush1.msra.mxu0 0.0
  %1790 = vmatprep.subr.mxu0 0.0
  %1791 = vmatpush1.msra.mxu0 0.0
  %1792 = vmatprep.subr.mxu0 0.0
  %1793 = vmatpush1.msra.mxu0 0.0
  %1794 = vmatprep.subr.mxu0 0.0
  %1795 = vmatpush1.msra.mxu0 0.0
  %1796 = vmatprep.subr.mxu0 0.0
  %1797 = vmatpush1.msra.mxu0 0.0
  %1798 = vmatprep.subr.mxu0 0.0
  %1799 = vmatpush1.msra.mxu0 0.0
  %1800 = vmatprep.subr.mxu0 0.0
  %1801 = vmatpush1.msra.mxu0 0.0
  %1802 = vmatprep.subr.mxu0 0.0
  %1803 = vmatpush1.msra.mxu0 0.0
  %1804 = vmatprep.subr.mxu0 0.0
  %1805 = vmatpush1.msra.mxu0 0.0
  %1806 = vmatprep.subr.mxu0 0.0
  %1807 = vmatpush1.msra.mxu0 0.0
  %1808 = vmatprep.subr.mxu0 0.0
  %1809 = vmatpush1.msra.mxu0 0.0
  %1810 = vmatprep.subr.mxu0 0.0
  %1811 = vmatpush1.msra.mxu0 0.0
  %1812 = vmatprep.subr.mxu0 0.0
  %1813 = vmatpush1.msra.mxu0 0.0
  %1814 = vmatprep.subr.mxu0 0.0
  %1815 = vmatpush1.msra.mxu0 0.0
  %1816 = vmatprep.subr.mxu0 0.0
  %1817 = vmatpush1.msra.mxu0 0.0
  %1818 = vmatprep.subr.mxu0 0.0
  %1819 = vmatpush1.msra.mxu0 0.0
  %1820 = vmatprep.subr.mxu0 0.0
  %1821 = vmatpush1.msra.mxu0 0.0
  %1822 = vmatprep.subr.mxu0 0.0
  %1823 = vmatpush1.msra.mxu0 0.0
  %1824 = vmatprep.subr.mxu0 0.0
  %1825 = vmatpush1.msra.mxu0 0.0
  %1826 = vmatprep.subr.mxu0 0.0
  %1827 = vmatpush1.msra.mxu0 0.0
  %1828 = vmatprep.subr.mxu0 0.0
  %1829 = vmatpush1.msra.mxu0 0.0
  %1830 = vmatprep.subr.mxu0 0.0
  %1831 = vmatpush1.msra.mxu0 0.0
  %1832 = vmatprep.subr.mxu0 0.0
  %1833 = vmatpush1.msra.mxu0 0.0
  %1834 = vmatprep.subr.mxu0 0.0
  %1835 = vmatpush1.msra.mxu0 0.0
  %1836 = vmatprep.subr.mxu0 0.0
  %1837 = vmatpush1.msra.mxu0 0.0
  %1838 = vmatprep.subr.mxu0 0.0
  %1839 = vmatpush1.msra.mxu0 0.0
  %1840 = vmatprep.mubr.f32.mxu0 0.0
  %1841 = vmatmul.mubr.f32.gmra.mrb[0].mxu0 %v1697
  %v1842 = vpop.f32.mrb[0].mxu0
  %v1843 = vadd.f32 %v1693, %v1842
  %v1844 = vpop.f32.mrb[0].mxu0
  %1845 = vdwg.mxu0
  %1849 = vrot.lane.b32.xlu0 %v1265, 127
  %v1850 = vpop.permute.xlu0 %1849
  %1851 = vrot.lane.b32.xlu0 %v1266, 127
  %v1852 = vpop.permute.xlu0 %1851
  %1853 = vrot.lane.b32.xlu0 %v1267, 127
  %v1854 = vpop.permute.xlu0 %1853
  %1855 = vrot.lane.b32.xlu0 %v1268, 127
  %v1856 = vpop.permute.xlu0 %1855
  %v1857 = vsel %vm1294, %v1850, %v1852
  %v1858 = vsel %vm1294, %v1852, %v1854
  %v1859 = vsel %vm1294, %v1854, %v1856
  %1863 = vrot.lane.b32.xlu0 %v1282, 126
  %v1864 = vpop.permute.xlu0 %1863
  %1865 = vrot.lane.b32.xlu0 %v1283, 126
  %v1866 = vpop.permute.xlu0 %1865
  %1867 = vrot.lane.b32.xlu0 %v1284, 126
  %v1868 = vpop.permute.xlu0 %1867
  %1869 = vrot.lane.b32.xlu0 %v1285, 126
  %v1870 = vpop.permute.xlu0 %1869
  %v1871 = vsel %vm1309, %v1864, %v1866
  %v1872 = vsel %vm1309, %v1866, %v1868
  %v1873 = vsel %vm1309, %v1868, %v1870
  %1877 = vrot.lane.b32.xlu0 %v1265, 110
  %v1878 = vpop.permute.xlu0 %1877
  %1879 = vrot.lane.b32.xlu0 %v1266, 110
  %v1880 = vpop.permute.xlu0 %1879
  %1881 = vrot.lane.b32.xlu0 %v1267, 110
  %v1882 = vpop.permute.xlu0 %1881
  %1883 = vrot.lane.b32.xlu0 %v1268, 110
  %v1884 = vpop.permute.xlu0 %1883
  %v1885 = vsel %vm1324, %v1878, %v1880
  %v1886 = vsel %vm1324, %v1880, %v1882
  %v1887 = vsel %vm1324, %v1882, %v1884
  %1891 = vrot.lane.b32.xlu0 %v1282, 109
  %v1892 = vpop.permute.xlu0 %1891
  %1893 = vrot.lane.b32.xlu0 %v1283, 109
  %v1894 = vpop.permute.xlu0 %1893
  %1895 = vrot.lane.b32.xlu0 %v1284, 109
  %v1896 = vpop.permute.xlu0 %1895
  %1897 = vrot.lane.b32.xlu0 %v1285, 109
  %v1898 = vpop.permute.xlu0 %1897
  %v1899 = vsel %vm1339, %v1892, %v1894
  %v1900 = vsel %vm1339, %v1894, %v1896
  %v1901 = vsel %vm1339, %v1896, %v1898
  %1905 = vrot.lane.b32.xlu0 %v1265, 108
  %v1906 = vpop.permute.xlu0 %1905
  %1907 = vrot.lane.b32.xlu0 %v1266, 108
  %v1908 = vpop.permute.xlu0 %1907
  %1909 = vrot.lane.b32.xlu0 %v1267, 108
  %v1910 = vpop.permute.xlu0 %1909
  %1911 = vrot.lane.b32.xlu0 %v1268, 108
  %v1912 = vpop.permute.xlu0 %1911
  %v1913 = vsel %vm1354, %v1906, %v1908
  %v1914 = vsel %vm1354, %v1908, %v1910
  %v1915 = vsel %vm1354, %v1910, %v1912
  %1919 = vrot.lane.b32.xlu0 %v1282, 92
  %v1920 = vpop.permute.xlu0 %1919
  %1921 = vrot.lane.b32.xlu0 %v1283, 92
  %v1922 = vpop.permute.xlu0 %1921
  %1923 = vrot.lane.b32.xlu0 %v1284, 92
  %v1924 = vpop.permute.xlu0 %1923
  %1925 = vrot.lane.b32.xlu0 %v1285, 92
  %v1926 = vpop.permute.xlu0 %1925
  %v1927 = vsel %vm1369, %v1920, %v1922
  %v1928 = vsel %vm1369, %v1922, %v1924
  %v1929 = vsel %vm1369, %v1924, %v1926
  %1933 = vrot.lane.b32.xlu0 %v1265, 91
  %v1934 = vpop.permute.xlu0 %1933
  %1935 = vrot.lane.b32.xlu0 %v1266, 91
  %v1936 = vpop.permute.xlu0 %1935
  %1937 = vrot.lane.b32.xlu0 %v1267, 91
  %v1938 = vpop.permute.xlu0 %1937
  %1939 = vrot.lane.b32.xlu0 %v1268, 91
  %v1940 = vpop.permute.xlu0 %1939
  %v1941 = vsel %vm1384, %v1934, %v1936
  %v1942 = vsel %vm1384, %v1936, %v1938
  %v1943 = vsel %vm1384, %v1938, %v1940
  %1947 = vrot.lane.b32.xlu0 %v1282, 90
  %v1948 = vpop.permute.xlu0 %1947
  %1949 = vrot.lane.b32.xlu0 %v1283, 90
  %v1950 = vpop.permute.xlu0 %1949
  %1951 = vrot.lane.b32.xlu0 %v1284, 90
  %v1952 = vpop.permute.xlu0 %1951
  %1953 = vrot.lane.b32.xlu0 %v1285, 90
  %v1954 = vpop.permute.xlu0 %1953
  %v1955 = vsel %vm1399, %v1948, %v1950
  %v1956 = vsel %vm1399, %v1950, %v1952
  %v1957 = vsel %vm1399, %v1952, %v1954
  %v1958 = vsel %vm1403, %v1282, %v1857
  %v1959 = vsel %vm1403, %v1283, %v1858
  %v1960 = vsel %vm1403, %v1284, %v1859
  %v1961 = vsel %vm1403, %v1871, %v1885
  %v1962 = vsel %vm1403, %v1872, %v1886
  %v1963 = vsel %vm1403, %v1873, %v1887
  %v1964 = vsel %vm1403, %v1899, %v1913
  %v1965 = vsel %vm1403, %v1900, %v1914
  %v1966 = vsel %vm1403, %v1901, %v1915
  %v1967 = vsel %vm1403, %v1927, %v1941
  %v1968 = vsel %vm1403, %v1928, %v1942
  %v1969 = vsel %vm1403, %v1929, %v1943
  %1973 = vrot.lane.b32.xlu0 %v1269, 127
  %v1974 = vpop.permute.xlu0 %1973
  %1975 = vrot.lane.b32.xlu0 %v1270, 127
  %v1976 = vpop.permute.xlu0 %1975
  %1977 = vrot.lane.b32.xlu0 %v1271, 127
  %v1978 = vpop.permute.xlu0 %1977
  %1979 = vrot.lane.b32.xlu0 %v1272, 127
  %v1980 = vpop.permute.xlu0 %1979
  %v1981 = vsel %vm1294, %v1974, %v1976
  %v1982 = vsel %vm1294, %v1976, %v1978
  %v1983 = vsel %vm1294, %v1978, %v1980
  %1987 = vrot.lane.b32.xlu0 %v1420, 126
  %v1988 = vpop.permute.xlu0 %1987
  %1989 = vrot.lane.b32.xlu0 %v1421, 126
  %v1990 = vpop.permute.xlu0 %1989
  %1991 = vrot.lane.b32.xlu0 %v1422, 126
  %v1992 = vpop.permute.xlu0 %1991
  %1993 = vrot.lane.b32.xlu0 %v1423, 126
  %v1994 = vpop.permute.xlu0 %1993
  %v1995 = vsel %vm1309, %v1988, %v1990
  %v1996 = vsel %vm1309, %v1990, %v1992
  %v1997 = vsel %vm1309, %v1992, %v1994
  %2001 = vrot.lane.b32.xlu0 %v1269, 110
  %v2002 = vpop.permute.xlu0 %2001
  %2003 = vrot.lane.b32.xlu0 %v1270, 110
  %v2004 = vpop.permute.xlu0 %2003
  %2005 = vrot.lane.b32.xlu0 %v1271, 110
  %v2006 = vpop.permute.xlu0 %2005
  %2007 = vrot.lane.b32.xlu0 %v1272, 110
  %v2008 = vpop.permute.xlu0 %2007
  %v2009 = vsel %vm1324, %v2002, %v2004
  %v2010 = vsel %vm1324, %v2004, %v2006
  %v2011 = vsel %vm1324, %v2006, %v2008
  %2015 = vrot.lane.b32.xlu0 %v1420, 109
  %v2016 = vpop.permute.xlu0 %2015
  %2017 = vrot.lane.b32.xlu0 %v1421, 109
  %v2018 = vpop.permute.xlu0 %2017
  %2019 = vrot.lane.b32.xlu0 %v1422, 109
  %v2020 = vpop.permute.xlu0 %2019
  %2021 = vrot.lane.b32.xlu0 %v1423, 109
  %v2022 = vpop.permute.xlu0 %2021
  %v2023 = vsel %vm1339, %v2016, %v2018
  %v2024 = vsel %vm1339, %v2018, %v2020
  %v2025 = vsel %vm1339, %v2020, %v2022
  %2029 = vrot.lane.b32.xlu0 %v1269, 108
  %v2030 = vpop.permute.xlu0 %2029
  %2031 = vrot.lane.b32.xlu0 %v1270, 108
  %v2032 = vpop.permute.xlu0 %2031
  %2033 = vrot.lane.b32.xlu0 %v1271, 108
  %v2034 = vpop.permute.xlu0 %2033
  %2035 = vrot.lane.b32.xlu0 %v1272, 108
  %v2036 = vpop.permute.xlu0 %2035
  %v2037 = vsel %vm1354, %v2030, %v2032
  %v2038 = vsel %vm1354, %v2032, %v2034
  %v2039 = vsel %vm1354, %v2034, %v2036
  %2043 = vrot.lane.b32.xlu0 %v1420, 92
  %v2044 = vpop.permute.xlu0 %2043
  %2045 = vrot.lane.b32.xlu0 %v1421, 92
  %v2046 = vpop.permute.xlu0 %2045
  %2047 = vrot.lane.b32.xlu0 %v1422, 92
  %v2048 = vpop.permute.xlu0 %2047
  %2049 = vrot.lane.b32.xlu0 %v1423, 92
  %v2050 = vpop.permute.xlu0 %2049
  %v2051 = vsel %vm1369, %v2044, %v2046
  %v2052 = vsel %vm1369, %v2046, %v2048
  %v2053 = vsel %vm1369, %v2048, %v2050
  %2057 = vrot.lane.b32.xlu0 %v1269, 91
  %v2058 = vpop.permute.xlu0 %2057
  %2059 = vrot.lane.b32.xlu0 %v1270, 91
  %v2060 = vpop.permute.xlu0 %2059
  %2061 = vrot.lane.b32.xlu0 %v1271, 91
  %v2062 = vpop.permute.xlu0 %2061
  %2063 = vrot.lane.b32.xlu0 %v1272, 91
  %v2064 = vpop.permute.xlu0 %2063
  %v2065 = vsel %vm1384, %v2058, %v2060
  %v2066 = vsel %vm1384, %v2060, %v2062
  %v2067 = vsel %vm1384, %v2062, %v2064
  %2071 = vrot.lane.b32.xlu0 %v1420, 90
  %v2072 = vpop.permute.xlu0 %2071
  %2073 = vrot.lane.b32.xlu0 %v1421, 90
  %v2074 = vpop.permute.xlu0 %2073
  %2075 = vrot.lane.b32.xlu0 %v1422, 90
  %v2076 = vpop.permute.xlu0 %2075
  %2077 = vrot.lane.b32.xlu0 %v1423, 90
  %v2078 = vpop.permute.xlu0 %2077
  %v2079 = vsel %vm1399, %v2072, %v2074
  %v2080 = vsel %vm1399, %v2074, %v2076
  %v2081 = vsel %vm1399, %v2076, %v2078
  %v2082 = vsel %vm1403, %v1420, %v1981
  %v2083 = vsel %vm1403, %v1421, %v1982
  %v2084 = vsel %vm1403, %v1422, %v1983
  %v2085 = vsel %vm1403, %v1995, %v2009
  %v2086 = vsel %vm1403, %v1996, %v2010
  %v2087 = vsel %vm1403, %v1997, %v2011
  %v2088 = vsel %vm1403, %v2023, %v2037
  %v2089 = vsel %vm1403, %v2024, %v2038
  %v2090 = vsel %vm1403, %v2025, %v2039
  %v2091 = vsel %vm1403, %v2051, %v2065
  %v2092 = vsel %vm1403, %v2052, %v2066
  %v2093 = vsel %vm1403, %v2053, %v2067
  %v2094 = vsel %vm1403, %v2079, 0
  %v2096 = vsel %vm1403, %v2080, 0
  %v2098 = vsel %vm1403, %v2081, 0
  %2100 = vmatprep.subr.mxu0 %v2083
  %2101 = vmatpush1.msra.mxu0 %v2082
  %2102 = vmatprep.subr.mxu0 %v2086
  %2103 = vmatpush1.msra.mxu0 %v2085
  %2104 = vmatprep.subr.mxu0 %v2089
  %2105 = vmatpush1.msra.mxu0 %v2088
  %2106 = vmatprep.subr.mxu0 %v2092
  %2107 = vmatpush1.msra.mxu0 %v2091
  %2108 = vmatprep.subr.mxu0 %v2096
  %2109 = vmatpush1.msra.mxu0 %v2094
  %2110 = vmatprep.subr.mxu0 0.0
  %2111 = vmatpush1.msra.mxu0 0.0
  %2112 = vmatprep.subr.mxu0 0.0
  %2113 = vmatpush1.msra.mxu0 0.0
  %2114 = vmatprep.subr.mxu0 0.0
  %2115 = vmatpush1.msra.mxu0 0.0
  %2116 = vmatprep.subr.mxu0 0.0
  %2117 = vmatpush1.msra.mxu0 0.0
  %2118 = vmatprep.subr.mxu0 0.0
  %2119 = vmatpush1.msra.mxu0 0.0
  %2120 = vmatprep.subr.mxu0 0.0
  %2121 = vmatpush1.msra.mxu0 0.0
  %2122 = vmatprep.subr.mxu0 0.0
  %2123 = vmatpush1.msra.mxu0 0.0
  %2124 = vmatprep.subr.mxu0 0.0
  %2125 = vmatpush1.msra.mxu0 0.0
  %2126 = vmatprep.subr.mxu0 0.0
  %2127 = vmatpush1.msra.mxu0 0.0
  %2128 = vmatprep.subr.mxu0 0.0
  %2129 = vmatpush1.msra.mxu0 0.0
  %2130 = vmatprep.subr.mxu0 0.0
  %2131 = vmatpush1.msra.mxu0 0.0
  %2132 = vmatprep.subr.mxu0 0.0
  %2133 = vmatpush1.msra.mxu0 0.0
  %2134 = vmatprep.subr.mxu0 0.0
  %2135 = vmatpush1.msra.mxu0 0.0
  %2136 = vmatprep.subr.mxu0 0.0
  %2137 = vmatpush1.msra.mxu0 0.0
  %2138 = vmatprep.subr.mxu0 0.0
  %2139 = vmatpush1.msra.mxu0 0.0
  %2140 = vmatprep.subr.mxu0 0.0
  %2141 = vmatpush1.msra.mxu0 0.0
  %2142 = vmatprep.subr.mxu0 0.0
  %2143 = vmatpush1.msra.mxu0 0.0
  %2144 = vmatprep.subr.mxu0 0.0
  %2145 = vmatpush1.msra.mxu0 0.0
  %2146 = vmatprep.subr.mxu0 0.0
  %2147 = vmatpush1.msra.mxu0 0.0
  %2148 = vmatprep.subr.mxu0 0.0
  %2149 = vmatpush1.msra.mxu0 0.0
  %2150 = vmatprep.subr.mxu0 0.0
  %2151 = vmatpush1.msra.mxu0 0.0
  %2152 = vmatprep.subr.mxu0 0.0
  %2153 = vmatpush1.msra.mxu0 0.0
  %2154 = vmatprep.subr.mxu0 0.0
  %2155 = vmatpush1.msra.mxu0 0.0
  %2156 = vmatprep.subr.mxu0 0.0
  %2157 = vmatpush1.msra.mxu0 0.0
  %2158 = vmatprep.subr.mxu0 0.0
  %2159 = vmatpush1.msra.mxu0 0.0
  %2160 = vmatprep.subr.mxu0 0.0
  %2161 = vmatpush1.msra.mxu0 0.0
  %2162 = vmatprep.subr.mxu0 0.0
  %2163 = vmatpush1.msra.mxu0 0.0
  %2164 = vmatprep.mubr.f32.mxu0 0.0
  %2165 = vmatmul.mubr.f32.gmra.mrb[0].mxu0 %v1547
  %v2166 = vpop.f32.mrb[0].mxu0
  %v2167 = vadd.f32 0.0, %v2166
  %v2168 = vpop.f32.mrb[0].mxu0
  %v2169 = vadd.f32 0.0, %v2168
  %2170 = vdwg.mxu0
  %2171 = vmatprep.subr.mxu0 0.0
  %2172 = vmatpush1.msra.mxu0 %v2084
  %2173 = vmatprep.subr.mxu0 0.0
  %2174 = vmatpush1.msra.mxu0 %v2087
  %2175 = vmatprep.subr.mxu0 0.0
  %2176 = vmatpush1.msra.mxu0 %v2090
  %2177 = vmatprep.subr.mxu0 0.0
  %2178 = vmatpush1.msra.mxu0 %v2093
  %2179 = vmatprep.subr.mxu0 0.0
  %2180 = vmatpush1.msra.mxu0 %v2098
  %2181 = vmatprep.subr.mxu0 0.0
  %2182 = vmatpush1.msra.mxu0 0.0
  %2183 = vmatprep.subr.mxu0 0.0
  %2184 = vmatpush1.msra.mxu0 0.0
  %2185 = vmatprep.subr.mxu0 0.0
  %2186 = vmatpush1.msra.mxu0 0.0
  %2187 = vmatprep.subr.mxu0 0.0
  %2188 = vmatpush1.msra.mxu0 0.0
  %2189 = vmatprep.subr.mxu0 0.0
  %2190 = vmatpush1.msra.mxu0 0.0
  %2191 = vmatprep.subr.mxu0 0.0
  %2192 = vmatpush1.msra.mxu0 0.0
  %2193 = vmatprep.subr.mxu0 0.0
  %2194 = vmatpush1.msra.mxu0 0.0
  %2195 = vmatprep.subr.mxu0 0.0
  %2196 = vmatpush1.msra.mxu0 0.0
  %2197 = vmatprep.subr.mxu0 0.0
  %2198 = vmatpush1.msra.mxu0 0.0
  %2199 = vmatprep.subr.mxu0 0.0
  %2200 = vmatpush1.msra.mxu0 0.0
  %2201 = vmatprep.subr.mxu0 0.0
  %2202 = vmatpush1.msra.mxu0 0.0
  %2203 = vmatprep.subr.mxu0 0.0
  %2204 = vmatpush1.msra.mxu0 0.0
  %2205 = vmatprep.subr.mxu0 0.0
  %2206 = vmatpush1.msra.mxu0 0.0
  %2207 = vmatprep.subr.mxu0 0.0
  %2208 = vmatpush1.msra.mxu0 0.0
  %2209 = vmatprep.subr.mxu0 0.0
  %2210 = vmatpush1.msra.mxu0 0.0
  %2211 = vmatprep.subr.mxu0 0.0
  %2212 = vmatpush1.msra.mxu0 0.0
  %2213 = vmatprep.subr.mxu0 0.0
  %2214 = vmatpush1.msra.mxu0 0.0
  %2215 = vmatprep.subr.mxu0 0.0
  %2216 = vmatpush1.msra.mxu0 0.0
  %2217 = vmatprep.subr.mxu0 0.0
  %2218 = vmatpush1.msra.mxu0 0.0
  %2219 = vmatprep.subr.mxu0 0.0
  %2220 = vmatpush1.msra.mxu0 0.0
  %2221 = vmatprep.subr.mxu0 0.0
  %2222 = vmatpush1.msra.mxu0 0.0
  %2223 = vmatprep.subr.mxu0 0.0
  %2224 = vmatpush1.msra.mxu0 0.0
  %2225 = vmatprep.subr.mxu0 0.0
  %2226 = vmatpush1.msra.mxu0 0.0
  %2227 = vmatprep.subr.mxu0 0.0
  %2228 = vmatpush1.msra.mxu0 0.0
  %2229 = vmatprep.subr.mxu0 0.0
  %2230 = vmatpush1.msra.mxu0 0.0
  %2231 = vmatprep.subr.mxu0 0.0
  %2232 = vmatpush1.msra.mxu0 0.0
  %2233 = vmatprep.subr.mxu0 0.0
  %2234 = vmatpush1.msra.mxu0 0.0
  %2235 = vmatprep.mubr.f32.mxu0 0.0
  %2236 = vmatmul.mubr.f32.gmra.mrb[0].mxu0 %v1547
  %v2237 = vpop.f32.mrb[0].mxu0
  %v2238 = vadd.f32 0.0, %v2237
  %v2239 = vpop.f32.mrb[0].mxu0
  %2240 = vdwg.mxu0
  %v2241 = vsel %vm1403, %v1955, 0
  %v2243 = vsel %vm1403, %v1956, 0
  %v2245 = vsel %vm1403, %v1957, 0
  %2247 = vmatprep.subr.mxu0 %v1959
  %2248 = vmatpush1.msra.mxu0 %v1958
  %2249 = vmatprep.subr.mxu0 %v1962
  %2250 = vmatpush1.msra.mxu0 %v1961
  %2251 = vmatprep.subr.mxu0 %v1965
  %2252 = vmatpush1.msra.mxu0 %v1964
  %2253 = vmatprep.subr.mxu0 %v1968
  %2254 = vmatpush1.msra.mxu0 %v1967
  %2255 = vmatprep.subr.mxu0 %v2243
  %2256 = vmatpush1.msra.mxu0 %v2241
  %2257 = vmatprep.subr.mxu0 0.0
  %2258 = vmatpush1.msra.mxu0 0.0
  %2259 = vmatprep.subr.mxu0 0.0
  %2260 = vmatpush1.msra.mxu0 0.0
  %2261 = vmatprep.subr.mxu0 0.0
  %2262 = vmatpush1.msra.mxu0 0.0
  %2263 = vmatprep.subr.mxu0 0.0
  %2264 = vmatpush1.msra.mxu0 0.0
  %2265 = vmatprep.subr.mxu0 0.0
  %2266 = vmatpush1.msra.mxu0 0.0
  %2267 = vmatprep.subr.mxu0 0.0
  %2268 = vmatpush1.msra.mxu0 0.0
  %2269 = vmatprep.subr.mxu0 0.0
  %2270 = vmatpush1.msra.mxu0 0.0
  %2271 = vmatprep.subr.mxu0 0.0
  %2272 = vmatpush1.msra.mxu0 0.0
  %2273 = vmatprep.subr.mxu0 0.0
  %2274 = vmatpush1.msra.mxu0 0.0
  %2275 = vmatprep.subr.mxu0 0.0
  %2276 = vmatpush1.msra.mxu0 0.0
  %2277 = vmatprep.subr.mxu0 0.0
  %2278 = vmatpush1.msra.mxu0 0.0
  %2279 = vmatprep.subr.mxu0 0.0
  %2280 = vmatpush1.msra.mxu0 0.0
  %2281 = vmatprep.subr.mxu0 0.0
  %2282 = vmatpush1.msra.mxu0 0.0
  %2283 = vmatprep.subr.mxu0 0.0
  %2284 = vmatpush1.msra.mxu0 0.0
  %2285 = vmatprep.subr.mxu0 0.0
  %2286 = vmatpush1.msra.mxu0 0.0
  %2287 = vmatprep.subr.mxu0 0.0
  %2288 = vmatpush1.msra.mxu0 0.0
  %2289 = vmatprep.subr.mxu0 0.0
  %2290 = vmatpush1.msra.mxu0 0.0
  %2291 = vmatprep.subr.mxu0 0.0
  %2292 = vmatpush1.msra.mxu0 0.0
  %2293 = vmatprep.subr.mxu0 0.0
  %2294 = vmatpush1.msra.mxu0 0.0
  %2295 = vmatprep.subr.mxu0 0.0
  %2296 = vmatpush1.msra.mxu0 0.0
  %2297 = vmatprep.subr.mxu0 0.0
  %2298 = vmatpush1.msra.mxu0 0.0
  %2299 = vmatprep.subr.mxu0 0.0
  %2300 = vmatpush1.msra.mxu0 0.0
  %2301 = vmatprep.subr.mxu0 0.0
  %2302 = vmatpush1.msra.mxu0 0.0
  %2303 = vmatprep.subr.mxu0 0.0
  %2304 = vmatpush1.msra.mxu0 0.0
  %2305 = vmatprep.subr.mxu0 0.0
  %2306 = vmatpush1.msra.mxu0 0.0
  %2307 = vmatprep.subr.mxu0 0.0
  %2308 = vmatpush1.msra.mxu0 0.0
  %2309 = vmatprep.subr.mxu0 0.0
  %2310 = vmatpush1.msra.mxu0 0.0
  %2311 = vmatprep.mubr.f32.mxu0 0.0
  %2312 = vmatmul.mubr.f32.gmra.mrb[0].mxu0 %v1697
  %v2313 = vpop.f32.mrb[0].mxu0
  %v2314 = vadd.f32 %v2167, %v2313
  %v2315 = vpop.f32.mrb[0].mxu0
  %v2316 = vadd.f32 %v2169, %v2315
  %2317 = vdwg.mxu0
  %2318 = vmatprep.subr.mxu0 0.0
  %2319 = vmatpush1.msra.mxu0 %v1960
  %2320 = vmatprep.subr.mxu0 0.0
  %2321 = vmatpush1.msra.mxu0 %v1963
  %2322 = vmatprep.subr.mxu0 0.0
  %2323 = vmatpush1.msra.mxu0 %v1966
  %2324 = vmatprep.subr.mxu0 0.0
  %2325 = vmatpush1.msra.mxu0 %v1969
  %2326 = vmatprep.subr.mxu0 0.0
  %2327 = vmatpush1.msra.mxu0 %v2245
  %2328 = vmatprep.subr.mxu0 0.0
  %2329 = vmatpush1.msra.mxu0 0.0
  %2330 = vmatprep.subr.mxu0 0.0
  %2331 = vmatpush1.msra.mxu0 0.0
  %2332 = vmatprep.subr.mxu0 0.0
  %2333 = vmatpush1.msra.mxu0 0.0
  %2334 = vmatprep.subr.mxu0 0.0
  %2335 = vmatpush1.msra.mxu0 0.0
  %2336 = vmatprep.subr.mxu0 0.0
  %2337 = vmatpush1.msra.mxu0 0.0
  %2338 = vmatprep.subr.mxu0 0.0
  %2339 = vmatpush1.msra.mxu0 0.0
  %2340 = vmatprep.subr.mxu0 0.0
  %2341 = vmatpush1.msra.mxu0 0.0
  %2342 = vmatprep.subr.mxu0 0.0
  %2343 = vmatpush1.msra.mxu0 0.0
  %2344 = vmatprep.subr.mxu0 0.0
  %2345 = vmatpush1.msra.mxu0 0.0
  %2346 = vmatprep.subr.mxu0 0.0
  %2347 = vmatpush1.msra.mxu0 0.0
  %2348 = vmatprep.subr.mxu0 0.0
  %2349 = vmatpush1.msra.mxu0 0.0
  %2350 = vmatprep.subr.mxu0 0.0
  %2351 = vmatpush1.msra.mxu0 0.0
  %2352 = vmatprep.subr.mxu0 0.0
  %2353 = vmatpush1.msra.mxu0 0.0
  %2354 = vmatprep.subr.mxu0 0.0
  %2355 = vmatpush1.msra.mxu0 0.0
  %2356 = vmatprep.subr.mxu0 0.0
  %2357 = vmatpush1.msra.mxu0 0.0
  %2358 = vmatprep.subr.mxu0 0.0
  %2359 = vmatpush1.msra.mxu0 0.0
  %2360 = vmatprep.subr.mxu0 0.0
  %2361 = vmatpush1.msra.mxu0 0.0
  %2362 = vmatprep.subr.mxu0 0.0
  %2363 = vmatpush1.msra.mxu0 0.0
  %2364 = vmatprep.subr.mxu0 0.0
  %2365 = vmatpush1.msra.mxu0 0.0
  %2366 = vmatprep.subr.mxu0 0.0
  %2367 = vmatpush1.msra.mxu0 0.0
  %2368 = vmatprep.subr.mxu0 0.0
  %2369 = vmatpush1.msra.mxu0 0.0
  %2370 = vmatprep.subr.mxu0 0.0
  %2371 = vmatpush1.msra.mxu0 0.0
  %2372 = vmatprep.subr.mxu0 0.0
  %2373 = vmatpush1.msra.mxu0 0.0
  %2374 = vmatprep.subr.mxu0 0.0
  %2375 = vmatpush1.msra.mxu0 0.0
  %2376 = vmatprep.subr.mxu0 0.0
  %2377 = vmatpush1.msra.mxu0 0.0
  %2378 = vmatprep.subr.mxu0 0.0
  %2379 = vmatpush1.msra.mxu0 0.0
  %2380 = vmatprep.subr.mxu0 0.0
  %2381 = vmatpush1.msra.mxu0 0.0
  %2382 = vmatprep.mubr.f32.mxu0 0.0
  %2383 = vmatmul.mubr.f32.gmra.mrb[0].mxu0 %v1697
  %v2384 = vpop.f32.mrb[0].mxu0
  %v2385 = vadd.f32 %v2238, %v2384
  %v2386 = vpop.f32.mrb[0].mxu0
  %2387 = vdwg.mxu0
  %v2388 = vld [vmem:[%s8] sm:$0xf]
  %v2389 = vld [vmem:[%s9] sm:$0xf]
  %v2391 = vlaneseq
  %v2392 = vshrl.u32 %v2391, 7
  %v2393 = vsub.s32 0, %v2392
  %v2394 = vrot.slane %v1276, %v2393
  %v2395 = vlaneseq
  %v2396 = vshrl.u32 %v2395, 7
  %v2397 = vsub.s32 1, %v2396
  %v2398 = vrot.slane %v1276, %v2397
  %v2399 = vlaneseq
  %v2400 = vshrl.u32 %v2399, 7
  %v2401 = vsub.s32 2, %v2400
  %v2402 = vrot.slane %v1276, %v2401
  %v2406 = vmul.f32 %v1772, %v2394
  %v2407 = vmul.f32 %v1774, %v2398
  %v2408 = vmul.f32 %v1843, %v2402
  %v2409 = vsel %vm1403, %v2406, 0.0
  %v2410 = vsel %vm1403, %v2407, 0.0
  %v2411 = vadd.f32 %v2409, %v2410
  %v2412 = vsel %vm1403, %v2408, 0.0
  %v2413 = vadd.f32 %v2411, %v2412
  %2414 = vadd.xlane.f32.xlu0 %v2413
  %v2415 = vpop.xlane.xlu0 %2414
  %v2416 = vmul.f32 %v2314, %v2394
  %v2417 = vmul.f32 %v2316, %v2398
  %v2418 = vmul.f32 %v2385, %v2402
  %v2419 = vsel %vm1403, %v2416, 0.0
  %v2420 = vsel %vm1403, %v2417, 0.0
  %v2421 = vadd.f32 %v2419, %v2420
  %v2422 = vsel %vm1403, %v2418, 0.0
  %v2423 = vadd.f32 %v2421, %v2422
  %2424 = vadd.xlane.f32.xlu0 %v2423
  %v2425 = vpop.xlane.xlu0 %2424
  %v2426 = vadd.f32 %v2415, %v2425
  %v2427 = vmul.f32 %v2426, 0.001953125
  %v2428 = vsub.f32 %v1772, %v2427
  %v2429 = vsub.f32 %v1774, %v2427
  %v2430 = vsub.f32 %v1843, %v2427
  %v2431 = vmul.f32 %v2428, %v2394
  %v2432 = vmul.f32 %v2429, %v2398
  %v2433 = vmul.f32 %v2430, %v2402
  %v2434 = vmul.f32 %v2431, %v2431
  %v2435 = vmul.f32 %v2432, %v2432
  %v2436 = vmul.f32 %v2433, %v2433
  %v2437 = vsel %vm1403, %v2434, 0.0
  %v2438 = vsel %vm1403, %v2435, 0.0
  %v2439 = vadd.f32 %v2437, %v2438
  %v2440 = vsel %vm1403, %v2436, 0.0
  %v2441 = vadd.f32 %v2439, %v2440
  %2442 = vadd.xlane.f32.xlu0 %v2441
  %v2443 = vpop.xlane.xlu0 %2442
  %v2444 = vsub.f32 %v2314, %v2427
  %v2445 = vsub.f32 %v2316, %v2427
  %v2446 = vsub.f32 %v2385, %v2427
  %v2447 = vmul.f32 %v2444, %v2394
  %v2448 = vmul.f32 %v2445, %v2398
  %v2449 = vmul.f32 %v2446, %v2402
  %v2450 = vmul.f32 %v2447, %v2447
  %v2451 = vmul.f32 %v2448, %v2448
  %v2452 = vmul.f32 %v2449, %v2449
  %v2453 = vsel %vm1403, %v2450, 0.0
  %v2454 = vsel %vm1403, %v2451, 0.0
  %v2455 = vadd.f32 %v2453, %v2454
  %v2456 = vsel %vm1403, %v2452, 0.0
  %v2457 = vadd.f32 %v2455, %v2456
  %2458 = vadd.xlane.f32.xlu0 %v2457
  %v2459 = vpop.xlane.xlu0 %2458
  %v2460 = vadd.f32 %v2443, %v2459
  %v2461 = vmul.f32 %v2460, 0.001953125
  %v2462 = vadd.f32 %v2461, 1e-05
  %v2463 = vrsqrt.pop %v2462
  %v2464 = vmul.f32 %v2463, %v2388
  %v2465 = vmul.f32 %v2427, %v2464
  %v2466 = vsub.f32 %v2389, %v2465
  %2468 = vset.pattern.permute.xlu0 0
  %2469 = vperm.xlu0 %2468, %v2464
  %v2470 = vpop.permute.xlu0 %2469
  %v2472 = vmul.f32 %v1772, %v2470
  %v2473 = vmul.f32 %v1774, %v2470
  %v2474 = vmul.f32 %v1843, %v2470
  %2476 = vset.pattern.permute.xlu0 0
  %2477 = vperm.xlu0 %2476, %v2466
  %v2478 = vpop.permute.xlu0 %2477
  %v2480 = vadd.f32 %v2472, %v2478
  %v2481 = vadd.f32 %v2473, %v2478
  %v2482 = vadd.f32 %v2474, %v2478
  %v2483 = vmax.f32 %v2480, 0.0
  %v2484 = vmax.f32 %v2481, 0.0
  %v2485 = vmax.f32 %v2482, 0.0
  %v2486 = vmul.f32 %v2483, %v2394
  %v2487 = vmul.f32 %v2484, %v2398
  %v2488 = vmul.f32 %v2485, %v2402
  %v2489 = vmul.f32 %v2314, %v2470
  %v2490 = vmul.f32 %v2316, %v2470
  %v2491 = vmul.f32 %v2385, %v2470
  %v2492 = vadd.f32 %v2489, %v2478
  %v2493 = vadd.f32 %v2490, %v2478
  %v2494 = vadd.f32 %v2491, %v2478
  %v2495 = vmax.f32 %v2492, 0.0
  %v2496 = vmax.f32 %v2493, 0.0
  %v2497 = vmax.f32 %v2494, 0.0
  %v2498 = vmul.f32 %v2495, %v2394
  %v2499 = vmul.f32 %v2496, %v2398
  %v2500 = vmul.f32 %v2497, %v2402
  %v2504 = vrot.slane %v2486, 4
  %v2505 = vrot.slane %v2487, 4
  %v2506 = vrot.slane %v2488, 4
  %2507 = vrot.lane.b32.xlu0 %v2504, 127
  %v2508 = vpop.permute.xlu0 %2507
  %2509 = vrot.lane.b32.xlu0 %v2505, 127
  %v2510 = vpop.permute.xlu0 %2509
  %2511 = vrot.lane.b32.xlu0 %v2506, 127
  %v2512 = vpop.permute.xlu0 %2511
  %v2513 = vsel %vm1294, %v2508, %v2510
  %v2514 = vsel %vm1294, %v2510, %v2512
  %2518 = vrot.lane.b32.xlu0 %v2486, 126
  %v2519 = vpop.permute.xlu0 %2518
  %2520 = vrot.lane.b32.xlu0 %v2487, 126
  %v2521 = vpop.permute.xlu0 %2520
  %2522 = vrot.lane.b32.xlu0 %v2488, 126
  %v2523 = vpop.permute.xlu0 %2522
  %v2524 = vsel %vm1309, %v2519, %v2521
  %v2525 = vsel %vm1309, %v2521, %v2523
  %2529 = vrot.lane.b32.xlu0 %v2504, 110
  %v2530 = vpop.permute.xlu0 %2529
  %2531 = vrot.lane.b32.xlu0 %v2505, 110
  %v2532 = vpop.permute.xlu0 %2531
  %2533 = vrot.lane.b32.xlu0 %v2506, 110
  %v2534 = vpop.permute.xlu0 %2533
  %v2535 = vsel %vm1324, %v2530, %v2532
  %v2536 = vsel %vm1324, %v2532, %v2534
  %2540 = vrot.lane.b32.xlu0 %v2486, 109
  %v2541 = vpop.permute.xlu0 %2540
  %2542 = vrot.lane.b32.xlu0 %v2487, 109
  %v2543 = vpop.permute.xlu0 %2542
  %2544 = vrot.lane.b32.xlu0 %v2488, 109
  %v2545 = vpop.permute.xlu0 %2544
  %v2546 = vsel %vm1339, %v2541, %v2543
  %v2547 = vsel %vm1339, %v2543, %v2545
  %2551 = vrot.lane.b32.xlu0 %v2504, 108
  %v2552 = vpop.permute.xlu0 %2551
  %2553 = vrot.lane.b32.xlu0 %v2505, 108
  %v2554 = vpop.permute.xlu0 %2553
  %2555 = vrot.lane.b32.xlu0 %v2506, 108
  %v2556 = vpop.permute.xlu0 %2555
  %v2557 = vsel %vm1354, %v2552, %v2554
  %v2558 = vsel %vm1354, %v2554, %v2556
  %2562 = vrot.lane.b32.xlu0 %v2486, 92
  %v2563 = vpop.permute.xlu0 %2562
  %2564 = vrot.lane.b32.xlu0 %v2487, 92
  %v2565 = vpop.permute.xlu0 %2564
  %2566 = vrot.lane.b32.xlu0 %v2488, 92
  %v2567 = vpop.permute.xlu0 %2566
  %v2568 = vsel %vm1369, %v2563, %v2565
  %v2569 = vsel %vm1369, %v2565, %v2567
  %2573 = vrot.lane.b32.xlu0 %v2504, 91
  %v2574 = vpop.permute.xlu0 %2573
  %2575 = vrot.lane.b32.xlu0 %v2505, 91
  %v2576 = vpop.permute.xlu0 %2575
  %2577 = vrot.lane.b32.xlu0 %v2506, 91
  %v2578 = vpop.permute.xlu0 %2577
  %v2579 = vsel %vm1384, %v2574, %v2576
  %v2580 = vsel %vm1384, %v2576, %v2578
  %2584 = vrot.lane.b32.xlu0 %v2486, 90
  %v2585 = vpop.permute.xlu0 %2584
  %2586 = vrot.lane.b32.xlu0 %v2487, 90
  %v2587 = vpop.permute.xlu0 %2586
  %2588 = vrot.lane.b32.xlu0 %v2488, 90
  %v2589 = vpop.permute.xlu0 %2588
  %v2590 = vsel %vm1399, %v2585, %v2587
  %v2591 = vsel %vm1399, %v2587, %v2589
  %v2592 = vsel %vm1403, %v2486, %v2513
  %v2593 = vsel %vm1403, %v2487, %v2514
  %v2594 = vsel %vm1403, %v2488, %v2512
  %v2595 = vsel %vm1403, %v2524, %v2535
  %v2596 = vsel %vm1403, %v2525, %v2536
  %v2597 = vsel %vm1403, %v2523, %v2534
  %v2598 = vsel %vm1403, %v2546, %v2557
  %v2599 = vsel %vm1403, %v2547, %v2558
  %v2600 = vsel %vm1403, %v2545, %v2556
  %v2601 = vsel %vm1403, %v2568, %v2579
  %v2602 = vsel %vm1403, %v2569, %v2580
  %v2603 = vsel %vm1403, %v2567, %v2578
  %v2605 = vsel %vm1545, %v1275, 0
  %v2607 = vsel %vm1403, %v2590, 0
  %v2609 = vsel %vm1403, %v2591, 0
  %v2611 = vsel %vm1403, %v2589, 0
  %2613 = vmatprep.subr.mxu0 %v2593
  %2614 = vmatpush1.msra.mxu0 %v2592
  %2615 = vmatprep.subr.mxu0 %v2596
  %2616 = vmatpush1.msra.mxu0 %v2595
  %2617 = vmatprep.subr.mxu0 %v2599
  %2618 = vmatpush1.msra.mxu0 %v2598
  %2619 = vmatprep.subr.mxu0 %v2602
  %2620 = vmatpush1.msra.mxu0 %v2601
  %2621 = vmatprep.subr.mxu0 %v2609
  %2622 = vmatpush1.msra.mxu0 %v2607
  %2623 = vmatprep.subr.mxu0 0.0
  %2624 = vmatpush1.msra.mxu0 0.0
  %2625 = vmatprep.subr.mxu0 0.0
  %2626 = vmatpush1.msra.mxu0 0.0
  %2627 = vmatprep.subr.mxu0 0.0
  %2628 = vmatpush1.msra.mxu0 0.0
  %2629 = vmatprep.subr.mxu0 0.0
  %2630 = vmatpush1.msra.mxu0 0.0
  %2631 = vmatprep.subr.mxu0 0.0
  %2632 = vmatpush1.msra.mxu0 0.0
  %2633 = vmatprep.subr.mxu0 0.0
  %2634 = vmatpush1.msra.mxu0 0.0
  %2635 = vmatprep.subr.mxu0 0.0
  %2636 = vmatpush1.msra.mxu0 0.0
  %2637 = vmatprep.subr.mxu0 0.0
  %2638 = vmatpush1.msra.mxu0 0.0
  %2639 = vmatprep.subr.mxu0 0.0
  %2640 = vmatpush1.msra.mxu0 0.0
  %2641 = vmatprep.subr.mxu0 0.0
  %2642 = vmatpush1.msra.mxu0 0.0
  %2643 = vmatprep.subr.mxu0 0.0
  %2644 = vmatpush1.msra.mxu0 0.0
  %2645 = vmatprep.subr.mxu0 0.0
  %2646 = vmatpush1.msra.mxu0 0.0
  %2647 = vmatprep.subr.mxu0 0.0
  %2648 = vmatpush1.msra.mxu0 0.0
  %2649 = vmatprep.subr.mxu0 0.0
  %2650 = vmatpush1.msra.mxu0 0.0
  %2651 = vmatprep.subr.mxu0 0.0
  %2652 = vmatpush1.msra.mxu0 0.0
  %2653 = vmatprep.subr.mxu0 0.0
  %2654 = vmatpush1.msra.mxu0 0.0
  %2655 = vmatprep.subr.mxu0 0.0
  %2656 = vmatpush1.msra.mxu0 0.0
  %2657 = vmatprep.subr.mxu0 0.0
  %2658 = vmatpush1.msra.mxu0 0.0
  %2659 = vmatprep.subr.mxu0 0.0
  %2660 = vmatpush1.msra.mxu0 0.0
  %2661 = vmatprep.subr.mxu0 0.0
  %2662 = vmatpush1.msra.mxu0 0.0
  %2663 = vmatprep.subr.mxu0 0.0
  %2664 = vmatpush1.msra.mxu0 0.0
  %2665 = vmatprep.subr.mxu0 0.0
  %2666 = vmatpush1.msra.mxu0 0.0
  %2667 = vmatprep.subr.mxu0 0.0
  %2668 = vmatpush1.msra.mxu0 0.0
  %2669 = vmatprep.subr.mxu0 0.0
  %2670 = vmatpush1.msra.mxu0 0.0
  %2671 = vmatprep.subr.mxu0 0.0
  %2672 = vmatpush1.msra.mxu0 0.0
  %2673 = vmatprep.subr.mxu0 0.0
  %2674 = vmatpush1.msra.mxu0 0.0
  %2675 = vmatprep.subr.mxu0 0.0
  %2676 = vmatpush1.msra.mxu0 0.0
  %2677 = vmatprep.mubr.f32.mxu0 0.0
  %2678 = vmatmul.mubr.f32.gmra.mrb[0].mxu0 %v2605
  %v2679 = vpop.f32.mrb[0].mxu0
  %v2680 = vadd.f32 0.0, %v2679
  %v2681 = vpop.f32.mrb[0].mxu0
  %v2682 = vadd.f32 0.0, %v2681
  %2683 = vdwg.mxu0
  %2684 = vmatprep.subr.mxu0 0.0
  %2685 = vmatpush1.msra.mxu0 %v2594
  %2686 = vmatprep.subr.mxu0 0.0
  %2687 = vmatpush1.msra.mxu0 %v2597
  %2688 = vmatprep.subr.mxu0 0.0
  %2689 = vmatpush1.msra.mxu0 %v2600
  %2690 = vmatprep.subr.mxu0 0.0
  %2691 = vmatpush1.msra.mxu0 %v2603
  %2692 = vmatprep.subr.mxu0 0.0
  %2693 = vmatpush1.msra.mxu0 %v2611
  %2694 = vmatprep.subr.mxu0 0.0
  %2695 = vmatpush1.msra.mxu0 0.0
  %2696 = vmatprep.subr.mxu0 0.0
  %2697 = vmatpush1.msra.mxu0 0.0
  %2698 = vmatprep.subr.mxu0 0.0
  %2699 = vmatpush1.msra.mxu0 0.0
  %2700 = vmatprep.subr.mxu0 0.0
  %2701 = vmatpush1.msra.mxu0 0.0
  %2702 = vmatprep.subr.mxu0 0.0
  %2703 = vmatpush1.msra.mxu0 0.0
  %2704 = vmatprep.subr.mxu0 0.0
  %2705 = vmatpush1.msra.mxu0 0.0
  %2706 = vmatprep.subr.mxu0 0.0
  %2707 = vmatpush1.msra.mxu0 0.0
  %2708 = vmatprep.subr.mxu0 0.0
  %2709 = vmatpush1.msra.mxu0 0.0
  %2710 = vmatprep.subr.mxu0 0.0
  %2711 = vmatpush1.msra.mxu0 0.0
  %2712 = vmatprep.subr.mxu0 0.0
  %2713 = vmatpush1.msra.mxu0 0.0
  %2714 = vmatprep.subr.mxu0 0.0
  %2715 = vmatpush1.msra.mxu0 0.0
  %2716 = vmatprep.subr.mxu0 0.0
  %2717 = vmatpush1.msra.mxu0 0.0
  %2718 = vmatprep.subr.mxu0 0.0
  %2719 = vmatpush1.msra.mxu0 0.0
  %2720 = vmatprep.subr.mxu0 0.0
  %2721 = vmatpush1.msra.mxu0 0.0
  %2722 = vmatprep.subr.mxu0 0.0
  %2723 = vmatpush1.msra.mxu0 0.0
  %2724 = vmatprep.subr.mxu0 0.0
  %2725 = vmatpush1.msra.mxu0 0.0
  %2726 = vmatprep.subr.mxu0 0.0
  %2727 = vmatpush1.msra.mxu0 0.0
  %2728 = vmatprep.subr.mxu0 0.0
  %2729 = vmatpush1.msra.mxu0 0.0
  %2730 = vmatprep.subr.mxu0 0.0
  %2731 = vmatpush1.msra.mxu0 0.0
  %2732 = vmatprep.subr.mxu0 0.0
  %2733 = vmatpush1.msra.mxu0 0.0
  %2734 = vmatprep.subr.mxu0 0.0
  %2735 = vmatpush1.msra.mxu0 0.0
  %2736 = vmatprep.subr.mxu0 0.0
  %2737 = vmatpush1.msra.mxu0 0.0
  %2738 = vmatprep.subr.mxu0 0.0
  %2739 = vmatpush1.msra.mxu0 0.0
  %2740 = vmatprep.subr.mxu0 0.0
  %2741 = vmatpush1.msra.mxu0 0.0
  %2742 = vmatprep.subr.mxu0 0.0
  %2743 = vmatpush1.msra.mxu0 0.0
  %2744 = vmatprep.subr.mxu0 0.0
  %2745 = vmatpush1.msra.mxu0 0.0
  %2746 = vmatprep.subr.mxu0 0.0
  %2747 = vmatpush1.msra.mxu0 0.0
  %2748 = vmatprep.mubr.f32.mxu0 0.0
  %2749 = vmatmul.mubr.f32.gmra.mrb[0].mxu0 %v2605
  %v2750 = vpop.f32.mrb[0].mxu0
  %v2751 = vadd.f32 0.0, %v2750
  %v2752 = vpop.f32.mrb[0].mxu0
  %2753 = vdwg.mxu0
  %v2757 = vrot.slane %v2498, 4
  %v2758 = vrot.slane %v2499, 4
  %v2759 = vrot.slane %v2500, 4
  %2760 = vrot.lane.b32.xlu0 %v2757, 127
  %v2761 = vpop.permute.xlu0 %2760
  %2762 = vrot.lane.b32.xlu0 %v2758, 127
  %v2763 = vpop.permute.xlu0 %2762
  %2764 = vrot.lane.b32.xlu0 %v2759, 127
  %v2765 = vpop.permute.xlu0 %2764
  %v2766 = vsel %vm1294, %v2761, %v2763
  %v2767 = vsel %vm1294, %v2763, %v2765
  %2771 = vrot.lane.b32.xlu0 %v2498, 126
  %v2772 = vpop.permute.xlu0 %2771
  %2773 = vrot.lane.b32.xlu0 %v2499, 126
  %v2774 = vpop.permute.xlu0 %2773
  %2775 = vrot.lane.b32.xlu0 %v2500, 126
  %v2776 = vpop.permute.xlu0 %2775
  %v2777 = vsel %vm1309, %v2772, %v2774
  %v2778 = vsel %vm1309, %v2774, %v2776
  %2782 = vrot.lane.b32.xlu0 %v2757, 110
  %v2783 = vpop.permute.xlu0 %2782
  %2784 = vrot.lane.b32.xlu0 %v2758, 110
  %v2785 = vpop.permute.xlu0 %2784
  %2786 = vrot.lane.b32.xlu0 %v2759, 110
  %v2787 = vpop.permute.xlu0 %2786
  %v2788 = vsel %vm1324, %v2783, %v2785
  %v2789 = vsel %vm1324, %v2785, %v2787
  %2793 = vrot.lane.b32.xlu0 %v2498, 109
  %v2794 = vpop.permute.xlu0 %2793
  %2795 = vrot.lane.b32.xlu0 %v2499, 109
  %v2796 = vpop.permute.xlu0 %2795
  %2797 = vrot.lane.b32.xlu0 %v2500, 109
  %v2798 = vpop.permute.xlu0 %2797
  %v2799 = vsel %vm1339, %v2794, %v2796
  %v2800 = vsel %vm1339, %v2796, %v2798
  %2804 = vrot.lane.b32.xlu0 %v2757, 108
  %v2805 = vpop.permute.xlu0 %2804
  %2806 = vrot.lane.b32.xlu0 %v2758, 108
  %v2807 = vpop.permute.xlu0 %2806
  %2808 = vrot.lane.b32.xlu0 %v2759, 108
  %v2809 = vpop.permute.xlu0 %2808
  %v2810 = vsel %vm1354, %v2805, %v2807
  %v2811 = vsel %vm1354, %v2807, %v2809
  %2815 = vrot.lane.b32.xlu0 %v2498, 92
  %v2816 = vpop.permute.xlu0 %2815
  %2817 = vrot.lane.b32.xlu0 %v2499, 92
  %v2818 = vpop.permute.xlu0 %2817
  %2819 = vrot.lane.b32.xlu0 %v2500, 92
  %v2820 = vpop.permute.xlu0 %2819
  %v2821 = vsel %vm1369, %v2816, %v2818
  %v2822 = vsel %vm1369, %v2818, %v2820
  %2826 = vrot.lane.b32.xlu0 %v2757, 91
  %v2827 = vpop.permute.xlu0 %2826
  %2828 = vrot.lane.b32.xlu0 %v2758, 91
  %v2829 = vpop.permute.xlu0 %2828
  %2830 = vrot.lane.b32.xlu0 %v2759, 91
  %v2831 = vpop.permute.xlu0 %2830
  %v2832 = vsel %vm1384, %v2827, %v2829
  %v2833 = vsel %vm1384, %v2829, %v2831
  %2837 = vrot.lane.b32.xlu0 %v2498, 90
  %v2838 = vpop.permute.xlu0 %2837
  %2839 = vrot.lane.b32.xlu0 %v2499, 90
  %v2840 = vpop.permute.xlu0 %2839
  %2841 = vrot.lane.b32.xlu0 %v2500, 90
  %v2842 = vpop.permute.xlu0 %2841
  %v2843 = vsel %vm1399, %v2838, %v2840
  %v2844 = vsel %vm1399, %v2840, %v2842
  %v2845 = vsel %vm1403, %v2498, %v2766
  %v2846 = vsel %vm1403, %v2499, %v2767
  %v2847 = vsel %vm1403, %v2500, %v2765
  %v2848 = vsel %vm1403, %v2777, %v2788
  %v2849 = vsel %vm1403, %v2778, %v2789
  %v2850 = vsel %vm1403, %v2776, %v2787
  %v2851 = vsel %vm1403, %v2799, %v2810
  %v2852 = vsel %vm1403, %v2800, %v2811
  %v2853 = vsel %vm1403, %v2798, %v2809
  %v2854 = vsel %vm1403, %v2821, %v2832
  %v2855 = vsel %vm1403, %v2822, %v2833
  %v2856 = vsel %vm1403, %v2820, %v2831
  %v2857 = vsel %vm1403, %v2843, 0
  %v2859 = vsel %vm1403, %v2844, 0
  %v2861 = vsel %vm1403, %v2842, 0
  %2863 = vmatprep.subr.mxu0 %v2846
  %2864 = vmatpush1.msra.mxu0 %v2845
  %2865 = vmatprep.subr.mxu0 %v2849
  %2866 = vmatpush1.msra.mxu0 %v2848
  %2867 = vmatprep.subr.mxu0 %v2852
  %2868 = vmatpush1.msra.mxu0 %v2851
  %2869 = vmatprep.subr.mxu0 %v2855
  %2870 = vmatpush1.msra.mxu0 %v2854
  %2871 = vmatprep.subr.mxu0 %v2859
  %2872 = vmatpush1.msra.mxu0 %v2857
  %2873 = vmatprep.subr.mxu0 0.0
  %2874 = vmatpush1.msra.mxu0 0.0
  %2875 = vmatprep.subr.mxu0 0.0
  %2876 = vmatpush1.msra.mxu0 0.0
  %2877 = vmatprep.subr.mxu0 0.0
  %2878 = vmatpush1.msra.mxu0 0.0
  %2879 = vmatprep.subr.mxu0 0.0
  %2880 = vmatpush1.msra.mxu0 0.0
  %2881 = vmatprep.subr.mxu0 0.0
  %2882 = vmatpush1.msra.mxu0 0.0
  %2883 = vmatprep.subr.mxu0 0.0
  %2884 = vmatpush1.msra.mxu0 0.0
  %2885 = vmatprep.subr.mxu0 0.0
  %2886 = vmatpush1.msra.mxu0 0.0
  %2887 = vmatprep.subr.mxu0 0.0
  %2888 = vmatpush1.msra.mxu0 0.0
  %2889 = vmatprep.subr.mxu0 0.0
  %2890 = vmatpush1.msra.mxu0 0.0
  %2891 = vmatprep.subr.mxu0 0.0
  %2892 = vmatpush1.msra.mxu0 0.0
  %2893 = vmatprep.subr.mxu0 0.0
  %2894 = vmatpush1.msra.mxu0 0.0
  %2895 = vmatprep.subr.mxu0 0.0
  %2896 = vmatpush1.msra.mxu0 0.0
  %2897 = vmatprep.subr.mxu0 0.0
  %2898 = vmatpush1.msra.mxu0 0.0
  %2899 = vmatprep.subr.mxu0 0.0
  %2900 = vmatpush1.msra.mxu0 0.0
  %2901 = vmatprep.subr.mxu0 0.0
  %2902 = vmatpush1.msra.mxu0 0.0
  %2903 = vmatprep.subr.mxu0 0.0
  %2904 = vmatpush1.msra.mxu0 0.0
  %2905 = vmatprep.subr.mxu0 0.0
  %2906 = vmatpush1.msra.mxu0 0.0
  %2907 = vmatprep.subr.mxu0 0.0
  %2908 = vmatpush1.msra.mxu0 0.0
  %2909 = vmatprep.subr.mxu0 0.0
  %2910 = vmatpush1.msra.mxu0 0.0
  %2911 = vmatprep.subr.mxu0 0.0
  %2912 = vmatpush1.msra.mxu0 0.0
  %2913 = vmatprep.subr.mxu0 0.0
  %2914 = vmatpush1.msra.mxu0 0.0
  %2915 = vmatprep.subr.mxu0 0.0
  %2916 = vmatpush1.msra.mxu0 0.0
  %2917 = vmatprep.subr.mxu0 0.0
  %2918 = vmatpush1.msra.mxu0 0.0
  %2919 = vmatprep.subr.mxu0 0.0
  %2920 = vmatpush1.msra.mxu0 0.0
  %2921 = vmatprep.subr.mxu0 0.0
  %2922 = vmatpush1.msra.mxu0 0.0
  %2923 = vmatprep.subr.mxu0 0.0
  %2924 = vmatpush1.msra.mxu0 0.0
  %2925 = vmatprep.subr.mxu0 0.0
  %2926 = vmatpush1.msra.mxu0 0.0
  %2927 = vmatprep.mubr.f32.mxu0 0.0
  %2928 = vmatmul.mubr.f32.gmra.mrb[0].mxu0 %v2605
  %v2929 = vpop.f32.mrb[0].mxu0
  %v2930 = vadd.f32 0.0, %v2929
  %v2931 = vpop.f32.mrb[0].mxu0
  %v2932 = vadd.f32 0.0, %v2931
  %2933 = vdwg.mxu0
  %2934 = vmatprep.subr.mxu0 0.0
  %2935 = vmatpush1.msra.mxu0 %v2847
  %2936 = vmatprep.subr.mxu0 0.0
  %2937 = vmatpush1.msra.mxu0 %v2850
  %2938 = vmatprep.subr.mxu0 0.0
  %2939 = vmatpush1.msra.mxu0 %v2853
  %2940 = vmatprep.subr.mxu0 0.0
  %2941 = vmatpush1.msra.mxu0 %v2856
  %2942 = vmatprep.subr.mxu0 0.0
  %2943 = vmatpush1.msra.mxu0 %v2861
  %2944 = vmatprep.subr.mxu0 0.0
  %2945 = vmatpush1.msra.mxu0 0.0
  %2946 = vmatprep.subr.mxu0 0.0
  %2947 = vmatpush1.msra.mxu0 0.0
  %2948 = vmatprep.subr.mxu0 0.0
  %2949 = vmatpush1.msra.mxu0 0.0
  %2950 = vmatprep.subr.mxu0 0.0
  %2951 = vmatpush1.msra.mxu0 0.0
  %2952 = vmatprep.subr.mxu0 0.0
  %2953 = vmatpush1.msra.mxu0 0.0
  %2954 = vmatprep.subr.mxu0 0.0
  %2955 = vmatpush1.msra.mxu0 0.0
  %2956 = vmatprep.subr.mxu0 0.0
  %2957 = vmatpush1.msra.mxu0 0.0
  %2958 = vmatprep.subr.mxu0 0.0
  %2959 = vmatpush1.msra.mxu0 0.0
  %2960 = vmatprep.subr.mxu0 0.0
  %2961 = vmatpush1.msra.mxu0 0.0
  %2962 = vmatprep.subr.mxu0 0.0
  %2963 = vmatpush1.msra.mxu0 0.0
  %2964 = vmatprep.subr.mxu0 0.0
  %2965 = vmatpush1.msra.mxu0 0.0
  %2966 = vmatprep.subr.mxu0 0.0
  %2967 = vmatpush1.msra.mxu0 0.0
  %2968 = vmatprep.subr.mxu0 0.0
  %2969 = vmatpush1.msra.mxu0 0.0
  %2970 = vmatprep.subr.mxu0 0.0
  %2971 = vmatpush1.msra.mxu0 0.0
  %2972 = vmatprep.subr.mxu0 0.0
  %2973 = vmatpush1.msra.mxu0 0.0
  %2974 = vmatprep.subr.mxu0 0.0
  %2975 = vmatpush1.msra.mxu0 0.0
  %2976 = vmatprep.subr.mxu0 0.0
  %2977 = vmatpush1.msra.mxu0 0.0
  %2978 = vmatprep.subr.mxu0 0.0
  %2979 = vmatpush1.msra.mxu0 0.0
  %2980 = vmatprep.subr.mxu0 0.0
  %2981 = vmatpush1.msra.mxu0 0.0
  %2982 = vmatprep.subr.mxu0 0.0
  %2983 = vmatpush1.msra.mxu0 0.0
  %2984 = vmatprep.subr.mxu0 0.0
  %2985 = vmatpush1.msra.mxu0 0.0
  %2986 = vmatprep.subr.mxu0 0.0
  %2987 = vmatpush1.msra.mxu0 0.0
  %2988 = vmatprep.subr.mxu0 0.0
  %2989 = vmatpush1.msra.mxu0 0.0
  %2990 = vmatprep.subr.mxu0 0.0
  %2991 = vmatpush1.msra.mxu0 0.0
  %2992 = vmatprep.subr.mxu0 0.0
  %2993 = vmatpush1.msra.mxu0 0.0
  %2994 = vmatprep.subr.mxu0 0.0
  %2995 = vmatpush1.msra.mxu0 0.0
  %2996 = vmatprep.subr.mxu0 0.0
  %2997 = vmatpush1.msra.mxu0 0.0
  %2998 = vmatprep.mubr.f32.mxu0 0.0
  %2999 = vmatmul.mubr.f32.gmra.mrb[0].mxu0 %v2605
  %v3000 = vpop.f32.mrb[0].mxu0
  %v3001 = vadd.f32 0.0, %v3000
  %v3002 = vpop.f32.mrb[0].mxu0
  %3003 = vdwg.mxu0
  %v3004 = vld [vmem:[%s10] sm:$0xf]
  %v3005 = vld [vmem:[%s11] sm:$0xf]
  %v3007 = vlaneseq
  %v3008 = vshrl.u32 %v3007, 7
  %v3009 = vsub.s32 0, %v3008
  %v3010 = vrot.slane %v1277, %v3009
  %v3011 = vlaneseq
  %v3012 = vshrl.u32 %v3011, 7
  %v3013 = vsub.s32 1, %v3012
  %v3014 = vrot.slane %v1277, %v3013
  %v3015 = vlaneseq
  %v3016 = vshrl.u32 %v3015, 7
  %v3017 = vsub.s32 2, %v3016
  %v3018 = vrot.slane %v1277, %v3017
  %v3022 = vmul.f32 %v2680, %v3010
  %v3023 = vmul.f32 %v2682, %v3014
  %v3024 = vmul.f32 %v2751, %v3018
  %v3025 = vsel %vm1403, %v3022, 0.0
  %v3026 = vsel %vm1403, %v3023, 0.0
  %v3027 = vadd.f32 %v3025, %v3026
  %vm3028 = vcmask 551936
  %v3029 = vsel %vm3028, %v3024, 0.0
  %v3030 = vadd.f32 %v3027, %v3029
  %3031 = vadd.xlane.f32.xlu0 %v3030
  %v3032 = vpop.xlane.xlu0 %3031
  %v3033 = vmul.f32 %v2930, %v3010
  %v3034 = vmul.f32 %v2932, %v3014
  %v3035 = vmul.f32 %v3001, %v3018
  %v3036 = vsel %vm1403, %v3033, 0.0
  %v3037 = vsel %vm1403, %v3034, 0.0
  %v3038 = vadd.f32 %v3036, %v3037
  %v3039 = vsel %vm3028, %v3035, 0.0
  %v3040 = vadd.f32 %v3038, %v3039
  %3041 = vadd.xlane.f32.xlu0 %v3040
  %v3042 = vpop.xlane.xlu0 %3041
  %v3043 = vadd.f32 %v3032, %v3042
  %v3044 = vmul.f32 %v3043, 0.001953125
  %v3045 = vsub.f32 %v2680, %v3044
  %v3046 = vsub.f32 %v2682, %v3044
  %v3047 = vsub.f32 %v2751, %v3044
  %v3048 = vmul.f32 %v3045, %v3010
  %v3049 = vmul.f32 %v3046, %v3014
  %v3050 = vmul.f32 %v3047, %v3018
  %v3051 = vmul.f32 %v3048, %v3048
  %v3052 = vmul.f32 %v3049, %v3049
  %v3053 = vmul.f32 %v3050, %v3050
  %v3054 = vsel %vm1403, %v3051, 0.0
  %v3055 = vsel %vm1403, %v3052, 0.0
  %v3056 = vadd.f32 %v3054, %v3055
  %v3057 = vsel %vm3028, %v3053, 0.0
  %v3058 = vadd.f32 %v3056, %v3057
  %3059 = vadd.xlane.f32.xlu0 %v3058
  %v3060 = vpop.xlane.xlu0 %3059
  %v3061 = vsub.f32 %v2930, %v3044
  %v3062 = vsub.f32 %v2932, %v3044
  %v3063 = vsub.f32 %v3001, %v3044
  %v3064 = vmul.f32 %v3061, %v3010
  %v3065 = vmul.f32 %v3062, %v3014
  %v3066 = vmul.f32 %v3063, %v3018
  %v3067 = vmul.f32 %v3064, %v3064
  %v3068 = vmul.f32 %v3065, %v3065
  %v3069 = vmul.f32 %v3066, %v3066
  %v3070 = vsel %vm1403, %v3067, 0.0
  %v3071 = vsel %vm1403, %v3068, 0.0
  %v3072 = vadd.f32 %v3070, %v3071
  %v3073 = vsel %vm3028, %v3069, 0.0
  %v3074 = vadd.f32 %v3072, %v3073
  %3075 = vadd.xlane.f32.xlu0 %v3074
  %v3076 = vpop.xlane.xlu0 %3075
  %v3077 = vadd.f32 %v3060, %v3076
  %v3078 = vmul.f32 %v3077, 0.001953125
  %v3079 = vadd.f32 %v3078, 1e-05
  %v3080 = vrsqrt.pop %v3079
  %v3081 = vmul.f32 %v3080, %v3004
  %v3082 = vmul.f32 %v3044, %v3081
  %v3083 = vsub.f32 %v3005, %v3082
  %3085 = vset.pattern.permute.xlu0 0
  %3086 = vperm.xlu0 %3085, %v3081
  %v3087 = vpop.permute.xlu0 %3086
  %v3089 = vmul.f32 %v2680, %v3087
  %v3090 = vmul.f32 %v2682, %v3087
  %v3091 = vmul.f32 %v2751, %v3087
  %3093 = vset.pattern.permute.xlu0 0
  %3094 = vperm.xlu0 %3093, %v3083
  %v3095 = vpop.permute.xlu0 %3094
  %v3097 = vadd.f32 %v3089, %v3095
  %v3098 = vadd.f32 %v3090, %v3095
  %v3099 = vadd.f32 %v3091, %v3095
  %v3100 = vmax.f32 %v3097, 0.0
  %v3101 = vmax.f32 %v3098, 0.0
  %v3102 = vmax.f32 %v3099, 0.0
  %v3103 = vmul.f32 %v2930, %v3087
  %v3104 = vmul.f32 %v2932, %v3087
  %v3105 = vmul.f32 %v3001, %v3087
  %v3106 = vadd.f32 %v3103, %v3095
  %v3107 = vadd.f32 %v3104, %v3095
  %v3108 = vadd.f32 %v3105, %v3095
  %v3109 = vmax.f32 %v3106, 0.0
  %v3110 = vmax.f32 %v3107, 0.0
  %v3111 = vmax.f32 %v3108, 0.0
  %3113 = vrot.lane.b32.xlu0 %v3100, 109
  %v3114 = vpop.permute.xlu0 %3113
  %3116 = vrot.lane.b32.xlu0 %v3100, 107
  %v3117 = vpop.permute.xlu0 %3116
  %3119 = vrot.lane.b32.xlu0 %v3100, 105
  %v3120 = vpop.permute.xlu0 %3119
  %3122 = vrot.lane.b32.xlu0 %v3100, 103
  %v3123 = vpop.permute.xlu0 %3122
  %3125 = vrot.lane.b32.xlu0 %v3100, 101
  %v3126 = vpop.permute.xlu0 %3125
  %3128 = vrot.lane.b32.xlu0 %v3100, 99
  %v3129 = vpop.permute.xlu0 %3128
  %3132 = vrot.lane.b32.xlu0 %v3100, 97
  %v3133 = vpop.permute.xlu0 %3132
  %3134 = vrot.lane.b32.xlu0 %v3101, 97
  %v3135 = vpop.permute.xlu0 %3134
  %vm3136 = vcmask 793600
  %v3137 = vsel %vm3136, %v3133, %v3135
  %3139 = vrot.lane.b32.xlu0 %v3101, 95
  %v3140 = vpop.permute.xlu0 %3139
  %3142 = vrot.lane.b32.xlu0 %v3101, 93
  %v3143 = vpop.permute.xlu0 %3142
  %3145 = vrot.lane.b32.xlu0 %v3101, 91
  %v3146 = vpop.permute.xlu0 %3145
  %3148 = vrot.lane.b32.xlu0 %v3101, 89
  %v3149 = vpop.permute.xlu0 %3148
  %3151 = vrot.lane.b32.xlu0 %v3101, 87
  %v3152 = vpop.permute.xlu0 %3151
  %3154 = vrot.lane.b32.xlu0 %v3101, 85
  %v3155 = vpop.permute.xlu0 %3154
  %3158 = vrot.lane.b32.xlu0 %v3101, 83
  %v3159 = vpop.permute.xlu0 %3158
  %3160 = vrot.lane.b32.xlu0 %v3102, 83
  %v3161 = vpop.permute.xlu0 %3160
  %vm3162 = vcmask 678912
  %v3163 = vsel %vm3162, %v3159, %v3161
  %3165 = vrot.lane.b32.xlu0 %v3102, 81
  %v3166 = vpop.permute.xlu0 %3165
  %3168 = vrot.lane.b32.xlu0 %v3102, 79
  %v3169 = vpop.permute.xlu0 %3168
  %v3171 = vsel %vm1067, %v3114, %v3117
  %vm3172 = vcmask 261120
  %v3173 = vsel %vm3172, %v3171, %v3120
  %vm3174 = vcmask 392192
  %v3175 = vsel %vm3174, %v3173, %v3123
  %vm3176 = vcmask 523264
  %v3177 = vsel %vm3176, %v3175, %v3126
  %vm3178 = vcmask 654336
  %v3179 = vsel %vm3178, %v3177, %v3129
  %vm3180 = vcmask 785408
  %v3181 = vsel %vm3180, %v3179, %v3137
  %vm3182 = vcmask 916480
  %v3183 = vsel %vm3182, %v3181, %v3140
  %v3184 = vsel %vm1067, %v3143, %v3146
  %v3185 = vsel %vm3172, %v3184, %v3149
  %v3186 = vsel %vm3174, %v3185, %v3152
  %v3187 = vsel %vm3176, %v3186, %v3155
  %v3188 = vsel %vm3178, %v3187, %v3163
  %v3189 = vsel %vm3180, %v3188, %v3166
  %v3190 = vsel %vm3182, %v3189, %v3169
  %v3193 = vcombine.low %v3183, %v3190
  %3195 = vst [vmem:[%s12] sm:$0xff] %v3193
  %3197 = vrot.lane.b32.xlu0 %v3109, 109
  %v3198 = vpop.permute.xlu0 %3197
  %3200 = vrot.lane.b32.xlu0 %v3109, 107
  %v3201 = vpop.permute.xlu0 %3200
  %3203 = vrot.lane.b32.xlu0 %v3109, 105
  %v3204 = vpop.permute.xlu0 %3203
  %3206 = vrot.lane.b32.xlu0 %v3109, 103
  %v3207 = vpop.permute.xlu0 %3206
  %3209 = vrot.lane.b32.xlu0 %v3109, 101
  %v3210 = vpop.permute.xlu0 %3209
  %3212 = vrot.lane.b32.xlu0 %v3109, 99
  %v3213 = vpop.permute.xlu0 %3212
  %3216 = vrot.lane.b32.xlu0 %v3109, 97
  %v3217 = vpop.permute.xlu0 %3216
  %3218 = vrot.lane.b32.xlu0 %v3110, 97
  %v3219 = vpop.permute.xlu0 %3218
  %v3220 = vsel %vm3136, %v3217, %v3219
  %3222 = vrot.lane.b32.xlu0 %v3110, 95
  %v3223 = vpop.permute.xlu0 %3222
  %3225 = vrot.lane.b32.xlu0 %v3110, 93
  %v3226 = vpop.permute.xlu0 %3225
  %3228 = vrot.lane.b32.xlu0 %v3110, 91
  %v3229 = vpop.permute.xlu0 %3228
  %3231 = vrot.lane.b32.xlu0 %v3110, 89
  %v3232 = vpop.permute.xlu0 %3231
  %3234 = vrot.lane.b32.xlu0 %v3110, 87
  %v3235 = vpop.permute.xlu0 %3234
  %3237 = vrot.lane.b32.xlu0 %v3110, 85
  %v3238 = vpop.permute.xlu0 %3237
  %3241 = vrot.lane.b32.xlu0 %v3110, 83
  %v3242 = vpop.permute.xlu0 %3241
  %3243 = vrot.lane.b32.xlu0 %v3111, 83
  %v3244 = vpop.permute.xlu0 %3243
  %v3245 = vsel %vm3162, %v3242, %v3244
  %3247 = vrot.lane.b32.xlu0 %v3111, 81
  %v3248 = vpop.permute.xlu0 %3247
  %3250 = vrot.lane.b32.xlu0 %v3111, 79
  %v3251 = vpop.permute.xlu0 %3250
  %v3253 = vsel %vm1067, %v3198, %v3201
  %v3254 = vsel %vm3172, %v3253, %v3204
  %v3255 = vsel %vm3174, %v3254, %v3207
  %v3256 = vsel %vm3176, %v3255, %v3210
  %v3257 = vsel %vm3178, %v3256, %v3213
  %v3258 = vsel %vm3180, %v3257, %v3220
  %v3259 = vsel %vm3182, %v3258, %v3223
  %v3260 = vsel %vm1067, %v3226, %v3229
  %v3261 = vsel %vm3172, %v3260, %v3232
  %v3262 = vsel %vm3174, %v3261, %v3235
  %v3263 = vsel %vm3176, %v3262, %v3238
  %v3264 = vsel %vm3178, %v3263, %v3245
  %v3265 = vsel %vm3180, %v3264, %v3248
  %v3266 = vsel %vm3182, %v3265, %v3251
  %v3269 = vcombine.low %v3259, %v3266
  %s3271 = scalar_lea.vmem %s12, 8
  %3272 = vst [vmem:[%s3271] sm:$0xff] %v3269
  // Predicated region
  $region50: #{up_forward.1} parent=0 // pred_check
    _
  $region51: #{up_forward.1} parent=0 // pred_check_branch
    %3274 = sbr.rel (0) target = $region53
  $region52: #{up_forward.1} parent=0 // pred_region
    _
  $region53: #{up_forward.1} parent=0 // pred_fallthru
    _
  // Predicated region
  $region54: #{up_forward.1} parent=0 // pred_check
    _
  $region55: #{up_forward.1} parent=0 // pred_check_branch
    %3276 = sbr.rel (0) target = $region57
  $region56: #{up_forward.1} parent=0 // pred_region
    _
  $region57: #{up_forward.1} parent=0 // pred_fallthru
    _

</llo_original>
